<compile_context>
chip_gen: v7x
topology: tpu7x:2x2x1
jax: 0.10.0
libtpu: 0.0.40
codegen_flags: <defaults>
</compile_context>

<pallas_src>
import math
import jax
import jax.numpy as jnp
from jax.experimental import pallas as pl
from jax.experimental.pallas import tpu as pltpu

D_MODEL = 32
NHEAD = 4
HEAD_DIM = D_MODEL // NHEAD
DFF = 64
NUM_LAYERS = 2
EPS = 1e-5
SCALE = 1.0 / math.sqrt(HEAD_DIM)

# Columns of the per-layer in-loop (D, 6*D + DFF) projection slab.
_QKV_SA = slice(0, 3 * D_MODEL)                     # [Wq_sa | Wk_sa | Wv_sa]
_O_SA = slice(3 * D_MODEL, 4 * D_MODEL)
_Q_CA = slice(4 * D_MODEL, 5 * D_MODEL)
_O_CA = slice(5 * D_MODEL, 6 * D_MODEL)
_W1 = slice(6 * D_MODEL, 6 * D_MODEL + DFF)
WA_COLS = 6 * D_MODEL + DFF

# Rows (per layer) of the packed (L*VROWS, D) bias / norm-param table.
(ROW_BV_SA, ROW_BO_SA, ROW_BO_CA, ROW_B2,
 ROW_N1W, ROW_N1B, ROW_N2W, ROW_N2B, ROW_N3W, ROW_N3B) = range(10)
VROWS = 10


# ---------------------------------------------------------------------------
# in-kernel helpers (traced inside the Pallas kernel body)
# ---------------------------------------------------------------------------
def _layer_norm(x, w, b):
    mu = jnp.mean(x, axis=-1, keepdims=True)
    var = jnp.mean(jnp.square(x - mu), axis=-1, keepdims=True)
    return (x - mu) * jax.lax.rsqrt(var + EPS) * w + b


def _mha(q, k3, v3, hsel, w_o, b_o, batch, lq):
    """Multi-head attention, all heads in one pass.

    q      : (batch*lq, D)   f32, projected query (+pos term, +bias)
    k3, v3 : (batch, lk, D)  bf16, projected keys / values (+bias)
    hsel   : (NHEAD*lq, D)   f32, hsel[h*lq+i, d] = 1 iff lane d belongs to head h

    Query rows are replicated NHEAD times and masked per replica, so one
    batched score matmul + one batched context matmul cover every head.
    """
    q3 = (q * SCALE).reshape(batch, lq, D_MODEL)
    q_exp = (jnp.concatenate([q3] * NHEAD, axis=1) * hsel).astype(jnp.bfloat16)
    s = jnp.einsum('bmd,bkd->bmk', q_exp, k3,
                   preferred_element_type=jnp.float32)        # (B, H*lq, lk)
    s = s - jnp.max(s, axis=-1, keepdims=True)
    p = jnp.exp(s)
    p = p * pl.reciprocal(jnp.sum(p, axis=-1, keepdims=True), approx=True)
    ctx_exp = jnp.einsum('bmk,bkd->bmd', p.astype(jnp.bfloat16), v3,
                         preferred_element_type=jnp.float32)  # (B, H*lq, D)
    ctx_exp = ctx_exp * hsel
    ctx = ctx_exp[:, 0:lq, :]
    for h in range(1, NHEAD):                                 # fold head blocks
        ctx = ctx + ctx_exp[:, h * lq:(h + 1) * lq, :]
    ctx = ctx.reshape(batch * lq, D_MODEL).astype(jnp.bfloat16)
    return jnp.dot(ctx, w_o, preferred_element_type=jnp.float32) + b_o


# ---------------------------------------------------------------------------
# fused TransformerDecoder.forward (return_intermediate=False, masks None)
# ---------------------------------------------------------------------------
@jax.jit
def transformer_decoder(tgt, memory, query_pos, pos,
                        wa_all, w2_all, wqpos, bqpos, wkca, bkca, wvca, bvca,
                        vec_all, b1_all, hsel, norm_w, norm_b):
    B, Tq, D = tgt.shape
    _, Tk, _ = memory.shape
    assert D == D_MODEL

    def kernel(tgt_ref, mem_ref, qpos_ref, pos_ref,
               wa_ref, w2_ref, wqpos_ref, bqpos_ref, wkca_ref, bkca_ref,
               wvca_ref, bvca_ref, vec_ref, b1_ref, hsel_ref, nw_ref, nb_ref,
               out_ref):
        x = tgt_ref[...]                                      # (B*Tq, D) f32
        mem = mem_ref[...]                                    # (B*Tk, D) f32
        qpos_b = qpos_ref[...].astype(jnp.bfloat16)
        memk_b = (mem + pos_ref[...]).astype(jnp.bfloat16)    # cross-attn keys
        mem_b = mem.astype(jnp.bfloat16)
        hs = hsel_ref[...]                                    # (NHEAD*Tq, D)

        # ---- layer-invariant projections, hoisted out of the layer loop ----
        # query_pos contribution to [q_sa | k_sa | q_ca] of every layer
        qpos_proj = jnp.dot(qpos_b, wqpos_ref[...],
                            preferred_element_type=jnp.float32) + bqpos_ref[...]
        # cross-attention keys / values of every layer (+biases)
        kc_all = (jnp.dot(memk_b, wkca_ref[...],
                          preferred_element_type=jnp.float32)
                  + bkca_ref[...]).astype(jnp.bfloat16)       # (B*Tk, L*D)
        vc_all = (jnp.dot(mem_b, wvca_ref[...],
                          preferred_element_type=jnp.float32)
                  + bvca_ref[...]).astype(jnp.bfloat16)       # (B*Tk, L*D)

        for l in range(NUM_LAYERS):                           # static unroll
            wa = wa_ref[l]                                    # (D, 6D+DFF) bf16
            r0 = l * VROWS
            c0 = l * 3 * D_MODEL

            def V(i, _r0=r0):
                return vec_ref[_r0 + i:_r0 + i + 1, :]        # (1, D) f32

            # --- self attention: q = k = x + query_pos, v = x ---------------
            proj = jnp.dot(x.astype(jnp.bfloat16), wa[:, _QKV_SA],
                           preferred_element_type=jnp.float32)   # (B*Tq, 3D)
            q_sa = proj[:, 0:D_MODEL] + qpos_proj[:, c0:c0 + D_MODEL]
            k_sa = (proj[:, D_MODEL:2 * D_MODEL]
                    + qpos_proj[:, c0 + D_MODEL:c0 + 2 * D_MODEL])
            v_sa = proj[:, 2 * D_MODEL:3 * D_MODEL] + V(ROW_BV_SA)
            sa = _mha(q_sa,
                      k_sa.reshape(B, Tq, D_MODEL).astype(jnp.bfloat16),
                      v_sa.reshape(B, Tq, D_MODEL).astype(jnp.bfloat16),
                      hs, wa[:, _O_SA], V(ROW_BO_SA), B, Tq)
            x = _layer_norm(x + sa, V(ROW_N1W), V(ROW_N1B))       # norm1

            # --- cross attention: q = x + qpos, k = mem + pos, v = mem ------
            q_ca = (jnp.dot(x.astype(jnp.bfloat16), wa[:, _Q_CA],
                            preferred_element_type=jnp.float32)
                    + qpos_proj[:, c0 + 2 * D_MODEL:c0 + 3 * D_MODEL])
            kc = kc_all[:, l * D_MODEL:(l + 1) * D_MODEL].reshape(B, Tk, D_MODEL)
            vc = vc_all[:, l * D_MODEL:(l + 1) * D_MODEL].reshape(B, Tk, D_MODEL)
            ca = _mha(q_ca, kc, vc, hs, wa[:, _O_CA], V(ROW_BO_CA), B, Tq)
            x = _layer_norm(x + ca, V(ROW_N2W), V(ROW_N2B))       # norm2

            # --- feed forward (ReLU, dropout = identity) --------------------
            hdn = jnp.maximum(
                jnp.dot(x.astype(jnp.bfloat16), wa[:, _W1],
                        preferred_element_type=jnp.float32)
                + b1_ref[l:l + 1, :], 0.0)
            f = jnp.dot(hdn.astype(jnp.bfloat16), w2_ref[l],
                        preferred_element_type=jnp.float32) + V(ROW_B2)
            x = _layer_norm(x + f, V(ROW_N3W), V(ROW_N3B))        # norm3

        # --- final LayerNorm (self.norm) ------------------------------------
        x = _layer_norm(x, nw_ref[...], nb_ref[...])
        out_ref[...] = x.astype(out_ref.dtype)

    vspec = pl.BlockSpec(memory_space=pltpu.MemorySpace.VMEM)
    out = pl.pallas_call(
        kernel,
        out_shape=jax.ShapeDtypeStruct((B * Tq, D), tgt.dtype),
        in_specs=[vspec] * 17,
        out_specs=vspec,
    )(
        tgt.reshape(B * Tq, D), memory.reshape(B * Tk, D),
        query_pos.reshape(B * Tq, D), pos.reshape(B * Tk, D),
        wa_all, w2_all, wqpos, bqpos, wkca, bkca, wvca, bvca,
        vec_all, b1_all, hsel, norm_w, norm_b,
    )
    return out.reshape(B, Tq, D)


# ---------------------------------------------------------------------------
# deterministic parameter construction (packed layout)
# ---------------------------------------------------------------------------
def init_layer_params(key):
    ks = jax.random.split(key, 13)
    s = 0.02

    def nrm(k, shape):
        return (s * jax.random.normal(k, shape)).astype(jnp.float32)

    p = {}
    for i, n in enumerate(['wq_sa', 'wk_sa', 'wv_sa', 'wo_sa',
                           'wq_ca', 'wk_ca', 'wv_ca', 'wo_ca']):
        p[n] = nrm(ks[i], (D_MODEL, D_MODEL))
    p['w1'] = nrm(ks[8], (D_MODEL, DFF))
    p['w2'] = nrm(ks[9], (DFF, D_MODEL))
    p['b1'] = nrm(ks[10], (DFF,))
    ab = nrm(ks[11], (8, D_MODEL))
    for i, n in enumerate(['bq_sa', 'bk_sa', 'bv_sa', 'bo_sa',
                           'bq_ca', 'bk_ca', 'bv_ca', 'bo_ca']):
        p[n] = ab[i]
    p['b2'] = nrm(ks[12], (D_MODEL,))
    ones = jnp.ones((D_MODEL,), jnp.float32)
    zeros = jnp.zeros((D_MODEL,), jnp.float32)
    p['n1w'], p['n1b'] = ones, zeros
    p['n2w'], p['n2b'] = ones, zeros
    p['n3w'], p['n3b'] = ones, zeros
    return p


def pack_params(layers):
    wa_all = jnp.stack([
        jnp.concatenate([p['wq_sa'], p['wk_sa'], p['wv_sa'], p['wo_sa'],
                         p['wq_ca'], p['wo_ca'], p['w1']], axis=1)
        for p in layers]).astype(jnp.bfloat16)                  # (L, D, 6D+DFF)
    w2_all = jnp.stack([p['w2'] for p in layers]).astype(jnp.bfloat16)
    wqpos = jnp.concatenate(
        [jnp.concatenate([p['wq_sa'], p['wk_sa'], p['wq_ca']], axis=1)
         for p in layers], axis=1).astype(jnp.bfloat16)         # (D, L*3D)
    bqpos = jnp.concatenate(
        [jnp.concatenate([p['bq_sa'], p['bk_sa'], p['bq_ca']]) for p in layers]
    )[None, :]                                                  # (1, L*3D)
    wkca = jnp.concatenate([p['wk_ca'] for p in layers], axis=1).astype(jnp.bfloat16)
    bkca = jnp.concatenate([p['bk_ca'] for p in layers])[None, :]
    wvca = jnp.concatenate([p['wv_ca'] for p in layers], axis=1).astype(jnp.bfloat16)
    bvca = jnp.concatenate([p['bv_ca'] for p in layers])[None, :]
    vec_all = jnp.concatenate([
        jnp.stack([p['bv_sa'], p['bo_sa'], p['bo_ca'], p['b2'],
                   p['n1w'], p['n1b'], p['n2w'], p['n2b'], p['n3w'], p['n3b']],
                  axis=0)
        for p in layers], axis=0)                               # (L*10, D)
    b1_all = jnp.stack([p['b1'] for p in layers])               # (L, DFF)
    return (wa_all, w2_all, wqpos, bqpos, wkca, bkca, wvca, bvca,
            vec_all, b1_all)


def make_head_select(num_q):
    lane_head = jnp.arange(D_MODEL) // HEAD_DIM                 # (D,)
    row_head = jnp.repeat(jnp.arange(NHEAD), num_q)             # (NHEAD*num_q,)
    return (row_head[:, None] == lane_head[None, :]).astype(jnp.float32)


if __name__ == "__main__":
    B, Tq, Tk = 2, 8, 16   # batch, num_queries (tgt seq), memory length

    key = jax.random.PRNGKey(0)
    k_tgt, k_mem, k_qp, k_pos, k_params = jax.random.split(key, 5)

    tgt = jax.random.normal(k_tgt, (B, Tq, D_MODEL), jnp.float32)
    memory = jax.random.normal(k_mem, (B, Tk, D_MODEL), jnp.float32)
    query_pos = jax.random.normal(k_qp, (B, Tq, D_MODEL), jnp.float32)
    pos = jax.random.normal(k_pos, (B, Tk, D_MODEL), jnp.float32)

    layer_keys = jax.random.split(k_params, NUM_LAYERS)
    packed = pack_params([init_layer_params(k) for k in layer_keys])
    hsel = make_head_select(Tq)
    norm_w = jnp.ones((1, D_MODEL), jnp.float32)
    norm_b = jnp.zeros((1, D_MODEL), jnp.float32)

    out = transformer_decoder(tgt, memory, query_pos, pos,
                              *packed, hsel, norm_w, norm_b)
    out = jax.block_until_ready(out)
    assert out.shape == (B, Tq, D_MODEL) and bool(jnp.all(jnp.isfinite(out)))
    print("KERNEL_OK")
</pallas_src>

<mosaic_0001>
module attributes {stable_mosaic.version = 11 : i64} {
  func.func @kernel(%arg0: memref<16x32xf32, #tpu.memory_space<vmem>>, %arg1: memref<32x32xf32, #tpu.memory_space<vmem>>, %arg2: memref<16x32xf32, #tpu.memory_space<vmem>>, %arg3: memref<32x32xf32, #tpu.memory_space<vmem>>, %arg4: memref<2x32x256xbf16, #tpu.memory_space<vmem>>, %arg5: memref<2x64x32xbf16, #tpu.memory_space<vmem>>, %arg6: memref<32x192xbf16, #tpu.memory_space<vmem>>, %arg7: memref<1x192xf32, #tpu.memory_space<vmem>>, %arg8: memref<32x64xbf16, #tpu.memory_space<vmem>>, %arg9: memref<1x64xf32, #tpu.memory_space<vmem>>, %arg10: memref<32x64xbf16, #tpu.memory_space<vmem>>, %arg11: memref<1x64xf32, #tpu.memory_space<vmem>>, %arg12: memref<20x32xf32, #tpu.memory_space<vmem>>, %arg13: memref<2x64xf32, #tpu.memory_space<vmem>>, %arg14: memref<32x32xf32, #tpu.memory_space<vmem>>, %arg15: memref<1x32xf32, #tpu.memory_space<vmem>>, %arg16: memref<1x32xf32, #tpu.memory_space<vmem>>, %arg17: memref<16x32xf32, #tpu.memory_space<vmem>>) attributes {dimension_semantics = [], scalar_prefetch = 0 : i64, scratch_operands = 0 : i64, tpu.core_type = #tpu.core_type<tc>} {
    %c0 = arith.constant 0 : index
    %c0_0 = arith.constant 0 : index
    %0 = vector.load %arg0[%c0, %c0_0] : memref<16x32xf32, #tpu.memory_space<vmem>>, vector<16x32xf32>
    %c0_1 = arith.constant 0 : index
    %c0_2 = arith.constant 0 : index
    %1 = vector.load %arg1[%c0_1, %c0_2] : memref<32x32xf32, #tpu.memory_space<vmem>>, vector<32x32xf32>
    %c0_3 = arith.constant 0 : index
    %c0_4 = arith.constant 0 : index
    %2 = vector.load %arg2[%c0_3, %c0_4] : memref<16x32xf32, #tpu.memory_space<vmem>>, vector<16x32xf32>
    %3 = arith.truncf %2 : vector<16x32xf32> to vector<16x32xbf16>
    %c0_5 = arith.constant 0 : index
    %c0_6 = arith.constant 0 : index
    %4 = vector.load %arg3[%c0_5, %c0_6] : memref<32x32xf32, #tpu.memory_space<vmem>>, vector<32x32xf32>
    %5 = arith.addf %1, %4 : vector<32x32xf32>
    %6 = arith.truncf %5 : vector<32x32xf32> to vector<32x32xbf16>
    %7 = arith.truncf %1 : vector<32x32xf32> to vector<32x32xbf16>
    %c0_7 = arith.constant 0 : index
    %c0_8 = arith.constant 0 : index
    %8 = vector.load %arg14[%c0_7, %c0_8] : memref<32x32xf32, #tpu.memory_space<vmem>>, vector<32x32xf32>
    %c0_9 = arith.constant 0 : index
    %c0_10 = arith.constant 0 : index
    %9 = vector.load %arg6[%c0_9, %c0_10] : memref<32x192xbf16, #tpu.memory_space<vmem>>, vector<32x192xbf16>
    %cst = arith.constant dense<0.000000e+00> : vector<16x192xf32>
    %10 = tpu.matmul %3, %9, %cst {dimension_numbers = #tpu.dot_dimension_numbers<[1], [0], [0], [1], [0, 0, 1, 1], [], []>} : vector<16x32xbf16>, vector<32x192xbf16>, vector<16x192xf32> -> vector<16x192xf32>
    %c0_11 = arith.constant 0 : index
    %c0_12 = arith.constant 0 : index
    %11 = vector.load %arg7[%c0_11, %c0_12] : memref<1x192xf32, #tpu.memory_space<vmem>>, vector<1x192xf32>
    %12 = vector.broadcast %11 : vector<1x192xf32> to vector<16x192xf32>
    %13 = arith.addf %10, %12 : vector<16x192xf32>
    %c0_13 = arith.constant 0 : index
    %c0_14 = arith.constant 0 : index
    %14 = vector.load %arg8[%c0_13, %c0_14] : memref<32x64xbf16, #tpu.memory_space<vmem>>, vector<32x64xbf16>
    %cst_15 = arith.constant dense<0.000000e+00> : vector<32x64xf32>
    %15 = tpu.matmul %6, %14, %cst_15 {dimension_numbers = #tpu.dot_dimension_numbers<[1], [0], [0], [1], [0, 0, 1, 1], [], []>} : vector<32x32xbf16>, vector<32x64xbf16>, vector<32x64xf32> -> vector<32x64xf32>
    %c0_16 = arith.constant 0 : index
    %c0_17 = arith.constant 0 : index
    %16 = vector.load %arg9[%c0_16, %c0_17] : memref<1x64xf32, #tpu.memory_space<vmem>>, vector<1x64xf32>
    %17 = vector.broadcast %16 : vector<1x64xf32> to vector<32x64xf32>
    %18 = arith.addf %15, %17 : vector<32x64xf32>
    %19 = arith.truncf %18 : vector<32x64xf32> to vector<32x64xbf16>
    %c0_18 = arith.constant 0 : index
    %c0_19 = arith.constant 0 : index
    %20 = vector.load %arg10[%c0_18, %c0_19] : memref<32x64xbf16, #tpu.memory_space<vmem>>, vector<32x64xbf16>
    %cst_20 = arith.constant dense<0.000000e+00> : vector<32x64xf32>
    %21 = tpu.matmul %7, %20, %cst_20 {dimension_numbers = #tpu.dot_dimension_numbers<[1], [0], [0], [1], [0, 0, 1, 1], [], []>} : vector<32x32xbf16>, vector<32x64xbf16>, vector<32x64xf32> -> vector<32x64xf32>
    %c0_21 = arith.constant 0 : index
    %c0_22 = arith.constant 0 : index
    %22 = vector.load %arg11[%c0_21, %c0_22] : memref<1x64xf32, #tpu.memory_space<vmem>>, vector<1x64xf32>
    %23 = vector.broadcast %22 : vector<1x64xf32> to vector<32x64xf32>
    %24 = arith.addf %21, %23 : vector<32x64xf32>
    %25 = arith.truncf %24 : vector<32x64xf32> to vector<32x64xbf16>
    %c0_23 = arith.constant 0 : index
    %c0_24 = arith.constant 0 : index
    %c0_25 = arith.constant 0 : index
    %26 = vector.load %arg4[%c0_23, %c0_24, %c0_25] : memref<2x32x256xbf16, #tpu.memory_space<vmem>>, vector<1x32x256xbf16>
    %27 = vector.shape_cast %26 : vector<1x32x256xbf16> to vector<32x256xbf16>
    %28 = arith.truncf %0 : vector<16x32xf32> to vector<16x32xbf16>
    %29 = vector.extract_strided_slice %27 {offsets = [0, 0], sizes = [32, 96], strides = [1, 1]} : vector<32x256xbf16> to vector<32x96xbf16>
    %cst_26 = arith.constant dense<0.000000e+00> : vector<16x96xf32>
    %30 = tpu.matmul %28, %29, %cst_26 {dimension_numbers = #tpu.dot_dimension_numbers<[1], [0], [0], [1], [0, 0, 1, 1], [], []>} : vector<16x32xbf16>, vector<32x96xbf16>, vector<16x96xf32> -> vector<16x96xf32>
    %31 = vector.extract_strided_slice %30 {offsets = [0, 0], sizes = [16, 32], strides = [1, 1]} : vector<16x96xf32> to vector<16x32xf32>
    %32 = vector.extract_strided_slice %13 {offsets = [0, 0], sizes = [16, 32], strides = [1, 1]} : vector<16x192xf32> to vector<16x32xf32>
    %33 = arith.addf %31, %32 : vector<16x32xf32>
    %34 = vector.extract_strided_slice %30 {offsets = [0, 32], sizes = [16, 32], strides = [1, 1]} : vector<16x96xf32> to vector<16x32xf32>
    %35 = vector.extract_strided_slice %13 {offsets = [0, 32], sizes = [16, 32], strides = [1, 1]} : vector<16x192xf32> to vector<16x32xf32>
    %36 = arith.addf %34, %35 : vector<16x32xf32>
    %37 = vector.extract_strided_slice %30 {offsets = [0, 64], sizes = [16, 32], strides = [1, 1]} : vector<16x96xf32> to vector<16x32xf32>
    %c0_27 = arith.constant 0 : index
    %c0_28 = arith.constant 0 : index
    %38 = vector.load %arg12[%c0_27, %c0_28] : memref<20x32xf32, #tpu.memory_space<vmem>>, vector<1x32xf32>
    %39 = vector.broadcast %38 : vector<1x32xf32> to vector<16x32xf32>
    %40 = arith.addf %37, %39 : vector<16x32xf32>
    %41 = vector.shape_cast %36 : vector<16x32xf32> to vector<2x8x32xf32>
    %42 = arith.truncf %41 : vector<2x8x32xf32> to vector<2x8x32xbf16>
    %43 = vector.shape_cast %40 : vector<16x32xf32> to vector<2x8x32xf32>
    %44 = arith.truncf %43 : vector<2x8x32xf32> to vector<2x8x32xbf16>
    %45 = vector.extract_strided_slice %27 {offsets = [0, 96], sizes = [32, 32], strides = [1, 1]} : vector<32x256xbf16> to vector<32x32xbf16>
    %c1 = arith.constant 1 : index
    %c0_29 = arith.constant 0 : index
    %46 = vector.load %arg12[%c1, %c0_29] : memref<20x32xf32, #tpu.memory_space<vmem>>, vector<1x32xf32>
    %cst_30 = arith.constant 0.353553385 : f32
    %47 = vector.broadcast %cst_30 : f32 to vector<16x32xf32>
    %48 = arith.mulf %33, %47 : vector<16x32xf32>
    %49 = vector.shape_cast %48 : vector<16x32xf32> to vector<2x8x32xf32>
    %50 = tpu.concatenate %49, %49, %49, %49 in 1 : vector<2x8x32xf32>, vector<2x8x32xf32>, vector<2x8x32xf32>, vector<2x8x32xf32> -> vector<2x32x32xf32>
    %51 = vector.shape_cast %8 : vector<32x32xf32> to vector<1x32x32xf32>
    %52 = vector.broadcast %51 : vector<1x32x32xf32> to vector<2x32x32xf32>
    %53 = arith.mulf %50, %52 : vector<2x32x32xf32>
    %54 = arith.truncf %53 : vector<2x32x32xf32> to vector<2x32x32xbf16>
    "tpu.trace_start"() <{level = 10 : i32, message = "bmd,bkd->bmk"}> : () -> ()
    %cst_31 = arith.constant dense<0.000000e+00> : vector<2x32x8xf32>
    %55 = tpu.matmul %54, %42, %cst_31 {dimension_numbers = #tpu.dot_dimension_numbers<[2], [2], [1], [1], [0, 0, 0, 1, 1, 1], [0], [0]>} : vector<2x32x32xbf16>, vector<2x8x32xbf16>, vector<2x32x8xf32> -> vector<2x32x8xf32>
    "tpu.trace_stop"() : () -> ()
    %cst_32 = arith.constant dense<0xFF800000> : vector<2x32xf32>
    %56 = vector.multi_reduction <maximumf>, %55, %cst_32 [2] : vector<2x32x8xf32> to vector<2x32xf32>
    %57 = vector.shape_cast %56 : vector<2x32xf32> to vector<2x32x1xf32>
    %58 = vector.broadcast %57 : vector<2x32x1xf32> to vector<2x32x8xf32>
    %59 = arith.subf %55, %58 : vector<2x32x8xf32>
    %60 = math.exp %59 : vector<2x32x8xf32>
    %cst_33 = arith.constant dense<0.000000e+00> : vector<2x32xf32>
    %61 = vector.multi_reduction <add>, %60, %cst_33 [2] : vector<2x32x8xf32> to vector<2x32xf32>
    %62 = vector.shape_cast %61 : vector<2x32xf32> to vector<2x32x1xf32>
    %63 = tpu.reciprocal %62 {approx = true} : vector<2x32x1xf32> -> vector<2x32x1xf32>
    %64 = vector.broadcast %63 : vector<2x32x1xf32> to vector<2x32x8xf32>
    %65 = arith.mulf %60, %64 : vector<2x32x8xf32>
    %66 = arith.truncf %65 : vector<2x32x8xf32> to vector<2x32x8xbf16>
    "tpu.trace_start"() <{level = 10 : i32, message = "bmk,bkd->bmd"}> : () -> ()
    %cst_34 = arith.constant dense<0.000000e+00> : vector<2x32x32xf32>
    %67 = tpu.matmul %66, %44, %cst_34 {dimension_numbers = #tpu.dot_dimension_numbers<[2], [1], [1], [2], [0, 0, 0, 1, 1, 2], [0], [0]>} : vector<2x32x8xbf16>, vector<2x8x32xbf16>, vector<2x32x32xf32> -> vector<2x32x32xf32>
    "tpu.trace_stop"() : () -> ()
    %68 = vector.shape_cast %8 : vector<32x32xf32> to vector<1x32x32xf32>
    %69 = vector.broadcast %68 : vector<1x32x32xf32> to vector<2x32x32xf32>
    %70 = arith.mulf %67, %69 : vector<2x32x32xf32>
    %71 = vector.extract_strided_slice %70 {offsets = [0, 0, 0], sizes = [2, 8, 32], strides = [1, 1, 1]} : vector<2x32x32xf32> to vector<2x8x32xf32>
    %72 = vector.extract_strided_slice %70 {offsets = [0, 8, 0], sizes = [2, 8, 32], strides = [1, 1, 1]} : vector<2x32x32xf32> to vector<2x8x32xf32>
    %73 = arith.addf %71, %72 : vector<2x8x32xf32>
    %74 = vector.extract_strided_slice %70 {offsets = [0, 16, 0], sizes = [2, 8, 32], strides = [1, 1, 1]} : vector<2x32x32xf32> to vector<2x8x32xf32>
    %75 = arith.addf %73, %74 : vector<2x8x32xf32>
    %76 = vector.extract_strided_slice %70 {offsets = [0, 24, 0], sizes = [2, 8, 32], strides = [1, 1, 1]} : vector<2x32x32xf32> to vector<2x8x32xf32>
    %77 = arith.addf %75, %76 : vector<2x8x32xf32>
    %78 = vector.shape_cast %77 : vector<2x8x32xf32> to vector<16x32xf32>
    %79 = arith.truncf %78 : vector<16x32xf32> to vector<16x32xbf16>
    %cst_35 = arith.constant dense<0.000000e+00> : vector<16x32xf32>
    %80 = tpu.matmul %79, %45, %cst_35 {dimension_numbers = #tpu.dot_dimension_numbers<[1], [0], [0], [1], [0, 0, 1, 1], [], []>} : vector<16x32xbf16>, vector<32x32xbf16>, vector<16x32xf32> -> vector<16x32xf32>
    %81 = vector.broadcast %46 : vector<1x32xf32> to vector<16x32xf32>
    %82 = arith.addf %80, %81 : vector<16x32xf32>
    %83 = arith.addf %0, %82 : vector<16x32xf32>
    %c4 = arith.constant 4 : index
    %c0_36 = arith.constant 0 : index
    %84 = vector.load %arg12[%c4, %c0_36] : memref<20x32xf32, #tpu.memory_space<vmem>>, vector<1x32xf32>
    %c5 = arith.constant 5 : index
    %c0_37 = arith.constant 0 : index
    %85 = vector.load %arg12[%c5, %c0_37] : memref<20x32xf32, #tpu.memory_space<vmem>>, vector<1x32xf32>
    %cst_38 = arith.constant dense<0.000000e+00> : vector<16xf32>
    %86 = vector.multi_reduction <add>, %83, %cst_38 [1] : vector<16x32xf32> to vector<16xf32>
    %87 = vector.shape_cast %86 : vector<16xf32> to vector<16x1xf32>
    %cst_39 = arith.constant 3.200000e+01 : f32
    %88 = vector.broadcast %cst_39 : f32 to vector<16x1xf32>
    %89 = arith.divf %87, %88 : vector<16x1xf32>
    %90 = vector.broadcast %89 : vector<16x1xf32> to vector<16x32xf32>
    %91 = arith.subf %83, %90 : vector<16x32xf32>
    %92 = arith.mulf %91, %91 : vector<16x32xf32>
    %cst_40 = arith.constant dense<0.000000e+00> : vector<16xf32>
    %93 = vector.multi_reduction <add>, %92, %cst_40 [1] : vector<16x32xf32> to vector<16xf32>
    %94 = vector.shape_cast %93 : vector<16xf32> to vector<16x1xf32>
    %cst_41 = arith.constant 3.200000e+01 : f32
    %95 = vector.broadcast %cst_41 : f32 to vector<16x1xf32>
    %96 = arith.divf %94, %95 : vector<16x1xf32>
    %97 = vector.broadcast %89 : vector<16x1xf32> to vector<16x32xf32>
    %98 = arith.subf %83, %97 : vector<16x32xf32>
    %cst_42 = arith.constant 9.99999974E-6 : f32
    %99 = vector.broadcast %cst_42 : f32 to vector<16x1xf32>
    %100 = arith.addf %96, %99 : vector<16x1xf32>
    %101 = math.rsqrt %100 : vector<16x1xf32>
    %102 = vector.broadcast %101 : vector<16x1xf32> to vector<16x32xf32>
    %103 = arith.mulf %98, %102 : vector<16x32xf32>
    %104 = vector.broadcast %84 : vector<1x32xf32> to vector<16x32xf32>
    %105 = arith.mulf %103, %104 : vector<16x32xf32>
    %106 = vector.broadcast %85 : vector<1x32xf32> to vector<16x32xf32>
    %107 = arith.addf %105, %106 : vector<16x32xf32>
    %108 = arith.truncf %107 : vector<16x32xf32> to vector<16x32xbf16>
    %109 = vector.extract_strided_slice %27 {offsets = [0, 128], sizes = [32, 32], strides = [1, 1]} : vector<32x256xbf16> to vector<32x32xbf16>
    %cst_43 = arith.constant dense<0.000000e+00> : vector<16x32xf32>
    %110 = tpu.matmul %108, %109, %cst_43 {dimension_numbers = #tpu.dot_dimension_numbers<[1], [0], [0], [1], [0, 0, 1, 1], [], []>} : vector<16x32xbf16>, vector<32x32xbf16>, vector<16x32xf32> -> vector<16x32xf32>
    %111 = vector.extract_strided_slice %13 {offsets = [0, 64], sizes = [16, 32], strides = [1, 1]} : vector<16x192xf32> to vector<16x32xf32>
    %112 = arith.addf %110, %111 : vector<16x32xf32>
    %113 = vector.extract_strided_slice %19 {offsets = [0, 0], sizes = [32, 32], strides = [1, 1]} : vector<32x64xbf16> to vector<32x32xbf16>
    %114 = vector.shape_cast %113 : vector<32x32xbf16> to vector<2x16x32xbf16>
    %115 = vector.extract_strided_slice %25 {offsets = [0, 0], sizes = [32, 32], strides = [1, 1]} : vector<32x64xbf16> to vector<32x32xbf16>
    %116 = vector.shape_cast %115 : vector<32x32xbf16> to vector<2x16x32xbf16>
    %117 = vector.extract_strided_slice %27 {offsets = [0, 160], sizes = [32, 32], strides = [1, 1]} : vector<32x256xbf16> to vector<32x32xbf16>
    %c2 = arith.constant 2 : index
    %c0_44 = arith.constant 0 : index
    %118 = vector.load %arg12[%c2, %c0_44] : memref<20x32xf32, #tpu.memory_space<vmem>>, vector<1x32xf32>
    %cst_45 = arith.constant 0.353553385 : f32
    %119 = vector.broadcast %cst_45 : f32 to vector<16x32xf32>
    %120 = arith.mulf %112, %119 : vector<16x32xf32>
    %121 = vector.shape_cast %120 : vector<16x32xf32> to vector<2x8x32xf32>
    %122 = tpu.concatenate %121, %121, %121, %121 in 1 : vector<2x8x32xf32>, vector<2x8x32xf32>, vector<2x8x32xf32>, vector<2x8x32xf32> -> vector<2x32x32xf32>
    %123 = vector.shape_cast %8 : vector<32x32xf32> to vector<1x32x32xf32>
    %124 = vector.broadcast %123 : vector<1x32x32xf32> to vector<2x32x32xf32>
    %125 = arith.mulf %122, %124 : vector<2x32x32xf32>
    %126 = arith.truncf %125 : vector<2x32x32xf32> to vector<2x32x32xbf16>
    "tpu.trace_start"() <{level = 10 : i32, message = "bmd,bkd->bmk"}> : () -> ()
    %cst_46 = arith.constant dense<0.000000e+00> : vector<2x32x16xf32>
    %127 = tpu.matmul %126, %114, %cst_46 {dimension_numbers = #tpu.dot_dimension_numbers<[2], [2], [1], [1], [0, 0, 0, 1, 1, 1], [0], [0]>} : vector<2x32x32xbf16>, vector<2x16x32xbf16>, vector<2x32x16xf32> -> vector<2x32x16xf32>
    "tpu.trace_stop"() : () -> ()
    %cst_47 = arith.constant dense<0xFF800000> : vector<2x32xf32>
    %128 = vector.multi_reduction <maximumf>, %127, %cst_47 [2] : vector<2x32x16xf32> to vector<2x32xf32>
    %129 = vector.shape_cast %128 : vector<2x32xf32> to vector<2x32x1xf32>
    %130 = vector.broadcast %129 : vector<2x32x1xf32> to vector<2x32x16xf32>
    %131 = arith.subf %127, %130 : vector<2x32x16xf32>
    %132 = math.exp %131 : vector<2x32x16xf32>
    %cst_48 = arith.constant dense<0.000000e+00> : vector<2x32xf32>
    %133 = vector.multi_reduction <add>, %132, %cst_48 [2] : vector<2x32x16xf32> to vector<2x32xf32>
    %134 = vector.shape_cast %133 : vector<2x32xf32> to vector<2x32x1xf32>
    %135 = tpu.reciprocal %134 {approx = true} : vector<2x32x1xf32> -> vector<2x32x1xf32>
    %136 = vector.broadcast %135 : vector<2x32x1xf32> to vector<2x32x16xf32>
    %137 = arith.mulf %132, %136 : vector<2x32x16xf32>
    %138 = arith.truncf %137 : vector<2x32x16xf32> to vector<2x32x16xbf16>
    "tpu.trace_start"() <{level = 10 : i32, message = "bmk,bkd->bmd"}> : () -> ()
    %cst_49 = arith.constant dense<0.000000e+00> : vector<2x32x32xf32>
    %139 = tpu.matmul %138, %116, %cst_49 {dimension_numbers = #tpu.dot_dimension_numbers<[2], [1], [1], [2], [0, 0, 0, 1, 1, 2], [0], [0]>} : vector<2x32x16xbf16>, vector<2x16x32xbf16>, vector<2x32x32xf32> -> vector<2x32x32xf32>
    "tpu.trace_stop"() : () -> ()
    %140 = vector.shape_cast %8 : vector<32x32xf32> to vector<1x32x32xf32>
    %141 = vector.broadcast %140 : vector<1x32x32xf32> to vector<2x32x32xf32>
    %142 = arith.mulf %139, %141 : vector<2x32x32xf32>
    %143 = vector.extract_strided_slice %142 {offsets = [0, 0, 0], sizes = [2, 8, 32], strides = [1, 1, 1]} : vector<2x32x32xf32> to vector<2x8x32xf32>
    %144 = vector.extract_strided_slice %142 {offsets = [0, 8, 0], sizes = [2, 8, 32], strides = [1, 1, 1]} : vector<2x32x32xf32> to vector<2x8x32xf32>
    %145 = arith.addf %143, %144 : vector<2x8x32xf32>
    %146 = vector.extract_strided_slice %142 {offsets = [0, 16, 0], sizes = [2, 8, 32], strides = [1, 1, 1]} : vector<2x32x32xf32> to vector<2x8x32xf32>
    %147 = arith.addf %145, %146 : vector<2x8x32xf32>
    %148 = vector.extract_strided_slice %142 {offsets = [0, 24, 0], sizes = [2, 8, 32], strides = [1, 1, 1]} : vector<2x32x32xf32> to vector<2x8x32xf32>
    %149 = arith.addf %147, %148 : vector<2x8x32xf32>
    %150 = vector.shape_cast %149 : vector<2x8x32xf32> to vector<16x32xf32>
    %151 = arith.truncf %150 : vector<16x32xf32> to vector<16x32xbf16>
    %cst_50 = arith.constant dense<0.000000e+00> : vector<16x32xf32>
    %152 = tpu.matmul %151, %117, %cst_50 {dimension_numbers = #tpu.dot_dimension_numbers<[1], [0], [0], [1], [0, 0, 1, 1], [], []>} : vector<16x32xbf16>, vector<32x32xbf16>, vector<16x32xf32> -> vector<16x32xf32>
    %153 = vector.broadcast %118 : vector<1x32xf32> to vector<16x32xf32>
    %154 = arith.addf %152, %153 : vector<16x32xf32>
    %155 = arith.addf %107, %154 : vector<16x32xf32>
    %c6 = arith.constant 6 : index
    %c0_51 = arith.constant 0 : index
    %156 = vector.load %arg12[%c6, %c0_51] : memref<20x32xf32, #tpu.memory_space<vmem>>, vector<1x32xf32>
    %c7 = arith.constant 7 : index
    %c0_52 = arith.constant 0 : index
    %157 = vector.load %arg12[%c7, %c0_52] : memref<20x32xf32, #tpu.memory_space<vmem>>, vector<1x32xf32>
    %cst_53 = arith.constant dense<0.000000e+00> : vector<16xf32>
    %158 = vector.multi_reduction <add>, %155, %cst_53 [1] : vector<16x32xf32> to vector<16xf32>
    %159 = vector.shape_cast %158 : vector<16xf32> to vector<16x1xf32>
    %cst_54 = arith.constant 3.200000e+01 : f32
    %160 = vector.broadcast %cst_54 : f32 to vector<16x1xf32>
    %161 = arith.divf %159, %160 : vector<16x1xf32>
    %162 = vector.broadcast %161 : vector<16x1xf32> to vector<16x32xf32>
    %163 = arith.subf %155, %162 : vector<16x32xf32>
    %164 = arith.mulf %163, %163 : vector<16x32xf32>
    %cst_55 = arith.constant dense<0.000000e+00> : vector<16xf32>
    %165 = vector.multi_reduction <add>, %164, %cst_55 [1] : vector<16x32xf32> to vector<16xf32>
    %166 = vector.shape_cast %165 : vector<16xf32> to vector<16x1xf32>
    %cst_56 = arith.constant 3.200000e+01 : f32
    %167 = vector.broadcast %cst_56 : f32 to vector<16x1xf32>
    %168 = arith.divf %166, %167 : vector<16x1xf32>
    %169 = vector.broadcast %161 : vector<16x1xf32> to vector<16x32xf32>
    %170 = arith.subf %155, %169 : vector<16x32xf32>
    %cst_57 = arith.constant 9.99999974E-6 : f32
    %171 = vector.broadcast %cst_57 : f32 to vector<16x1xf32>
    %172 = arith.addf %168, %171 : vector<16x1xf32>
    %173 = math.rsqrt %172 : vector<16x1xf32>
    %174 = vector.broadcast %173 : vector<16x1xf32> to vector<16x32xf32>
    %175 = arith.mulf %170, %174 : vector<16x32xf32>
    %176 = vector.broadcast %156 : vector<1x32xf32> to vector<16x32xf32>
    %177 = arith.mulf %175, %176 : vector<16x32xf32>
    %178 = vector.broadcast %157 : vector<1x32xf32> to vector<16x32xf32>
    %179 = arith.addf %177, %178 : vector<16x32xf32>
    %180 = arith.truncf %179 : vector<16x32xf32> to vector<16x32xbf16>
    %181 = vector.extract_strided_slice %27 {offsets = [0, 192], sizes = [32, 64], strides = [1, 1]} : vector<32x256xbf16> to vector<32x64xbf16>
    %cst_58 = arith.constant dense<0.000000e+00> : vector<16x64xf32>
    %182 = tpu.matmul %180, %181, %cst_58 {dimension_numbers = #tpu.dot_dimension_numbers<[1], [0], [0], [1], [0, 0, 1, 1], [], []>} : vector<16x32xbf16>, vector<32x64xbf16>, vector<16x64xf32> -> vector<16x64xf32>
    %c0_59 = arith.constant 0 : index
    %c0_60 = arith.constant 0 : index
    %183 = vector.load %arg13[%c0_59, %c0_60] : memref<2x64xf32, #tpu.memory_space<vmem>>, vector<1x64xf32>
    %184 = vector.broadcast %183 : vector<1x64xf32> to vector<16x64xf32>
    %185 = arith.addf %182, %184 : vector<16x64xf32>
    %cst_61 = arith.constant 0.000000e+00 : f32
    %186 = vector.broadcast %cst_61 : f32 to vector<16x64xf32>
    %187 = arith.maximumf %185, %186 : vector<16x64xf32>
    %188 = arith.truncf %187 : vector<16x64xf32> to vector<16x64xbf16>
    %c0_62 = arith.constant 0 : index
    %c0_63 = arith.constant 0 : index
    %c0_64 = arith.constant 0 : index
    %189 = vector.load %arg5[%c0_62, %c0_63, %c0_64] : memref<2x64x32xbf16, #tpu.memory_space<vmem>>, vector<1x64x32xbf16>
    %190 = vector.shape_cast %189 : vector<1x64x32xbf16> to vector<64x32xbf16>
    %cst_65 = arith.constant dense<0.000000e+00> : vector<16x32xf32>
    %191 = tpu.matmul %188, %190, %cst_65 {dimension_numbers = #tpu.dot_dimension_numbers<[1], [0], [0], [1], [0, 0, 1, 1], [], []>} : vector<16x64xbf16>, vector<64x32xbf16>, vector<16x32xf32> -> vector<16x32xf32>
    %c3 = arith.constant 3 : index
    %c0_66 = arith.constant 0 : index
    %192 = vector.load %arg12[%c3, %c0_66] : memref<20x32xf32, #tpu.memory_space<vmem>>, vector<1x32xf32>
    %193 = vector.broadcast %192 : vector<1x32xf32> to vector<16x32xf32>
    %194 = arith.addf %191, %193 : vector<16x32xf32>
    %195 = arith.addf %179, %194 : vector<16x32xf32>
    %c8 = arith.constant 8 : index
    %c0_67 = arith.constant 0 : index
    %196 = vector.load %arg12[%c8, %c0_67] : memref<20x32xf32, #tpu.memory_space<vmem>>, vector<1x32xf32>
    %c9 = arith.constant 9 : index
    %c0_68 = arith.constant 0 : index
    %197 = vector.load %arg12[%c9, %c0_68] : memref<20x32xf32, #tpu.memory_space<vmem>>, vector<1x32xf32>
    %cst_69 = arith.constant dense<0.000000e+00> : vector<16xf32>
    %198 = vector.multi_reduction <add>, %195, %cst_69 [1] : vector<16x32xf32> to vector<16xf32>
    %199 = vector.shape_cast %198 : vector<16xf32> to vector<16x1xf32>
    %cst_70 = arith.constant 3.200000e+01 : f32
    %200 = vector.broadcast %cst_70 : f32 to vector<16x1xf32>
    %201 = arith.divf %199, %200 : vector<16x1xf32>
    %202 = vector.broadcast %201 : vector<16x1xf32> to vector<16x32xf32>
    %203 = arith.subf %195, %202 : vector<16x32xf32>
    %204 = arith.mulf %203, %203 : vector<16x32xf32>
    %cst_71 = arith.constant dense<0.000000e+00> : vector<16xf32>
    %205 = vector.multi_reduction <add>, %204, %cst_71 [1] : vector<16x32xf32> to vector<16xf32>
    %206 = vector.shape_cast %205 : vector<16xf32> to vector<16x1xf32>
    %cst_72 = arith.constant 3.200000e+01 : f32
    %207 = vector.broadcast %cst_72 : f32 to vector<16x1xf32>
    %208 = arith.divf %206, %207 : vector<16x1xf32>
    %209 = vector.broadcast %201 : vector<16x1xf32> to vector<16x32xf32>
    %210 = arith.subf %195, %209 : vector<16x32xf32>
    %cst_73 = arith.constant 9.99999974E-6 : f32
    %211 = vector.broadcast %cst_73 : f32 to vector<16x1xf32>
    %212 = arith.addf %208, %211 : vector<16x1xf32>
    %213 = math.rsqrt %212 : vector<16x1xf32>
    %214 = vector.broadcast %213 : vector<16x1xf32> to vector<16x32xf32>
    %215 = arith.mulf %210, %214 : vector<16x32xf32>
    %216 = vector.broadcast %196 : vector<1x32xf32> to vector<16x32xf32>
    %217 = arith.mulf %215, %216 : vector<16x32xf32>
    %218 = vector.broadcast %197 : vector<1x32xf32> to vector<16x32xf32>
    %219 = arith.addf %217, %218 : vector<16x32xf32>
    %c1_74 = arith.constant 1 : index
    %c0_75 = arith.constant 0 : index
    %c0_76 = arith.constant 0 : index
    %220 = vector.load %arg4[%c1_74, %c0_75, %c0_76] : memref<2x32x256xbf16, #tpu.memory_space<vmem>>, vector<1x32x256xbf16>
    %221 = vector.shape_cast %220 : vector<1x32x256xbf16> to vector<32x256xbf16>
    %222 = arith.truncf %219 : vector<16x32xf32> to vector<16x32xbf16>
    %223 = vector.extract_strided_slice %221 {offsets = [0, 0], sizes = [32, 96], strides = [1, 1]} : vector<32x256xbf16> to vector<32x96xbf16>
    %cst_77 = arith.constant dense<0.000000e+00> : vector<16x96xf32>
    %224 = tpu.matmul %222, %223, %cst_77 {dimension_numbers = #tpu.dot_dimension_numbers<[1], [0], [0], [1], [0, 0, 1, 1], [], []>} : vector<16x32xbf16>, vector<32x96xbf16>, vector<16x96xf32> -> vector<16x96xf32>
    %225 = vector.extract_strided_slice %224 {offsets = [0, 0], sizes = [16, 32], strides = [1, 1]} : vector<16x96xf32> to vector<16x32xf32>
    %226 = vector.extract_strided_slice %13 {offsets = [0, 96], sizes = [16, 32], strides = [1, 1]} : vector<16x192xf32> to vector<16x32xf32>
    %227 = arith.addf %225, %226 : vector<16x32xf32>
    %228 = vector.extract_strided_slice %224 {offsets = [0, 32], sizes = [16, 32], strides = [1, 1]} : vector<16x96xf32> to vector<16x32xf32>
    %229 = vector.extract_strided_slice %13 {offsets = [0, 128], sizes = [16, 32], strides = [1, 1]} : vector<16x192xf32> to vector<16x32xf32>
    %230 = arith.addf %228, %229 : vector<16x32xf32>
    %231 = vector.extract_strided_slice %224 {offsets = [0, 64], sizes = [16, 32], strides = [1, 1]} : vector<16x96xf32> to vector<16x32xf32>
    %c10 = arith.constant 10 : index
    %c0_78 = arith.constant 0 : index
    %232 = vector.load %arg12[%c10, %c0_78] : memref<20x32xf32, #tpu.memory_space<vmem>>, vector<1x32xf32>
    %233 = vector.broadcast %232 : vector<1x32xf32> to vector<16x32xf32>
    %234 = arith.addf %231, %233 : vector<16x32xf32>
    %235 = vector.shape_cast %230 : vector<16x32xf32> to vector<2x8x32xf32>
    %236 = arith.truncf %235 : vector<2x8x32xf32> to vector<2x8x32xbf16>
    %237 = vector.shape_cast %234 : vector<16x32xf32> to vector<2x8x32xf32>
    %238 = arith.truncf %237 : vector<2x8x32xf32> to vector<2x8x32xbf16>
    %239 = vector.extract_strided_slice %221 {offsets = [0, 96], sizes = [32, 32], strides = [1, 1]} : vector<32x256xbf16> to vector<32x32xbf16>
    %c11 = arith.constant 11 : index
    %c0_79 = arith.constant 0 : index
    %240 = vector.load %arg12[%c11, %c0_79] : memref<20x32xf32, #tpu.memory_space<vmem>>, vector<1x32xf32>
    %cst_80 = arith.constant 0.353553385 : f32
    %241 = vector.broadcast %cst_80 : f32 to vector<16x32xf32>
    %242 = arith.mulf %227, %241 : vector<16x32xf32>
    %243 = vector.shape_cast %242 : vector<16x32xf32> to vector<2x8x32xf32>
    %244 = tpu.concatenate %243, %243, %243, %243 in 1 : vector<2x8x32xf32>, vector<2x8x32xf32>, vector<2x8x32xf32>, vector<2x8x32xf32> -> vector<2x32x32xf32>
    %245 = vector.shape_cast %8 : vector<32x32xf32> to vector<1x32x32xf32>
    %246 = vector.broadcast %245 : vector<1x32x32xf32> to vector<2x32x32xf32>
    %247 = arith.mulf %244, %246 : vector<2x32x32xf32>
    %248 = arith.truncf %247 : vector<2x32x32xf32> to vector<2x32x32xbf16>
    "tpu.trace_start"() <{level = 10 : i32, message = "bmd,bkd->bmk"}> : () -> ()
    %cst_81 = arith.constant dense<0.000000e+00> : vector<2x32x8xf32>
    %249 = tpu.matmul %248, %236, %cst_81 {dimension_numbers = #tpu.dot_dimension_numbers<[2], [2], [1], [1], [0, 0, 0, 1, 1, 1], [0], [0]>} : vector<2x32x32xbf16>, vector<2x8x32xbf16>, vector<2x32x8xf32> -> vector<2x32x8xf32>
    "tpu.trace_stop"() : () -> ()
    %cst_82 = arith.constant dense<0xFF800000> : vector<2x32xf32>
    %250 = vector.multi_reduction <maximumf>, %249, %cst_82 [2] : vector<2x32x8xf32> to vector<2x32xf32>
    %251 = vector.shape_cast %250 : vector<2x32xf32> to vector<2x32x1xf32>
    %252 = vector.broadcast %251 : vector<2x32x1xf32> to vector<2x32x8xf32>
    %253 = arith.subf %249, %252 : vector<2x32x8xf32>
    %254 = math.exp %253 : vector<2x32x8xf32>
    %cst_83 = arith.constant dense<0.000000e+00> : vector<2x32xf32>
    %255 = vector.multi_reduction <add>, %254, %cst_83 [2] : vector<2x32x8xf32> to vector<2x32xf32>
    %256 = vector.shape_cast %255 : vector<2x32xf32> to vector<2x32x1xf32>
    %257 = tpu.reciprocal %256 {approx = true} : vector<2x32x1xf32> -> vector<2x32x1xf32>
    %258 = vector.broadcast %257 : vector<2x32x1xf32> to vector<2x32x8xf32>
    %259 = arith.mulf %254, %258 : vector<2x32x8xf32>
    %260 = arith.truncf %259 : vector<2x32x8xf32> to vector<2x32x8xbf16>
    "tpu.trace_start"() <{level = 10 : i32, message = "bmk,bkd->bmd"}> : () -> ()
    %cst_84 = arith.constant dense<0.000000e+00> : vector<2x32x32xf32>
    %261 = tpu.matmul %260, %238, %cst_84 {dimension_numbers = #tpu.dot_dimension_numbers<[2], [1], [1], [2], [0, 0, 0, 1, 1, 2], [0], [0]>} : vector<2x32x8xbf16>, vector<2x8x32xbf16>, vector<2x32x32xf32> -> vector<2x32x32xf32>
    "tpu.trace_stop"() : () -> ()
    %262 = vector.shape_cast %8 : vector<32x32xf32> to vector<1x32x32xf32>
    %263 = vector.broadcast %262 : vector<1x32x32xf32> to vector<2x32x32xf32>
    %264 = arith.mulf %261, %263 : vector<2x32x32xf32>
    %265 = vector.extract_strided_slice %264 {offsets = [0, 0, 0], sizes = [2, 8, 32], strides = [1, 1, 1]} : vector<2x32x32xf32> to vector<2x8x32xf32>
    %266 = vector.extract_strided_slice %264 {offsets = [0, 8, 0], sizes = [2, 8, 32], strides = [1, 1, 1]} : vector<2x32x32xf32> to vector<2x8x32xf32>
    %267 = arith.addf %265, %266 : vector<2x8x32xf32>
    %268 = vector.extract_strided_slice %264 {offsets = [0, 16, 0], sizes = [2, 8, 32], strides = [1, 1, 1]} : vector<2x32x32xf32> to vector<2x8x32xf32>
    %269 = arith.addf %267, %268 : vector<2x8x32xf32>
    %270 = vector.extract_strided_slice %264 {offsets = [0, 24, 0], sizes = [2, 8, 32], strides = [1, 1, 1]} : vector<2x32x32xf32> to vector<2x8x32xf32>
    %271 = arith.addf %269, %270 : vector<2x8x32xf32>
    %272 = vector.shape_cast %271 : vector<2x8x32xf32> to vector<16x32xf32>
    %273 = arith.truncf %272 : vector<16x32xf32> to vector<16x32xbf16>
    %cst_85 = arith.constant dense<0.000000e+00> : vector<16x32xf32>
    %274 = tpu.matmul %273, %239, %cst_85 {dimension_numbers = #tpu.dot_dimension_numbers<[1], [0], [0], [1], [0, 0, 1, 1], [], []>} : vector<16x32xbf16>, vector<32x32xbf16>, vector<16x32xf32> -> vector<16x32xf32>
    %275 = vector.broadcast %240 : vector<1x32xf32> to vector<16x32xf32>
    %276 = arith.addf %274, %275 : vector<16x32xf32>
    %277 = arith.addf %219, %276 : vector<16x32xf32>
    %c14 = arith.constant 14 : index
    %c0_86 = arith.constant 0 : index
    %278 = vector.load %arg12[%c14, %c0_86] : memref<20x32xf32, #tpu.memory_space<vmem>>, vector<1x32xf32>
    %c15 = arith.constant 15 : index
    %c0_87 = arith.constant 0 : index
    %279 = vector.load %arg12[%c15, %c0_87] : memref<20x32xf32, #tpu.memory_space<vmem>>, vector<1x32xf32>
    %cst_88 = arith.constant dense<0.000000e+00> : vector<16xf32>
    %280 = vector.multi_reduction <add>, %277, %cst_88 [1] : vector<16x32xf32> to vector<16xf32>
    %281 = vector.shape_cast %280 : vector<16xf32> to vector<16x1xf32>
    %cst_89 = arith.constant 3.200000e+01 : f32
    %282 = vector.broadcast %cst_89 : f32 to vector<16x1xf32>
    %283 = arith.divf %281, %282 : vector<16x1xf32>
    %284 = vector.broadcast %283 : vector<16x1xf32> to vector<16x32xf32>
    %285 = arith.subf %277, %284 : vector<16x32xf32>
    %286 = arith.mulf %285, %285 : vector<16x32xf32>
    %cst_90 = arith.constant dense<0.000000e+00> : vector<16xf32>
    %287 = vector.multi_reduction <add>, %286, %cst_90 [1] : vector<16x32xf32> to vector<16xf32>
    %288 = vector.shape_cast %287 : vector<16xf32> to vector<16x1xf32>
    %cst_91 = arith.constant 3.200000e+01 : f32
    %289 = vector.broadcast %cst_91 : f32 to vector<16x1xf32>
    %290 = arith.divf %288, %289 : vector<16x1xf32>
    %291 = vector.broadcast %283 : vector<16x1xf32> to vector<16x32xf32>
    %292 = arith.subf %277, %291 : vector<16x32xf32>
    %cst_92 = arith.constant 9.99999974E-6 : f32
    %293 = vector.broadcast %cst_92 : f32 to vector<16x1xf32>
    %294 = arith.addf %290, %293 : vector<16x1xf32>
    %295 = math.rsqrt %294 : vector<16x1xf32>
    %296 = vector.broadcast %295 : vector<16x1xf32> to vector<16x32xf32>
    %297 = arith.mulf %292, %296 : vector<16x32xf32>
    %298 = vector.broadcast %278 : vector<1x32xf32> to vector<16x32xf32>
    %299 = arith.mulf %297, %298 : vector<16x32xf32>
    %300 = vector.broadcast %279 : vector<1x32xf32> to vector<16x32xf32>
    %301 = arith.addf %299, %300 : vector<16x32xf32>
    %302 = arith.truncf %301 : vector<16x32xf32> to vector<16x32xbf16>
    %303 = vector.extract_strided_slice %221 {offsets = [0, 128], sizes = [32, 32], strides = [1, 1]} : vector<32x256xbf16> to vector<32x32xbf16>
    %cst_93 = arith.constant dense<0.000000e+00> : vector<16x32xf32>
    %304 = tpu.matmul %302, %303, %cst_93 {dimension_numbers = #tpu.dot_dimension_numbers<[1], [0], [0], [1], [0, 0, 1, 1], [], []>} : vector<16x32xbf16>, vector<32x32xbf16>, vector<16x32xf32> -> vector<16x32xf32>
    %305 = vector.extract_strided_slice %13 {offsets = [0, 160], sizes = [16, 32], strides = [1, 1]} : vector<16x192xf32> to vector<16x32xf32>
    %306 = arith.addf %304, %305 : vector<16x32xf32>
    %307 = vector.extract_strided_slice %19 {offsets = [0, 32], sizes = [32, 32], strides = [1, 1]} : vector<32x64xbf16> to vector<32x32xbf16>
    %308 = vector.shape_cast %307 : vector<32x32xbf16> to vector<2x16x32xbf16>
    %309 = vector.extract_strided_slice %25 {offsets = [0, 32], sizes = [32, 32], strides = [1, 1]} : vector<32x64xbf16> to vector<32x32xbf16>
    %310 = vector.shape_cast %309 : vector<32x32xbf16> to vector<2x16x32xbf16>
    %311 = vector.extract_strided_slice %221 {offsets = [0, 160], sizes = [32, 32], strides = [1, 1]} : vector<32x256xbf16> to vector<32x32xbf16>
    %c12 = arith.constant 12 : index
    %c0_94 = arith.constant 0 : index
    %312 = vector.load %arg12[%c12, %c0_94] : memref<20x32xf32, #tpu.memory_space<vmem>>, vector<1x32xf32>
    %cst_95 = arith.constant 0.353553385 : f32
    %313 = vector.broadcast %cst_95 : f32 to vector<16x32xf32>
    %314 = arith.mulf %306, %313 : vector<16x32xf32>
    %315 = vector.shape_cast %314 : vector<16x32xf32> to vector<2x8x32xf32>
    %316 = tpu.concatenate %315, %315, %315, %315 in 1 : vector<2x8x32xf32>, vector<2x8x32xf32>, vector<2x8x32xf32>, vector<2x8x32xf32> -> vector<2x32x32xf32>
    %317 = vector.shape_cast %8 : vector<32x32xf32> to vector<1x32x32xf32>
    %318 = vector.broadcast %317 : vector<1x32x32xf32> to vector<2x32x32xf32>
    %319 = arith.mulf %316, %318 : vector<2x32x32xf32>
    %320 = arith.truncf %319 : vector<2x32x32xf32> to vector<2x32x32xbf16>
    "tpu.trace_start"() <{level = 10 : i32, message = "bmd,bkd->bmk"}> : () -> ()
    %cst_96 = arith.constant dense<0.000000e+00> : vector<2x32x16xf32>
    %321 = tpu.matmul %320, %308, %cst_96 {dimension_numbers = #tpu.dot_dimension_numbers<[2], [2], [1], [1], [0, 0, 0, 1, 1, 1], [0], [0]>} : vector<2x32x32xbf16>, vector<2x16x32xbf16>, vector<2x32x16xf32> -> vector<2x32x16xf32>
    "tpu.trace_stop"() : () -> ()
    %cst_97 = arith.constant dense<0xFF800000> : vector<2x32xf32>
    %322 = vector.multi_reduction <maximumf>, %321, %cst_97 [2] : vector<2x32x16xf32> to vector<2x32xf32>
    %323 = vector.shape_cast %322 : vector<2x32xf32> to vector<2x32x1xf32>
    %324 = vector.broadcast %323 : vector<2x32x1xf32> to vector<2x32x16xf32>
    %325 = arith.subf %321, %324 : vector<2x32x16xf32>
    %326 = math.exp %325 : vector<2x32x16xf32>
    %cst_98 = arith.constant dense<0.000000e+00> : vector<2x32xf32>
    %327 = vector.multi_reduction <add>, %326, %cst_98 [2] : vector<2x32x16xf32> to vector<2x32xf32>
    %328 = vector.shape_cast %327 : vector<2x32xf32> to vector<2x32x1xf32>
    %329 = tpu.reciprocal %328 {approx = true} : vector<2x32x1xf32> -> vector<2x32x1xf32>
    %330 = vector.broadcast %329 : vector<2x32x1xf32> to vector<2x32x16xf32>
    %331 = arith.mulf %326, %330 : vector<2x32x16xf32>
    %332 = arith.truncf %331 : vector<2x32x16xf32> to vector<2x32x16xbf16>
    "tpu.trace_start"() <{level = 10 : i32, message = "bmk,bkd->bmd"}> : () -> ()
    %cst_99 = arith.constant dense<0.000000e+00> : vector<2x32x32xf32>
    %333 = tpu.matmul %332, %310, %cst_99 {dimension_numbers = #tpu.dot_dimension_numbers<[2], [1], [1], [2], [0, 0, 0, 1, 1, 2], [0], [0]>} : vector<2x32x16xbf16>, vector<2x16x32xbf16>, vector<2x32x32xf32> -> vector<2x32x32xf32>
    "tpu.trace_stop"() : () -> ()
    %334 = vector.shape_cast %8 : vector<32x32xf32> to vector<1x32x32xf32>
    %335 = vector.broadcast %334 : vector<1x32x32xf32> to vector<2x32x32xf32>
    %336 = arith.mulf %333, %335 : vector<2x32x32xf32>
    %337 = vector.extract_strided_slice %336 {offsets = [0, 0, 0], sizes = [2, 8, 32], strides = [1, 1, 1]} : vector<2x32x32xf32> to vector<2x8x32xf32>
    %338 = vector.extract_strided_slice %336 {offsets = [0, 8, 0], sizes = [2, 8, 32], strides = [1, 1, 1]} : vector<2x32x32xf32> to vector<2x8x32xf32>
    %339 = arith.addf %337, %338 : vector<2x8x32xf32>
    %340 = vector.extract_strided_slice %336 {offsets = [0, 16, 0], sizes = [2, 8, 32], strides = [1, 1, 1]} : vector<2x32x32xf32> to vector<2x8x32xf32>
    %341 = arith.addf %339, %340 : vector<2x8x32xf32>
    %342 = vector.extract_strided_slice %336 {offsets = [0, 24, 0], sizes = [2, 8, 32], strides = [1, 1, 1]} : vector<2x32x32xf32> to vector<2x8x32xf32>
    %343 = arith.addf %341, %342 : vector<2x8x32xf32>
    %344 = vector.shape_cast %343 : vector<2x8x32xf32> to vector<16x32xf32>
    %345 = arith.truncf %344 : vector<16x32xf32> to vector<16x32xbf16>
    %cst_100 = arith.constant dense<0.000000e+00> : vector<16x32xf32>
    %346 = tpu.matmul %345, %311, %cst_100 {dimension_numbers = #tpu.dot_dimension_numbers<[1], [0], [0], [1], [0, 0, 1, 1], [], []>} : vector<16x32xbf16>, vector<32x32xbf16>, vector<16x32xf32> -> vector<16x32xf32>
    %347 = vector.broadcast %312 : vector<1x32xf32> to vector<16x32xf32>
    %348 = arith.addf %346, %347 : vector<16x32xf32>
    %349 = arith.addf %301, %348 : vector<16x32xf32>
    %c16 = arith.constant 16 : index
    %c0_101 = arith.constant 0 : index
    %350 = vector.load %arg12[%c16, %c0_101] : memref<20x32xf32, #tpu.memory_space<vmem>>, vector<1x32xf32>
    %c17 = arith.constant 17 : index
    %c0_102 = arith.constant 0 : index
    %351 = vector.load %arg12[%c17, %c0_102] : memref<20x32xf32, #tpu.memory_space<vmem>>, vector<1x32xf32>
    %cst_103 = arith.constant dense<0.000000e+00> : vector<16xf32>
    %352 = vector.multi_reduction <add>, %349, %cst_103 [1] : vector<16x32xf32> to vector<16xf32>
    %353 = vector.shape_cast %352 : vector<16xf32> to vector<16x1xf32>
    %cst_104 = arith.constant 3.200000e+01 : f32
    %354 = vector.broadcast %cst_104 : f32 to vector<16x1xf32>
    %355 = arith.divf %353, %354 : vector<16x1xf32>
    %356 = vector.broadcast %355 : vector<16x1xf32> to vector<16x32xf32>
    %357 = arith.subf %349, %356 : vector<16x32xf32>
    %358 = arith.mulf %357, %357 : vector<16x32xf32>
    %cst_105 = arith.constant dense<0.000000e+00> : vector<16xf32>
    %359 = vector.multi_reduction <add>, %358, %cst_105 [1] : vector<16x32xf32> to vector<16xf32>
    %360 = vector.shape_cast %359 : vector<16xf32> to vector<16x1xf32>
    %cst_106 = arith.constant 3.200000e+01 : f32
    %361 = vector.broadcast %cst_106 : f32 to vector<16x1xf32>
    %362 = arith.divf %360, %361 : vector<16x1xf32>
    %363 = vector.broadcast %355 : vector<16x1xf32> to vector<16x32xf32>
    %364 = arith.subf %349, %363 : vector<16x32xf32>
    %cst_107 = arith.constant 9.99999974E-6 : f32
    %365 = vector.broadcast %cst_107 : f32 to vector<16x1xf32>
    %366 = arith.addf %362, %365 : vector<16x1xf32>
    %367 = math.rsqrt %366 : vector<16x1xf32>
    %368 = vector.broadcast %367 : vector<16x1xf32> to vector<16x32xf32>
    %369 = arith.mulf %364, %368 : vector<16x32xf32>
    %370 = vector.broadcast %350 : vector<1x32xf32> to vector<16x32xf32>
    %371 = arith.mulf %369, %370 : vector<16x32xf32>
    %372 = vector.broadcast %351 : vector<1x32xf32> to vector<16x32xf32>
    %373 = arith.addf %371, %372 : vector<16x32xf32>
    %374 = arith.truncf %373 : vector<16x32xf32> to vector<16x32xbf16>
    %375 = vector.extract_strided_slice %221 {offsets = [0, 192], sizes = [32, 64], strides = [1, 1]} : vector<32x256xbf16> to vector<32x64xbf16>
    %cst_108 = arith.constant dense<0.000000e+00> : vector<16x64xf32>
    %376 = tpu.matmul %374, %375, %cst_108 {dimension_numbers = #tpu.dot_dimension_numbers<[1], [0], [0], [1], [0, 0, 1, 1], [], []>} : vector<16x32xbf16>, vector<32x64xbf16>, vector<16x64xf32> -> vector<16x64xf32>
    %c1_109 = arith.constant 1 : index
    %c0_110 = arith.constant 0 : index
    %377 = vector.load %arg13[%c1_109, %c0_110] : memref<2x64xf32, #tpu.memory_space<vmem>>, vector<1x64xf32>
    %378 = vector.broadcast %377 : vector<1x64xf32> to vector<16x64xf32>
    %379 = arith.addf %376, %378 : vector<16x64xf32>
    %cst_111 = arith.constant 0.000000e+00 : f32
    %380 = vector.broadcast %cst_111 : f32 to vector<16x64xf32>
    %381 = arith.maximumf %379, %380 : vector<16x64xf32>
    %382 = arith.truncf %381 : vector<16x64xf32> to vector<16x64xbf16>
    %c1_112 = arith.constant 1 : index
    %c0_113 = arith.constant 0 : index
    %c0_114 = arith.constant 0 : index
    %383 = vector.load %arg5[%c1_112, %c0_113, %c0_114] : memref<2x64x32xbf16, #tpu.memory_space<vmem>>, vector<1x64x32xbf16>
    %384 = vector.shape_cast %383 : vector<1x64x32xbf16> to vector<64x32xbf16>
    %cst_115 = arith.constant dense<0.000000e+00> : vector<16x32xf32>
    %385 = tpu.matmul %382, %384, %cst_115 {dimension_numbers = #tpu.dot_dimension_numbers<[1], [0], [0], [1], [0, 0, 1, 1], [], []>} : vector<16x64xbf16>, vector<64x32xbf16>, vector<16x32xf32> -> vector<16x32xf32>
    %c13 = arith.constant 13 : index
    %c0_116 = arith.constant 0 : index
    %386 = vector.load %arg12[%c13, %c0_116] : memref<20x32xf32, #tpu.memory_space<vmem>>, vector<1x32xf32>
    %387 = vector.broadcast %386 : vector<1x32xf32> to vector<16x32xf32>
    %388 = arith.addf %385, %387 : vector<16x32xf32>
    %389 = arith.addf %373, %388 : vector<16x32xf32>
    %c18 = arith.constant 18 : index
    %c0_117 = arith.constant 0 : index
    %390 = vector.load %arg12[%c18, %c0_117] : memref<20x32xf32, #tpu.memory_space<vmem>>, vector<1x32xf32>
    %c19 = arith.constant 19 : index
    %c0_118 = arith.constant 0 : index
    %391 = vector.load %arg12[%c19, %c0_118] : memref<20x32xf32, #tpu.memory_space<vmem>>, vector<1x32xf32>
    %cst_119 = arith.constant dense<0.000000e+00> : vector<16xf32>
    %392 = vector.multi_reduction <add>, %389, %cst_119 [1] : vector<16x32xf32> to vector<16xf32>
    %393 = vector.shape_cast %392 : vector<16xf32> to vector<16x1xf32>
    %cst_120 = arith.constant 3.200000e+01 : f32
    %394 = vector.broadcast %cst_120 : f32 to vector<16x1xf32>
    %395 = arith.divf %393, %394 : vector<16x1xf32>
    %396 = vector.broadcast %395 : vector<16x1xf32> to vector<16x32xf32>
    %397 = arith.subf %389, %396 : vector<16x32xf32>
    %398 = arith.mulf %397, %397 : vector<16x32xf32>
    %cst_121 = arith.constant dense<0.000000e+00> : vector<16xf32>
    %399 = vector.multi_reduction <add>, %398, %cst_121 [1] : vector<16x32xf32> to vector<16xf32>
    %400 = vector.shape_cast %399 : vector<16xf32> to vector<16x1xf32>
    %cst_122 = arith.constant 3.200000e+01 : f32
    %401 = vector.broadcast %cst_122 : f32 to vector<16x1xf32>
    %402 = arith.divf %400, %401 : vector<16x1xf32>
    %403 = vector.broadcast %395 : vector<16x1xf32> to vector<16x32xf32>
    %404 = arith.subf %389, %403 : vector<16x32xf32>
    %cst_123 = arith.constant 9.99999974E-6 : f32
    %405 = vector.broadcast %cst_123 : f32 to vector<16x1xf32>
    %406 = arith.addf %402, %405 : vector<16x1xf32>
    %407 = math.rsqrt %406 : vector<16x1xf32>
    %408 = vector.broadcast %407 : vector<16x1xf32> to vector<16x32xf32>
    %409 = arith.mulf %404, %408 : vector<16x32xf32>
    %410 = vector.broadcast %390 : vector<1x32xf32> to vector<16x32xf32>
    %411 = arith.mulf %409, %410 : vector<16x32xf32>
    %412 = vector.broadcast %391 : vector<1x32xf32> to vector<16x32xf32>
    %413 = arith.addf %411, %412 : vector<16x32xf32>
    %c0_124 = arith.constant 0 : index
    %c0_125 = arith.constant 0 : index
    %414 = vector.load %arg15[%c0_124, %c0_125] : memref<1x32xf32, #tpu.memory_space<vmem>>, vector<1x32xf32>
    %c0_126 = arith.constant 0 : index
    %c0_127 = arith.constant 0 : index
    %415 = vector.load %arg16[%c0_126, %c0_127] : memref<1x32xf32, #tpu.memory_space<vmem>>, vector<1x32xf32>
    %cst_128 = arith.constant dense<0.000000e+00> : vector<16xf32>
    %416 = vector.multi_reduction <add>, %413, %cst_128 [1] : vector<16x32xf32> to vector<16xf32>
    %417 = vector.shape_cast %416 : vector<16xf32> to vector<16x1xf32>
    %cst_129 = arith.constant 3.200000e+01 : f32
    %418 = vector.broadcast %cst_129 : f32 to vector<16x1xf32>
    %419 = arith.divf %417, %418 : vector<16x1xf32>
    %420 = vector.broadcast %419 : vector<16x1xf32> to vector<16x32xf32>
    %421 = arith.subf %413, %420 : vector<16x32xf32>
    %422 = arith.mulf %421, %421 : vector<16x32xf32>
    %cst_130 = arith.constant dense<0.000000e+00> : vector<16xf32>
    %423 = vector.multi_reduction <add>, %422, %cst_130 [1] : vector<16x32xf32> to vector<16xf32>
    %424 = vector.shape_cast %423 : vector<16xf32> to vector<16x1xf32>
    %cst_131 = arith.constant 3.200000e+01 : f32
    %425 = vector.broadcast %cst_131 : f32 to vector<16x1xf32>
    %426 = arith.divf %424, %425 : vector<16x1xf32>
    %427 = vector.broadcast %419 : vector<16x1xf32> to vector<16x32xf32>
    %428 = arith.subf %413, %427 : vector<16x32xf32>
    %cst_132 = arith.constant 9.99999974E-6 : f32
    %429 = vector.broadcast %cst_132 : f32 to vector<16x1xf32>
    %430 = arith.addf %426, %429 : vector<16x1xf32>
    %431 = math.rsqrt %430 : vector<16x1xf32>
    %432 = vector.broadcast %431 : vector<16x1xf32> to vector<16x32xf32>
    %433 = arith.mulf %428, %432 : vector<16x32xf32>
    %434 = vector.broadcast %414 : vector<1x32xf32> to vector<16x32xf32>
    %435 = arith.mulf %433, %434 : vector<16x32xf32>
    %436 = vector.broadcast %415 : vector<1x32xf32> to vector<16x32xf32>
    %437 = arith.addf %435, %436 : vector<16x32xf32>
    %c0_133 = arith.constant 0 : index
    %c0_134 = arith.constant 0 : index
    %438 = vector.load %arg17[%c0_133, %c0_134] : memref<16x32xf32, #tpu.memory_space<vmem>>, vector<16x32xf32>
    tpu.vector_store %arg17[%c0_133, %c0_134], %437 {strides = array<i32>} : memref<16x32xf32, #tpu.memory_space<vmem>>, vector<16x32xf32>,
    return
  }
}

</mosaic_0001>

<llo_original>
// kernel: transformer_decoder.1
$region0: #{transformer_decoder.1}
  #allocation0 [shape = 'u32[]', space=smem, size = 0x4, offset = 0x4, fixed_abs, tag = 'smem constant byte address 0x4 - core index']
  #allocation1 [shape = 'u32[144,128]{1,0:T(1,128)}', space=vmem, size = 0x12000, scoped, tag = 'internal scratch']
  %s0 = inlined_call_operand.hbm [shape: f32[16,32], index: 0, kind: input, shape index: {}]
  %s1 = inlined_call_operand.vmem [shape: f32[32,32], index: 1, kind: input, shape index: {}]
  %s2 = inlined_call_operand.hbm [shape: f32[16,32], index: 2, kind: input, shape index: {}]
  %s3 = inlined_call_operand.hbm [shape: f32[32,32], index: 3, kind: input, shape index: {}]
  %s4 = inlined_call_operand.vmem [shape: bf16[2,32,256], index: 4, kind: input, shape index: {}]
  %s5 = inlined_call_operand.vmem [shape: bf16[2,64,32], index: 5, kind: input, shape index: {}]
  %s6 = inlined_call_operand.hbm [shape: bf16[32,192], index: 6, kind: input, shape index: {}]
  %s7 = inlined_call_operand.hbm [shape: f32[1,192], index: 7, kind: input, shape index: {}]
  %s8 = inlined_call_operand.hbm [shape: bf16[32,64], index: 8, kind: input, shape index: {}]
  %s9 = inlined_call_operand.hbm [shape: f32[1,64], index: 9, kind: input, shape index: {}]
  %s10 = inlined_call_operand.hbm [shape: bf16[32,64], index: 10, kind: input, shape index: {}]
  %s11 = inlined_call_operand.hbm [shape: f32[1,64], index: 11, kind: input, shape index: {}]
  %s12 = inlined_call_operand.hbm [shape: f32[20,32], index: 12, kind: input, shape index: {}]
  %s13 = inlined_call_operand.hbm [shape: f32[2,64], index: 13, kind: input, shape index: {}]
  %s14 = inlined_call_operand.vmem [shape: f32[32,32], index: 14, kind: input, shape index: {}]
  %s15 = inlined_call_operand.vmem [shape: f32[1,32], index: 15, kind: input, shape index: {}]
  %s16 = inlined_call_operand.vmem [shape: f32[1,32], index: 16, kind: input, shape index: {}]
  %s17 = inlined_call_operand.hbm [shape: f32[16,32], index: 17, kind: output, shape index: {}]
  %s18 = sld [smem:[#allocation0]]
  $region122: #{transformer_decoder.1} parent=0
    _
  %s20 = ssub.s32 1, %s18
  %s21 = scalar_select 0, %s20, %s18
  $region1: #{transformer_decoder.1} parent=0
    #allocation2 [shape = 'u8[8192]{0}', space=vmem, size = 0x2000, scoped, tag = 'input window, operand 0, single buffered']
    #allocation3 [shape = 's32[1]{0}', space=sflag, size = 0x4, scoped, tag = 'scoped memory for transformer_decoder.1']
    #allocation4 [shape = 's32[1]{0}', space=sflag, size = 0x4, scoped, tag = 'scoped memory for transformer_decoder.1']
    #allocation5 [shape = 'u8[8192]{0}', space=vmem, size = 0x2000, scoped, tag = 'input window, operand 2, single buffered']
    #allocation6 [shape = 's32[1]{0}', space=sflag, size = 0x4, scoped, tag = 'scoped memory for transformer_decoder.1']
    #allocation7 [shape = 'u8[16384]{0}', space=vmem, size = 0x4000, scoped, tag = 'input window, operand 3, single buffered']
    #allocation8 [shape = 'u8[16384]{0}', space=vmem, size = 0x4000, scoped, tag = 'input window, operand 6, single buffered']
    #allocation9 [shape = 's32[1]{0}', space=sflag, size = 0x4, scoped, tag = 'scoped memory for transformer_decoder.1']
    #allocation10 [shape = 'u8[1024]{0}', space=vmem, size = 0x400, scoped, tag = 'input window, operand 7, single buffered']
    #allocation11 [shape = 'u8[8192]{0}', space=vmem, size = 0x2000, scoped, tag = 'input window, operand 8, single buffered']
    #allocation12 [shape = 's32[1]{0}', space=sflag, size = 0x4, scoped, tag = 'scoped memory for transformer_decoder.1']
    #allocation13 [shape = 'u8[512]{0}', space=vmem, size = 0x400, scoped, tag = 'input window, operand 9, single buffered']
    #allocation14 [shape = 'u8[8192]{0}', space=vmem, size = 0x2000, scoped, tag = 'input window, operand 10, single buffered']
    #allocation15 [shape = 's32[1]{0}', space=sflag, size = 0x4, scoped, tag = 'scoped memory for transformer_decoder.1']
    #allocation16 [shape = 'u8[512]{0}', space=vmem, size = 0x400, scoped, tag = 'input window, operand 11, single buffered']
    #allocation17 [shape = 'u8[12288]{0}', space=vmem, size = 0x3000, scoped, tag = 'input window, operand 12, single buffered']
    #allocation18 [shape = 's32[1]{0}', space=sflag, size = 0x4, scoped, tag = 'scoped memory for transformer_decoder.1']
    #allocation19 [shape = 'u8[1024]{0}', space=vmem, size = 0x400, scoped, tag = 'input window, operand 13, single buffered']
    #allocation20 [shape = 'u8[8192]{0}', space=vmem, size = 0x2000, scoped, tag = 'output window, operand 0, single buffered']
    %22 = vsyncpa [#allocation3], 0
    %23 = vsyncpa [#allocation6], 0
    %24 = vsyncpa [#allocation9], 0
    %25 = vsyncpa [#allocation12], 0
    %26 = vsyncpa [#allocation15], 0
    %27 = vsyncpa [#allocation18], 0
    %28 = vsyncpa [#allocation4], 0
    // Predicated region
    $region2: #{transformer_decoder.1} parent=1 // pred_check
      _
    $region3: #{transformer_decoder.1} parent=1 // pred_check_branch
      %30 = sbr.rel (0) target = $region5
    $region4: #{transformer_decoder.1} parent=1 // pred_region
      %s32 = ssub.s32 256, 256
      %33 = vsyncadd [#allocation3], %s32
      %s34 = sshll.u32 [#allocation2], 4
      %s35 = int_to_ptr.vmem [resolvable:$true] %s34
      %40 = dma.hbm_to_vmem [thread:$0]  %s0, 256, %s35, [#allocation3], 128, 128, 8
    $region5: #{transformer_decoder.1} parent=1 // pred_fallthru
      _
    // Predicated region
    $region6: #{transformer_decoder.1} parent=1 // pred_check
      _
    $region7: #{transformer_decoder.1} parent=1 // pred_check_branch
      %42 = sbr.rel (0) target = $region9
    $region8: #{transformer_decoder.1} parent=1 // pred_region
      _
    $region9: #{transformer_decoder.1} parent=1 // pred_fallthru
      _
    // Predicated region
    $region10: #{transformer_decoder.1} parent=1 // pred_check
      _
    $region11: #{transformer_decoder.1} parent=1 // pred_check_branch
      %44 = sbr.rel (0) target = $region13
    $region12: #{transformer_decoder.1} parent=1 // pred_region
      %s46 = ssub.s32 256, 256
      %47 = vsyncadd [#allocation6], %s46
      %s48 = sshll.u32 [#allocation5], 4
      %s49 = int_to_ptr.vmem [resolvable:$true] %s48
      %54 = dma.hbm_to_vmem [thread:$0]  %s2, 256, %s49, [#allocation6], 128, 128, 8
    $region13: #{transformer_decoder.1} parent=1 // pred_fallthru
      _
    // Predicated region
    $region14: #{transformer_decoder.1} parent=1 // pred_check
      _
    $region15: #{transformer_decoder.1} parent=1 // pred_check_branch
      %56 = sbr.rel (0) target = $region17
    $region16: #{transformer_decoder.1} parent=1 // pred_region
      %s58 = ssub.s32 512, 512
      %59 = vsyncadd [#allocation6], %s58
      %s60 = sshll.u32 [#allocation7], 4
      %s61 = int_to_ptr.vmem [resolvable:$true] %s60
      %66 = dma.hbm_to_vmem [thread:$0]  %s3, 512, %s61, [#allocation6], 128, 128, 8
    $region17: #{transformer_decoder.1} parent=1 // pred_fallthru
      _
    // Predicated region
    $region18: #{transformer_decoder.1} parent=1 // pred_check
      _
    $region19: #{transformer_decoder.1} parent=1 // pred_check_branch
      %68 = sbr.rel (0) target = $region21
    $region20: #{transformer_decoder.1} parent=1 // pred_region
      _
    $region21: #{transformer_decoder.1} parent=1 // pred_fallthru
      _
    // Predicated region
    $region22: #{transformer_decoder.1} parent=1 // pred_check
      _
    $region23: #{transformer_decoder.1} parent=1 // pred_check_branch
      %70 = sbr.rel (0) target = $region25
    $region24: #{transformer_decoder.1} parent=1 // pred_region
      _
    $region25: #{transformer_decoder.1} parent=1 // pred_fallthru
      _
    // Predicated region
    $region26: #{transformer_decoder.1} parent=1 // pred_check
      _
    $region27: #{transformer_decoder.1} parent=1 // pred_check_branch
      %72 = sbr.rel (0) target = $region29
    $region28: #{transformer_decoder.1} parent=1 // pred_region
      %s74 = ssub.s32 512, 512
      %75 = vsyncadd [#allocation9], %s74
      %s76 = sshll.u32 [#allocation8], 4
      %s77 = int_to_ptr.vmem [resolvable:$true] %s76
      %82 = dma.hbm_to_vmem [thread:$0]  %s6, 512, %s77, [#allocation9], 128, 128, 8
    $region29: #{transformer_decoder.1} parent=1 // pred_fallthru
      _
    // Predicated region
    $region30: #{transformer_decoder.1} parent=1 // pred_check
      _
    $region31: #{transformer_decoder.1} parent=1 // pred_check_branch
      %84 = sbr.rel (0) target = $region33
    $region32: #{transformer_decoder.1} parent=1 // pred_region
      %s86 = ssub.s32 32, 32
      %87 = vsyncadd [#allocation9], %s86
      %s89 = sshll.u32 [#allocation10], 4
      %s90 = int_to_ptr.vmem [resolvable:$true] %s89
      %92 = dma.hbm_to_vmem [thread:$0]  %s7, 32, %s90, [#allocation9]
    $region33: #{transformer_decoder.1} parent=1 // pred_fallthru
      _
    // Predicated region
    $region34: #{transformer_decoder.1} parent=1 // pred_check
      _
    $region35: #{transformer_decoder.1} parent=1 // pred_check_branch
      %94 = sbr.rel (0) target = $region37
    $region36: #{transformer_decoder.1} parent=1 // pred_region
      %s96 = ssub.s32 256, 256
      %97 = vsyncadd [#allocation12], %s96
      %s98 = sshll.u32 [#allocation11], 4
      %s99 = int_to_ptr.vmem [resolvable:$true] %s98
      %104 = dma.hbm_to_vmem [thread:$0]  %s8, 256, %s99, [#allocation12], 64, 64, 4
    $region37: #{transformer_decoder.1} parent=1 // pred_fallthru
      _
    // Predicated region
    $region38: #{transformer_decoder.1} parent=1 // pred_check
      _
    $region39: #{transformer_decoder.1} parent=1 // pred_check_branch
      %106 = sbr.rel (0) target = $region41
    $region40: #{transformer_decoder.1} parent=1 // pred_region
      %s108 = ssub.s32 16, 16
      %109 = vsyncadd [#allocation12], %s108
      %s111 = sshll.u32 [#allocation13], 4
      %s112 = int_to_ptr.vmem [resolvable:$true] %s111
      %114 = dma.hbm_to_vmem [thread:$0]  %s9, 16, %s112, [#allocation12]
    $region41: #{transformer_decoder.1} parent=1 // pred_fallthru
      _
    // Predicated region
    $region42: #{transformer_decoder.1} parent=1 // pred_check
      _
    $region43: #{transformer_decoder.1} parent=1 // pred_check_branch
      %116 = sbr.rel (0) target = $region45
    $region44: #{transformer_decoder.1} parent=1 // pred_region
      %s118 = ssub.s32 256, 256
      %119 = vsyncadd [#allocation15], %s118
      %s120 = sshll.u32 [#allocation14], 4
      %s121 = int_to_ptr.vmem [resolvable:$true] %s120
      %126 = dma.hbm_to_vmem [thread:$0]  %s10, 256, %s121, [#allocation15], 64, 64, 4
    $region45: #{transformer_decoder.1} parent=1 // pred_fallthru
      _
    // Predicated region
    $region46: #{transformer_decoder.1} parent=1 // pred_check
      _
    $region47: #{transformer_decoder.1} parent=1 // pred_check_branch
      %128 = sbr.rel (0) target = $region49
    $region48: #{transformer_decoder.1} parent=1 // pred_region
      %s130 = ssub.s32 16, 16
      %131 = vsyncadd [#allocation15], %s130
      %s133 = sshll.u32 [#allocation16], 4
      %s134 = int_to_ptr.vmem [resolvable:$true] %s133
      %136 = dma.hbm_to_vmem [thread:$0]  %s11, 16, %s134, [#allocation15]
    $region49: #{transformer_decoder.1} parent=1 // pred_fallthru
      _
    // Predicated region
    $region50: #{transformer_decoder.1} parent=1 // pred_check
      _
    $region51: #{transformer_decoder.1} parent=1 // pred_check_branch
      %138 = sbr.rel (0) target = $region53
    $region52: #{transformer_decoder.1} parent=1 // pred_region
      %s140 = ssub.s32 384, 384
      %141 = vsyncadd [#allocation18], %s140
      %s142 = sshll.u32 [#allocation17], 4
      %s143 = int_to_ptr.vmem [resolvable:$true] %s142
      %148 = dma.hbm_to_vmem [thread:$0]  %s12, 384, %s143, [#allocation18], 128, 128, 8
    $region53: #{transformer_decoder.1} parent=1 // pred_fallthru
      _
    // Predicated region
    $region54: #{transformer_decoder.1} parent=1 // pred_check
      _
    $region55: #{transformer_decoder.1} parent=1 // pred_check_branch
      %150 = sbr.rel (0) target = $region57
    $region56: #{transformer_decoder.1} parent=1 // pred_region
      %s152 = ssub.s32 32, 32
      %153 = vsyncadd [#allocation18], %s152
      %s155 = sshll.u32 [#allocation19], 4
      %s156 = int_to_ptr.vmem [resolvable:$true] %s155
      %158 = dma.hbm_to_vmem [thread:$0]  %s13, 32, %s156, [#allocation18]
    $region57: #{transformer_decoder.1} parent=1 // pred_fallthru
      _
    // Predicated region
    $region58: #{transformer_decoder.1} parent=1 // pred_check
      _
    $region59: #{transformer_decoder.1} parent=1 // pred_check_branch
      %160 = sbr.rel (0) target = $region61
    $region60: #{transformer_decoder.1} parent=1 // pred_region
      _
    $region61: #{transformer_decoder.1} parent=1 // pred_fallthru
      _
    // Predicated region
    $region62: #{transformer_decoder.1} parent=1 // pred_check
      _
    $region63: #{transformer_decoder.1} parent=1 // pred_check_branch
      %162 = sbr.rel (0) target = $region65
    $region64: #{transformer_decoder.1} parent=1 // pred_region
      _
    $region65: #{transformer_decoder.1} parent=1 // pred_fallthru
      _
    // Predicated region
    $region66: #{transformer_decoder.1} parent=1 // pred_check
      _
    $region67: #{transformer_decoder.1} parent=1 // pred_check_branch
      %164 = sbr.rel (0) target = $region69
    $region68: #{transformer_decoder.1} parent=1 // pred_region
      _
    $region69: #{transformer_decoder.1} parent=1 // pred_fallthru
      _
    // Predicated region
    $region70: #{transformer_decoder.1} parent=1 // pred_check
      _
    $region71: #{transformer_decoder.1} parent=1 // pred_check_branch
      %166 = sbr.rel (0) target = $region73
    $region72: #{transformer_decoder.1} parent=1 // pred_region
      %167 = dma.done [#allocation3], 256
    $region73: #{transformer_decoder.1} parent=1 // pred_fallthru
      _
    // Predicated region
    $region74: #{transformer_decoder.1} parent=1 // pred_check
      _
    $region75: #{transformer_decoder.1} parent=1 // pred_check_branch
      %169 = sbr.rel (0) target = $region77
    $region76: #{transformer_decoder.1} parent=1 // pred_region
      %170 = dma.done [#allocation6], 256
    $region77: #{transformer_decoder.1} parent=1 // pred_fallthru
      _
    // Predicated region
    $region78: #{transformer_decoder.1} parent=1 // pred_check
      _
    $region79: #{transformer_decoder.1} parent=1 // pred_check_branch
      %172 = sbr.rel (0) target = $region81
    $region80: #{transformer_decoder.1} parent=1 // pred_region
      %173 = dma.done [#allocation6], 512
    $region81: #{transformer_decoder.1} parent=1 // pred_fallthru
      _
    // Predicated region
    $region82: #{transformer_decoder.1} parent=1 // pred_check
      _
    $region83: #{transformer_decoder.1} parent=1 // pred_check_branch
      %175 = sbr.rel (0) target = $region85
    $region84: #{transformer_decoder.1} parent=1 // pred_region
      %176 = dma.done [#allocation9], 512
    $region85: #{transformer_decoder.1} parent=1 // pred_fallthru
      _
    // Predicated region
    $region86: #{transformer_decoder.1} parent=1 // pred_check
      _
    $region87: #{transformer_decoder.1} parent=1 // pred_check_branch
      %178 = sbr.rel (0) target = $region89
    $region88: #{transformer_decoder.1} parent=1 // pred_region
      %179 = dma.done [#allocation9], 32
    $region89: #{transformer_decoder.1} parent=1 // pred_fallthru
      _
    // Predicated region
    $region90: #{transformer_decoder.1} parent=1 // pred_check
      _
    $region91: #{transformer_decoder.1} parent=1 // pred_check_branch
      %181 = sbr.rel (0) target = $region93
    $region92: #{transformer_decoder.1} parent=1 // pred_region
      %182 = dma.done [#allocation12], 256
    $region93: #{transformer_decoder.1} parent=1 // pred_fallthru
      _
    // Predicated region
    $region94: #{transformer_decoder.1} parent=1 // pred_check
      _
    $region95: #{transformer_decoder.1} parent=1 // pred_check_branch
      %184 = sbr.rel (0) target = $region97
    $region96: #{transformer_decoder.1} parent=1 // pred_region
      %185 = dma.done [#allocation12], 16
    $region97: #{transformer_decoder.1} parent=1 // pred_fallthru
      _
    // Predicated region
    $region98: #{transformer_decoder.1} parent=1 // pred_check
      _
    $region99: #{transformer_decoder.1} parent=1 // pred_check_branch
      %187 = sbr.rel (0) target = $region101
    $region100: #{transformer_decoder.1} parent=1 // pred_region
      %188 = dma.done [#allocation15], 256
    $region101: #{transformer_decoder.1} parent=1 // pred_fallthru
      _
    // Predicated region
    $region102: #{transformer_decoder.1} parent=1 // pred_check
      _
    $region103: #{transformer_decoder.1} parent=1 // pred_check_branch
      %190 = sbr.rel (0) target = $region105
    $region104: #{transformer_decoder.1} parent=1 // pred_region
      %191 = dma.done [#allocation15], 16
    $region105: #{transformer_decoder.1} parent=1 // pred_fallthru
      _
    // Predicated region
    $region106: #{transformer_decoder.1} parent=1 // pred_check
      _
    $region107: #{transformer_decoder.1} parent=1 // pred_check_branch
      %193 = sbr.rel (0) target = $region109
    $region108: #{transformer_decoder.1} parent=1 // pred_region
      %194 = dma.done [#allocation18], 384
    $region109: #{transformer_decoder.1} parent=1 // pred_fallthru
      _
    // Predicated region
    $region110: #{transformer_decoder.1} parent=1 // pred_check
      _
    $region111: #{transformer_decoder.1} parent=1 // pred_check_branch
      %196 = sbr.rel (0) target = $region113
    $region112: #{transformer_decoder.1} parent=1 // pred_region
      %197 = dma.done [#allocation18], 32
    $region113: #{transformer_decoder.1} parent=1 // pred_fallthru
      _
    %v199 = vld [vmem:[#allocation2] sm:$0xff]
    %v200 = vld [vmem:[#allocation2 + $0x8] sm:$0xff]
    %v201 = vld [vmem:[%s1] sm:$0xff]
    %v202 = vld [vmem:[%s1 + $0x8] sm:$0xff]
    %v203 = vld [vmem:[%s1 + $0x10] sm:$0xff]
    %v204 = vld [vmem:[%s1 + $0x18] sm:$0xff]
    %v205 = vld [vmem:[#allocation5] sm:$0xff]
    %v206 = vld [vmem:[#allocation5 + $0x8] sm:$0xff]
    %v207 = vpack.c.bf16 %v206, %v205
    %v208 = vld [vmem:[#allocation7] sm:$0xff]
    %v209 = vld [vmem:[#allocation7 + $0x8] sm:$0xff]
    %v210 = vld [vmem:[#allocation7 + $0x10] sm:$0xff]
    %v211 = vld [vmem:[#allocation7 + $0x18] sm:$0xff]
    %v212 = vadd.f32 %v201, %v208
    %v213 = vadd.f32 %v202, %v209
    %v214 = vadd.f32 %v203, %v210
    %v215 = vadd.f32 %v204, %v211
    %v216 = vpack.c.bf16 %v213, %v212
    %v217 = vpack.c.bf16 %v215, %v214
    %v218 = vpack.c.bf16 %v202, %v201
    %v219 = vpack.c.bf16 %v204, %v203
    %v220 = vld [vmem:[%s14] sm:$0xff]
    %v221 = vld [vmem:[%s14 + $0x8] sm:$0xff]
    %v222 = vld [vmem:[%s14 + $0x10] sm:$0xff]
    %v223 = vld [vmem:[%s14 + $0x18] sm:$0xff]
    %v224 = vld [vmem:[#allocation8] sm:$0xff]
    %v225 = vld [vmem:[#allocation8 + $0x8] sm:$0xff]
    %v226 = vld [vmem:[#allocation8 + $0x10] sm:$0xff]
    %v227 = vld [vmem:[#allocation8 + $0x18] sm:$0xff]
    %v228 = vld [vmem:[#allocation10] sm:$0x3]
    %v230 = vlaneseq
    %v231 = vshrl.u32 %v230, 7
    %v232 = vsub.s32 0, %v231
    %v233 = vrot.slane %v228, %v232
    %v234 = vlaneseq
    %v235 = vshrl.u32 %v234, 7
    %v236 = vsub.s32 1, %v235
    %v237 = vrot.slane %v228, %v236
    %v244 = vunpack.c.l.b16 %v224
    %v245 = vunpack.c.h.b16 %v224
    %v246 = vunpack.c.l.b16 %v225
    %v247 = vunpack.c.h.b16 %v225
    %v248 = vunpack.c.l.b16 %v226
    %v249 = vunpack.c.h.b16 %v226
    %v250 = vunpack.c.l.b16 %v227
    %v251 = vunpack.c.h.b16 %v227
    %v252 = vpack.c.b16 %v246, %v244
    %v253 = vpack.c.b16 %v247, %v245
    %v254 = vpack.c.b16 %v250, %v248
    %v255 = vpack.c.b16 %v251, %v249
    %vm260 = vcmask 261120
    %v262 = vsel %vm260, %v207, 0
    %264 = vmatprep.subr.bf16.mxu0 %v253
    %265 = vmatpush1.bf16.msra.mxu0 %v252
    %266 = vmatprep.subr.bf16.mxu0 %v255
    %267 = vmatpush1.bf16.msra.mxu0 %v254
    %268 = vmatprep.subr.bf16.mxu0 0
    %269 = vmatpush1.bf16.msra.mxu0 0
    %270 = vmatprep.subr.bf16.mxu0 0
    %271 = vmatpush1.bf16.msra.mxu0 0
    %272 = vmatprep.subr.bf16.mxu0 0
    %273 = vmatpush1.bf16.msra.mxu0 0
    %274 = vmatprep.subr.bf16.mxu0 0
    %275 = vmatpush1.bf16.msra.mxu0 0
    %276 = vmatprep.subr.bf16.mxu0 0
    %277 = vmatpush1.bf16.msra.mxu0 0
    %278 = vmatprep.subr.bf16.mxu0 0
    %279 = vmatpush1.bf16.msra.mxu0 0
    %280 = vmatprep.subr.bf16.mxu0 0
    %281 = vmatpush1.bf16.msra.mxu0 0
    %282 = vmatprep.subr.bf16.mxu0 0
    %283 = vmatpush1.bf16.msra.mxu0 0
    %284 = vmatprep.subr.bf16.mxu0 0
    %285 = vmatpush1.bf16.msra.mxu0 0
    %286 = vmatprep.subr.bf16.mxu0 0
    %287 = vmatpush1.bf16.msra.mxu0 0
    %288 = vmatprep.subr.bf16.mxu0 0
    %289 = vmatpush1.bf16.msra.mxu0 0
    %290 = vmatprep.subr.bf16.mxu0 0
    %291 = vmatpush1.bf16.msra.mxu0 0
    %292 = vmatprep.subr.bf16.mxu0 0
    %293 = vmatpush1.bf16.msra.mxu0 0
    %294 = vmatprep.subr.bf16.mxu0 0
    %295 = vmatpush1.bf16.msra.mxu0 0
    %296 = vmatprep.mubr.bf16.mxu0 0
    %297 = vmatmul.mubr.bf16.gmra.mrb[0].mxu0 %v262
    %v298 = vpop.f32.mrb[0].mxu0
    %v299 = vadd.f32 %v233, %v298
    %v300 = vpop.f32.mrb[0].mxu0
    %v301 = vadd.f32 %v237, %v300
    %v302 = vpop.f32.mrb[0].mxu0
    %v303 = vadd.f32 %v233, %v302
    %v304 = vpop.f32.mrb[0].mxu0
    %v305 = vadd.f32 %v237, %v304
    %306 = vdwg.mxu0
    %v307 = vld [vmem:[#allocation11] sm:$0xf]
    %v308 = vld [vmem:[#allocation11 + $0x4] sm:$0xf]
    %v309 = vld [vmem:[#allocation11 + $0x8] sm:$0xf]
    %v310 = vld [vmem:[#allocation11 + $0xc] sm:$0xf]
    %v311 = vld [vmem:[#allocation13] sm:$0x1]
    %v313 = vlaneseq
    %v314 = vshrl.u32 %v313, 7
    %v315 = vsub.s32 0, %v314
    %v316 = vrot.slane %v311, %v315
    %v322 = vunpack.c.l.b16 %v307
    %v323 = vunpack.c.l.b16 %v308
    %v324 = vunpack.c.l.b16 %v309
    %v325 = vunpack.c.l.b16 %v310
    %v326 = vpack.c.b16 %v323, %v322
    %v327 = vpack.c.b16 %v325, %v324
    %v331 = vsel %vm260, %v216, 0
    %v334 = vsel %vm260, %v217, 0
    %336 = vmatprep.subr.bf16.mxu0 0
    %337 = vmatpush1.bf16.msra.mxu0 %v326
    %338 = vmatprep.subr.bf16.mxu0 0
    %339 = vmatpush1.bf16.msra.mxu0 %v327
    %340 = vmatprep.subr.bf16.mxu0 0
    %341 = vmatpush1.bf16.msra.mxu0 0
    %342 = vmatprep.subr.bf16.mxu0 0
    %343 = vmatpush1.bf16.msra.mxu0 0
    %344 = vmatprep.subr.bf16.mxu0 0
    %345 = vmatpush1.bf16.msra.mxu0 0
    %346 = vmatprep.subr.bf16.mxu0 0
    %347 = vmatpush1.bf16.msra.mxu0 0
    %348 = vmatprep.subr.bf16.mxu0 0
    %349 = vmatpush1.bf16.msra.mxu0 0
    %350 = vmatprep.subr.bf16.mxu0 0
    %351 = vmatpush1.bf16.msra.mxu0 0
    %352 = vmatprep.subr.bf16.mxu0 0
    %353 = vmatpush1.bf16.msra.mxu0 0
    %354 = vmatprep.subr.bf16.mxu0 0
    %355 = vmatpush1.bf16.msra.mxu0 0
    %356 = vmatprep.subr.bf16.mxu0 0
    %357 = vmatpush1.bf16.msra.mxu0 0
    %358 = vmatprep.subr.bf16.mxu0 0
    %359 = vmatpush1.bf16.msra.mxu0 0
    %360 = vmatprep.subr.bf16.mxu0 0
    %361 = vmatpush1.bf16.msra.mxu0 0
    %362 = vmatprep.subr.bf16.mxu0 0
    %363 = vmatpush1.bf16.msra.mxu0 0
    %364 = vmatprep.subr.bf16.mxu0 0
    %365 = vmatpush1.bf16.msra.mxu0 0
    %366 = vmatprep.subr.bf16.mxu0 0
    %367 = vmatpush1.bf16.msra.mxu0 0
    %368 = vmatprep.mubr.bf16.mxu0 0
    %369 = vmatmul.mubr.bf16.gmra.mrb[0].mxu0 %v331
    %v370 = vpop.f32.mrb[0].mxu0
    %v371 = vadd.f32 %v316, %v370
    %v372 = vpop.f32.mrb[0].mxu0
    %v373 = vpop.f32.mrb[0].mxu0
    %v374 = vadd.f32 %v316, %v373
    %v375 = vpop.f32.mrb[0].mxu0
    %376 = vmatprep.mubr.bf16.mxu0 0
    %377 = vmatmul.mubr.bf16.gmra.mrb[0].mxu0 %v334
    %v378 = vpop.f32.mrb[0].mxu0
    %v379 = vadd.f32 %v316, %v378
    %v380 = vpop.f32.mrb[0].mxu0
    %v381 = vpop.f32.mrb[0].mxu0
    %v382 = vadd.f32 %v316, %v381
    %v383 = vpop.f32.mrb[0].mxu0
    %384 = vdwg.mxu0
    %v385 = vpack.c.bf16 %v374, %v371
    %v386 = vpack.c.bf16 %v382, %v379
    %v387 = vld [vmem:[#allocation14] sm:$0xf]
    %v388 = vld [vmem:[#allocation14 + $0x4] sm:$0xf]
    %v389 = vld [vmem:[#allocation14 + $0x8] sm:$0xf]
    %v390 = vld [vmem:[#allocation14 + $0xc] sm:$0xf]
    %v391 = vld [vmem:[#allocation16] sm:$0x1]
    %v393 = vlaneseq
    %v394 = vshrl.u32 %v393, 7
    %v395 = vsub.s32 0, %v394
    %v396 = vrot.slane %v391, %v395
    %v402 = vunpack.c.l.b16 %v387
    %v403 = vunpack.c.l.b16 %v388
    %v404 = vunpack.c.l.b16 %v389
    %v405 = vunpack.c.l.b16 %v390
    %v406 = vpack.c.b16 %v403, %v402
    %v407 = vpack.c.b16 %v405, %v404
    %v411 = vsel %vm260, %v218, 0
    %v414 = vsel %vm260, %v219, 0
    %416 = vmatprep.subr.bf16.mxu0 0
    %417 = vmatpush1.bf16.msra.mxu0 %v406
    %418 = vmatprep.subr.bf16.mxu0 0
    %419 = vmatpush1.bf16.msra.mxu0 %v407
    %420 = vmatprep.subr.bf16.mxu0 0
    %421 = vmatpush1.bf16.msra.mxu0 0
    %422 = vmatprep.subr.bf16.mxu0 0
    %423 = vmatpush1.bf16.msra.mxu0 0
    %424 = vmatprep.subr.bf16.mxu0 0
    %425 = vmatpush1.bf16.msra.mxu0 0
    %426 = vmatprep.subr.bf16.mxu0 0
    %427 = vmatpush1.bf16.msra.mxu0 0
    %428 = vmatprep.subr.bf16.mxu0 0
    %429 = vmatpush1.bf16.msra.mxu0 0
    %430 = vmatprep.subr.bf16.mxu0 0
    %431 = vmatpush1.bf16.msra.mxu0 0
    %432 = vmatprep.subr.bf16.mxu0 0
    %433 = vmatpush1.bf16.msra.mxu0 0
    %434 = vmatprep.subr.bf16.mxu0 0
    %435 = vmatpush1.bf16.msra.mxu0 0
    %436 = vmatprep.subr.bf16.mxu0 0
    %437 = vmatpush1.bf16.msra.mxu0 0
    %438 = vmatprep.subr.bf16.mxu0 0
    %439 = vmatpush1.bf16.msra.mxu0 0
    %440 = vmatprep.subr.bf16.mxu0 0
    %441 = vmatpush1.bf16.msra.mxu0 0
    %442 = vmatprep.subr.bf16.mxu0 0
    %443 = vmatpush1.bf16.msra.mxu0 0
    %444 = vmatprep.subr.bf16.mxu0 0
    %445 = vmatpush1.bf16.msra.mxu0 0
    %446 = vmatprep.subr.bf16.mxu0 0
    %447 = vmatpush1.bf16.msra.mxu0 0
    %448 = vmatprep.mubr.bf16.mxu0 0
    %449 = vmatmul.mubr.bf16.gmra.mrb[0].mxu0 %v411
    %v450 = vpop.f32.mrb[0].mxu0
    %v451 = vadd.f32 %v396, %v450
    %v452 = vpop.f32.mrb[0].mxu0
    %v453 = vpop.f32.mrb[0].mxu0
    %v454 = vadd.f32 %v396, %v453
    %v455 = vpop.f32.mrb[0].mxu0
    %456 = vmatprep.mubr.bf16.mxu0 0
    %457 = vmatmul.mubr.bf16.gmra.mrb[0].mxu0 %v414
    %v458 = vpop.f32.mrb[0].mxu0
    %v459 = vadd.f32 %v396, %v458
    %v460 = vpop.f32.mrb[0].mxu0
    %v461 = vpop.f32.mrb[0].mxu0
    %v462 = vadd.f32 %v396, %v461
    %v463 = vpop.f32.mrb[0].mxu0
    %464 = vdwg.mxu0
    %v465 = vpack.c.bf16 %v454, %v451
    %v466 = vpack.c.bf16 %v462, %v459
    %v467 = vld [vmem:[%s4] sm:$0xff]
    %v468 = vld [vmem:[%s4 + $0x8] sm:$0xff]
    %v469 = vld [vmem:[%s4 + $0x10] sm:$0xff]
    %v470 = vld [vmem:[%s4 + $0x18] sm:$0xff]
    %v471 = vpack.c.bf16 %v200, %v199
    %v476 = vunpack.c.l.b16 %v467
    %v477 = vunpack.c.l.b16 %v468
    %v478 = vunpack.c.l.b16 %v469
    %v479 = vunpack.c.l.b16 %v470
    %v480 = vpack.c.b16 %v477, %v476
    %v481 = vpack.c.b16 %v479, %v478
    %v485 = vsel %vm260, %v471, 0
    %487 = vmatprep.subr.bf16.mxu0 0
    %488 = vmatpush1.bf16.msra.mxu0 %v480
    %489 = vmatprep.subr.bf16.mxu0 0
    %490 = vmatpush1.bf16.msra.mxu0 %v481
    %491 = vmatprep.subr.bf16.mxu0 0
    %492 = vmatpush1.bf16.msra.mxu0 0
    %493 = vmatprep.subr.bf16.mxu0 0
    %494 = vmatpush1.bf16.msra.mxu0 0
    %495 = vmatprep.subr.bf16.mxu0 0
    %496 = vmatpush1.bf16.msra.mxu0 0
    %497 = vmatprep.subr.bf16.mxu0 0
    %498 = vmatpush1.bf16.msra.mxu0 0
    %499 = vmatprep.subr.bf16.mxu0 0
    %500 = vmatpush1.bf16.msra.mxu0 0
    %501 = vmatprep.subr.bf16.mxu0 0
    %502 = vmatpush1.bf16.msra.mxu0 0
    %503 = vmatprep.subr.bf16.mxu0 0
    %504 = vmatpush1.bf16.msra.mxu0 0
    %505 = vmatprep.subr.bf16.mxu0 0
    %506 = vmatpush1.bf16.msra.mxu0 0
    %507 = vmatprep.subr.bf16.mxu0 0
    %508 = vmatpush1.bf16.msra.mxu0 0
    %509 = vmatprep.subr.bf16.mxu0 0
    %510 = vmatpush1.bf16.msra.mxu0 0
    %511 = vmatprep.subr.bf16.mxu0 0
    %512 = vmatpush1.bf16.msra.mxu0 0
    %513 = vmatprep.subr.bf16.mxu0 0
    %514 = vmatpush1.bf16.msra.mxu0 0
    %515 = vmatprep.subr.bf16.mxu0 0
    %516 = vmatpush1.bf16.msra.mxu0 0
    %517 = vmatprep.subr.bf16.mxu0 0
    %518 = vmatpush1.bf16.msra.mxu0 0
    %519 = vmatprep.mubr.bf16.mxu0 0
    %520 = vmatmul.mubr.bf16.gmra.mrb[0].mxu0 %v485
    %v521 = vpop.f32.mrb[0].mxu0
    %v522 = vadd.f32 0.0, %v521
    %v523 = vpop.f32.mrb[0].mxu0
    %v524 = vpop.f32.mrb[0].mxu0
    %v525 = vadd.f32 0.0, %v524
    %v526 = vpop.f32.mrb[0].mxu0
    %527 = vdwg.mxu0
    %v528 = vadd.f32 %v522, %v299
    %v529 = vadd.f32 %v525, %v303
    %v530 = vld [vmem:[#allocation17] sm:$0x1]
    %v531 = vlaneseq
    %v532 = vshrl.u32 %v531, 7
    %v533 = vsub.s32 0, %v532
    %v534 = vrot.slane %v530, %v533
    %536 = vrot.lane.b32.xlu0 %v534, 64
    %v537 = vpop.permute.xlu0 %536
    %v539 = vadd.f32 %v522, %v537
    %v540 = vadd.f32 %v525, %v537
    %v541 = vpack.c.bf16 %v528, %v528
    %v542 = vpack.c.bf16 %v529, %v529
    %v543 = vpack.c.bf16 %v539, %v539
    %v544 = vpack.c.bf16 %v540, %v540
    %v545 = vld [vmem:[#allocation17 + $0x1] sm:$0x1]
    %v546 = vmul.f32 %v528, 0.35355338
    %v547 = vmul.f32 %v529, 0.35355338
    %v548 = vmul.f32 %v546, %v220
    %v549 = vmul.f32 %v546, %v221
    %v550 = vmul.f32 %v546, %v222
    %v551 = vmul.f32 %v546, %v223
    %v552 = vmul.f32 %v547, %v220
    %v553 = vmul.f32 %v547, %v221
    %v554 = vmul.f32 %v547, %v222
    %v555 = vmul.f32 %v547, %v223
    %v556 = vpack.c.bf16 %v549, %v548
    %v557 = vpack.c.bf16 %v551, %v550
    %v558 = vpack.c.bf16 %v553, %v552
    %v559 = vpack.c.bf16 %v555, %v554
    %561 = vrot.lane.b32.xlu0 %v541, 96
    %v562 = vpop.permute.xlu0 %561
    %v564 = vsel %vm260, %v556, 0
    %v567 = vsel %vm260, %v557, 0
    %v570 = vsel %vm260, %v562, 0
    %572 = vmatprep.subr.bf16.mxu0 0
    %573 = vmatpush1.bf16.xpose.msra.mxu0 %v570
    %574 = vmatprep.subr.bf16.mxu0 0
    %575 = vmatpush1.bf16.xpose.msra.mxu0 0
    %576 = vmatprep.subr.bf16.mxu0 0
    %577 = vmatpush1.bf16.xpose.msra.mxu0 0
    %578 = vmatprep.subr.bf16.mxu0 0
    %579 = vmatpush1.bf16.xpose.msra.mxu0 0
    %580 = vmatprep.subr.bf16.mxu0 0
    %581 = vmatpush1.bf16.xpose.msra.mxu0 0
    %582 = vmatprep.subr.bf16.mxu0 0
    %583 = vmatpush1.bf16.xpose.msra.mxu0 0
    %584 = vmatprep.subr.bf16.mxu0 0
    %585 = vmatpush1.bf16.xpose.msra.mxu0 0
    %586 = vmatprep.subr.bf16.mxu0 0
    %587 = vmatpush1.bf16.xpose.msra.mxu0 0
    %588 = vmatprep.subr.bf16.mxu0 0
    %589 = vmatpush1.bf16.xpose.msra.mxu0 0
    %590 = vmatprep.subr.bf16.mxu0 0
    %591 = vmatpush1.bf16.xpose.msra.mxu0 0
    %592 = vmatprep.subr.bf16.mxu0 0
    %593 = vmatpush1.bf16.xpose.msra.mxu0 0
    %594 = vmatprep.subr.bf16.mxu0 0
    %595 = vmatpush1.bf16.xpose.msra.mxu0 0
    %596 = vmatprep.subr.bf16.mxu0 0
    %597 = vmatpush1.bf16.xpose.msra.mxu0 0
    %598 = vmatprep.subr.bf16.mxu0 0
    %599 = vmatpush1.bf16.xpose.msra.mxu0 0
    %600 = vmatprep.subr.bf16.mxu0 0
    %601 = vmatpush1.bf16.xpose.msra.mxu0 0
    %602 = vmatprep.subr.bf16.mxu0 0
    %603 = vmatpush1.bf16.xpose.msra.mxu0 0
    %604 = vmatprep.mubr.bf16.mxu0 0
    %605 = vmatmul.mubr.bf16.gmra.mrb[0].mxu0 %v564
    %v606 = vpop.f32.mrb[0].mxu0
    %v607 = vadd.f32 0.0, %v606
    %v608 = vpop.f32.mrb[0].mxu0
    %v609 = vpop.f32.mrb[0].mxu0
    %v610 = vadd.f32 0.0, %v609
    %v611 = vpop.f32.mrb[0].mxu0
    %612 = vmatprep.mubr.bf16.mxu0 0
    %613 = vmatmul.mubr.bf16.gmra.mrb[0].mxu0 %v567
    %v614 = vpop.f32.mrb[0].mxu0
    %v615 = vadd.f32 0.0, %v614
    %v616 = vpop.f32.mrb[0].mxu0
    %v617 = vpop.f32.mrb[0].mxu0
    %v618 = vadd.f32 0.0, %v617
    %v619 = vpop.f32.mrb[0].mxu0
    %620 = vdwg.mxu0
    %622 = vrot.lane.b32.xlu0 %v542, 96
    %v623 = vpop.permute.xlu0 %622
    %v625 = vsel %vm260, %v558, 0
    %v628 = vsel %vm260, %v559, 0
    %v631 = vsel %vm260, %v623, 0
    %633 = vmatprep.subr.bf16.mxu0 0
    %634 = vmatpush1.bf16.xpose.msra.mxu0 %v631
    %635 = vmatprep.subr.bf16.mxu0 0
    %636 = vmatpush1.bf16.xpose.msra.mxu0 0
    %637 = vmatprep.subr.bf16.mxu0 0
    %638 = vmatpush1.bf16.xpose.msra.mxu0 0
    %639 = vmatprep.subr.bf16.mxu0 0
    %640 = vmatpush1.bf16.xpose.msra.mxu0 0
    %641 = vmatprep.subr.bf16.mxu0 0
    %642 = vmatpush1.bf16.xpose.msra.mxu0 0
    %643 = vmatprep.subr.bf16.mxu0 0
    %644 = vmatpush1.bf16.xpose.msra.mxu0 0
    %645 = vmatprep.subr.bf16.mxu0 0
    %646 = vmatpush1.bf16.xpose.msra.mxu0 0
    %647 = vmatprep.subr.bf16.mxu0 0
    %648 = vmatpush1.bf16.xpose.msra.mxu0 0
    %649 = vmatprep.subr.bf16.mxu0 0
    %650 = vmatpush1.bf16.xpose.msra.mxu0 0
    %651 = vmatprep.subr.bf16.mxu0 0
    %652 = vmatpush1.bf16.xpose.msra.mxu0 0
    %653 = vmatprep.subr.bf16.mxu0 0
    %654 = vmatpush1.bf16.xpose.msra.mxu0 0
    %655 = vmatprep.subr.bf16.mxu0 0
    %656 = vmatpush1.bf16.xpose.msra.mxu0 0
    %657 = vmatprep.subr.bf16.mxu0 0
    %658 = vmatpush1.bf16.xpose.msra.mxu0 0
    %659 = vmatprep.subr.bf16.mxu0 0
    %660 = vmatpush1.bf16.xpose.msra.mxu0 0
    %661 = vmatprep.subr.bf16.mxu0 0
    %662 = vmatpush1.bf16.xpose.msra.mxu0 0
    %663 = vmatprep.subr.bf16.mxu0 0
    %664 = vmatpush1.bf16.xpose.msra.mxu0 0
    %665 = vmatprep.mubr.bf16.mxu0 0
    %666 = vmatmul.mubr.bf16.gmra.mrb[0].mxu0 %v625
    %v667 = vpop.f32.mrb[0].mxu0
    %v668 = vadd.f32 0.0, %v667
    %v669 = vpop.f32.mrb[0].mxu0
    %v670 = vpop.f32.mrb[0].mxu0
    %v671 = vadd.f32 0.0, %v670
    %v672 = vpop.f32.mrb[0].mxu0
    %673 = vmatprep.mubr.bf16.mxu0 0
    %674 = vmatmul.mubr.bf16.gmra.mrb[0].mxu0 %v628
    %v675 = vpop.f32.mrb[0].mxu0
    %v676 = vadd.f32 0.0, %v675
    %v677 = vpop.f32.mrb[0].mxu0
    %v678 = vpop.f32.mrb[0].mxu0
    %v679 = vadd.f32 0.0, %v678
    %v680 = vpop.f32.mrb[0].mxu0
    %681 = vdwg.mxu0
    %vm682 = vcmask 64512
    %v683 = vsel %vm682, %v607, -inf
    %684 = vmax.xlane.f32.xlu0 %v683
    %v685 = vpop.xlane.xlu0 %684
    %v686 = vsel %vm682, %v610, -inf
    %687 = vmax.xlane.f32.xlu0 %v686
    %v688 = vpop.xlane.xlu0 %687
    %v689 = vsel %vm682, %v615, -inf
    %690 = vmax.xlane.f32.xlu0 %v689
    %v691 = vpop.xlane.xlu0 %690
    %v692 = vsel %vm682, %v618, -inf
    %693 = vmax.xlane.f32.xlu0 %v692
    %v694 = vpop.xlane.xlu0 %693
    %v695 = vsel %vm682, %v668, -inf
    %696 = vmax.xlane.f32.xlu0 %v695
    %v697 = vpop.xlane.xlu0 %696
    %v698 = vsel %vm682, %v671, -inf
    %699 = vmax.xlane.f32.xlu0 %v698
    %v700 = vpop.xlane.xlu0 %699
    %v701 = vsel %vm682, %v676, -inf
    %702 = vmax.xlane.f32.xlu0 %v701
    %v703 = vpop.xlane.xlu0 %702
    %v704 = vsel %vm682, %v679, -inf
    %705 = vmax.xlane.f32.xlu0 %v704
    %v706 = vpop.xlane.xlu0 %705
    %v707 = vsub.f32 %v607, %v685
    %v708 = vsub.f32 %v610, %v688
    %v709 = vsub.f32 %v615, %v691
    %v710 = vsub.f32 %v618, %v694
    %v711 = vsub.f32 %v668, %v697
    %v712 = vsub.f32 %v671, %v700
    %v713 = vsub.f32 %v676, %v703
    %v714 = vsub.f32 %v679, %v706
    %v715 = vmul.f32 %v707, 1.442695
    %v716 = vpow.pop %v715
    %v717 = vmul.f32 %v708, 1.442695
    %v718 = vpow.pop %v717
    %v719 = vmul.f32 %v709, 1.442695
    %v720 = vpow.pop %v719
    %v721 = vmul.f32 %v710, 1.442695
    %v722 = vpow.pop %v721
    %v723 = vmul.f32 %v711, 1.442695
    %v724 = vpow.pop %v723
    %v725 = vmul.f32 %v712, 1.442695
    %v726 = vpow.pop %v725
    %v727 = vmul.f32 %v713, 1.442695
    %v728 = vpow.pop %v727
    %v729 = vmul.f32 %v714, 1.442695
    %v730 = vpow.pop %v729
    %v731 = vsel %vm682, %v716, 0.0
    %732 = vadd.xlane.f32.xlu0 %v731
    %v733 = vpop.xlane.xlu0 %732
    %v734 = vsel %vm682, %v718, 0.0
    %735 = vadd.xlane.f32.xlu0 %v734
    %v736 = vpop.xlane.xlu0 %735
    %v737 = vsel %vm682, %v720, 0.0
    %738 = vadd.xlane.f32.xlu0 %v737
    %v739 = vpop.xlane.xlu0 %738
    %v740 = vsel %vm682, %v722, 0.0
    %741 = vadd.xlane.f32.xlu0 %v740
    %v742 = vpop.xlane.xlu0 %741
    %v743 = vsel %vm682, %v724, 0.0
    %744 = vadd.xlane.f32.xlu0 %v743
    %v745 = vpop.xlane.xlu0 %744
    %v746 = vsel %vm682, %v726, 0.0
    %747 = vadd.xlane.f32.xlu0 %v746
    %v748 = vpop.xlane.xlu0 %747
    %v749 = vsel %vm682, %v728, 0.0
    %750 = vadd.xlane.f32.xlu0 %v749
    %v751 = vpop.xlane.xlu0 %750
    %v752 = vsel %vm682, %v730, 0.0
    %753 = vadd.xlane.f32.xlu0 %v752
    %v754 = vpop.xlane.xlu0 %753
    %v755 = vrcp.pop %v733
    %v756 = vrcp.pop %v736
    %v757 = vrcp.pop %v739
    %v758 = vrcp.pop %v742
    %v759 = vrcp.pop %v745
    %v760 = vrcp.pop %v748
    %v761 = vrcp.pop %v751
    %v762 = vrcp.pop %v754
    %v763 = vmul.f32 %v716, %v755
    %v764 = vmul.f32 %v718, %v756
    %v765 = vmul.f32 %v720, %v757
    %v766 = vmul.f32 %v722, %v758
    %v767 = vmul.f32 %v724, %v759
    %v768 = vmul.f32 %v726, %v760
    %v769 = vmul.f32 %v728, %v761
    %v770 = vmul.f32 %v730, %v762
    %v771 = vpack.c.bf16 %v764, %v763
    %v772 = vpack.c.bf16 %v766, %v765
    %v773 = vpack.c.bf16 %v768, %v767
    %v774 = vpack.c.bf16 %v770, %v769
    %776 = vrot.lane.b32.xlu0 %v543, 64
    %v777 = vpop.permute.xlu0 %776
    %v779 = vsel %vm682, %v771, 0
    %v782 = vsel %vm682, %v772, 0
    %vm784 = vcmask 1043456
    %v786 = vsel %vm784, %v777, 0
    %788 = vmatprep.subr.bf16.mxu0 0
    %789 = vmatpush1.bf16.msra.mxu0 %v786
    %790 = vmatprep.subr.bf16.mxu0 0
    %791 = vmatpush1.bf16.msra.mxu0 0
    %792 = vmatprep.subr.bf16.mxu0 0
    %793 = vmatpush1.bf16.msra.mxu0 0
    %794 = vmatprep.subr.bf16.mxu0 0
    %795 = vmatpush1.bf16.msra.mxu0 0
    %796 = vmatprep.subr.bf16.mxu0 0
    %797 = vmatpush1.bf16.msra.mxu0 0
    %798 = vmatprep.subr.bf16.mxu0 0
    %799 = vmatpush1.bf16.msra.mxu0 0
    %800 = vmatprep.subr.bf16.mxu0 0
    %801 = vmatpush1.bf16.msra.mxu0 0
    %802 = vmatprep.subr.bf16.mxu0 0
    %803 = vmatpush1.bf16.msra.mxu0 0
    %804 = vmatprep.subr.bf16.mxu0 0
    %805 = vmatpush1.bf16.msra.mxu0 0
    %806 = vmatprep.subr.bf16.mxu0 0
    %807 = vmatpush1.bf16.msra.mxu0 0
    %808 = vmatprep.subr.bf16.mxu0 0
    %809 = vmatpush1.bf16.msra.mxu0 0
    %810 = vmatprep.subr.bf16.mxu0 0
    %811 = vmatpush1.bf16.msra.mxu0 0
    %812 = vmatprep.subr.bf16.mxu0 0
    %813 = vmatpush1.bf16.msra.mxu0 0
    %814 = vmatprep.subr.bf16.mxu0 0
    %815 = vmatpush1.bf16.msra.mxu0 0
    %816 = vmatprep.subr.bf16.mxu0 0
    %817 = vmatpush1.bf16.msra.mxu0 0
    %818 = vmatprep.subr.bf16.mxu0 0
    %819 = vmatpush1.bf16.msra.mxu0 0
    %820 = vmatprep.mubr.bf16.mxu0 0
    %821 = vmatmul.mubr.bf16.gmra.mrb[0].mxu0 %v779
    %v822 = vpop.f32.mrb[0].mxu0
    %v823 = vadd.f32 0.0, %v822
    %v824 = vpop.f32.mrb[0].mxu0
    %v825 = vpop.f32.mrb[0].mxu0
    %v826 = vadd.f32 0.0, %v825
    %v827 = vpop.f32.mrb[0].mxu0
    %828 = vmatprep.mubr.bf16.mxu0 0
    %829 = vmatmul.mubr.bf16.gmra.mrb[0].mxu0 %v782
    %v830 = vpop.f32.mrb[0].mxu0
    %v831 = vadd.f32 0.0, %v830
    %v832 = vpop.f32.mrb[0].mxu0
    %v833 = vpop.f32.mrb[0].mxu0
    %v834 = vadd.f32 0.0, %v833
    %v835 = vpop.f32.mrb[0].mxu0
    %836 = vdwg.mxu0
    %838 = vrot.lane.b32.xlu0 %v544, 64
    %v839 = vpop.permute.xlu0 %838
    %v841 = vsel %vm682, %v773, 0
    %v844 = vsel %vm682, %v774, 0
    %v847 = vsel %vm784, %v839, 0
    %849 = vmatprep.subr.bf16.mxu0 0
    %850 = vmatpush1.bf16.msra.mxu0 %v847
    %851 = vmatprep.subr.bf16.mxu0 0
    %852 = vmatpush1.bf16.msra.mxu0 0
    %853 = vmatprep.subr.bf16.mxu0 0
    %854 = vmatpush1.bf16.msra.mxu0 0
    %855 = vmatprep.subr.bf16.mxu0 0
    %856 = vmatpush1.bf16.msra.mxu0 0
    %857 = vmatprep.subr.bf16.mxu0 0
    %858 = vmatpush1.bf16.msra.mxu0 0
    %859 = vmatprep.subr.bf16.mxu0 0
    %860 = vmatpush1.bf16.msra.mxu0 0
    %861 = vmatprep.subr.bf16.mxu0 0
    %862 = vmatpush1.bf16.msra.mxu0 0
    %863 = vmatprep.subr.bf16.mxu0 0
    %864 = vmatpush1.bf16.msra.mxu0 0
    %865 = vmatprep.subr.bf16.mxu0 0
    %866 = vmatpush1.bf16.msra.mxu0 0
    %867 = vmatprep.subr.bf16.mxu0 0
    %868 = vmatpush1.bf16.msra.mxu0 0
    %869 = vmatprep.subr.bf16.mxu0 0
    %870 = vmatpush1.bf16.msra.mxu0 0
    %871 = vmatprep.subr.bf16.mxu0 0
    %872 = vmatpush1.bf16.msra.mxu0 0
    %873 = vmatprep.subr.bf16.mxu0 0
    %874 = vmatpush1.bf16.msra.mxu0 0
    %875 = vmatprep.subr.bf16.mxu0 0
    %876 = vmatpush1.bf16.msra.mxu0 0
    %877 = vmatprep.subr.bf16.mxu0 0
    %878 = vmatpush1.bf16.msra.mxu0 0
    %879 = vmatprep.subr.bf16.mxu0 0
    %880 = vmatpush1.bf16.msra.mxu0 0
    %881 = vmatprep.mubr.bf16.mxu0 0
    %882 = vmatmul.mubr.bf16.gmra.mrb[0].mxu0 %v841
    %v883 = vpop.f32.mrb[0].mxu0
    %v884 = vadd.f32 0.0, %v883
    %v885 = vpop.f32.mrb[0].mxu0
    %v886 = vpop.f32.mrb[0].mxu0
    %v887 = vadd.f32 0.0, %v886
    %v888 = vpop.f32.mrb[0].mxu0
    %889 = vmatprep.mubr.bf16.mxu0 0
    %890 = vmatmul.mubr.bf16.gmra.mrb[0].mxu0 %v844
    %v891 = vpop.f32.mrb[0].mxu0
    %v892 = vadd.f32 0.0, %v891
    %v893 = vpop.f32.mrb[0].mxu0
    %v894 = vpop.f32.mrb[0].mxu0
    %v895 = vadd.f32 0.0, %v894
    %v896 = vpop.f32.mrb[0].mxu0
    %897 = vdwg.mxu0
    %v898 = vmul.f32 %v823, %v220
    %v899 = vmul.f32 %v826, %v221
    %v900 = vmul.f32 %v831, %v222
    %v901 = vmul.f32 %v834, %v223
    %v902 = vmul.f32 %v884, %v220
    %v903 = vmul.f32 %v887, %v221
    %v904 = vmul.f32 %v892, %v222
    %v905 = vmul.f32 %v895, %v223
    %v906 = vadd.f32 %v898, %v899
    %v907 = vadd.f32 %v902, %v903
    %v908 = vadd.f32 %v906, %v900
    %v909 = vadd.f32 %v907, %v904
    %v910 = vadd.f32 %v908, %v901
    %v911 = vadd.f32 %v909, %v905
    %v912 = vpack.c.bf16 %v911, %v910
    %v913 = vlaneseq
    %v914 = vshrl.u32 %v913, 7
    %v915 = vsub.s32 0, %v914
    %v916 = vrot.slane %v545, %v915
    %917 = vrot.lane.b32.xlu0 %v480, 32
    %v918 = vpop.permute.xlu0 %917
    %919 = vrot.lane.b32.xlu0 %v481, 32
    %v920 = vpop.permute.xlu0 %919
    %v924 = vsel %vm260, %v912, 0
    %926 = vmatprep.subr.bf16.mxu0 0
    %927 = vmatpush1.bf16.msra.mxu0 %v918
    %928 = vmatprep.subr.bf16.mxu0 0
    %929 = vmatpush1.bf16.msra.mxu0 %v920
    %930 = vmatprep.subr.bf16.mxu0 0
    %931 = vmatpush1.bf16.msra.mxu0 0
    %932 = vmatprep.subr.bf16.mxu0 0
    %933 = vmatpush1.bf16.msra.mxu0 0
    %934 = vmatprep.subr.bf16.mxu0 0
    %935 = vmatpush1.bf16.msra.mxu0 0
    %936 = vmatprep.subr.bf16.mxu0 0
    %937 = vmatpush1.bf16.msra.mxu0 0
    %938 = vmatprep.subr.bf16.mxu0 0
    %939 = vmatpush1.bf16.msra.mxu0 0
    %940 = vmatprep.subr.bf16.mxu0 0
    %941 = vmatpush1.bf16.msra.mxu0 0
    %942 = vmatprep.subr.bf16.mxu0 0
    %943 = vmatpush1.bf16.msra.mxu0 0
    %944 = vmatprep.subr.bf16.mxu0 0
    %945 = vmatpush1.bf16.msra.mxu0 0
    %946 = vmatprep.subr.bf16.mxu0 0
    %947 = vmatpush1.bf16.msra.mxu0 0
    %948 = vmatprep.subr.bf16.mxu0 0
    %949 = vmatpush1.bf16.msra.mxu0 0
    %950 = vmatprep.subr.bf16.mxu0 0
    %951 = vmatpush1.bf16.msra.mxu0 0
    %952 = vmatprep.subr.bf16.mxu0 0
    %953 = vmatpush1.bf16.msra.mxu0 0
    %954 = vmatprep.subr.bf16.mxu0 0
    %955 = vmatpush1.bf16.msra.mxu0 0
    %956 = vmatprep.subr.bf16.mxu0 0
    %957 = vmatpush1.bf16.msra.mxu0 0
    %958 = vmatprep.mubr.bf16.mxu0 0
    %959 = vmatmul.mubr.bf16.gmra.mrb[0].mxu0 %v924
    %v960 = vpop.f32.mrb[0].mxu0
    %v961 = vadd.f32 %v916, %v960
    %v962 = vpop.f32.mrb[0].mxu0
    %v963 = vpop.f32.mrb[0].mxu0
    %v964 = vadd.f32 %v916, %v963
    %v965 = vpop.f32.mrb[0].mxu0
    %966 = vdwg.mxu0
    %v967 = vadd.f32 %v199, %v961
    %v968 = vadd.f32 %v200, %v964
    %v969 = vld [vmem:[#allocation17 + $0x4] sm:$0x1]
    %v970 = vld [vmem:[#allocation17 + $0x5] sm:$0x1]
    %v971 = vsel %vm260, %v967, 0.0
    %972 = vadd.xlane.f32.xlu0 %v971
    %v973 = vpop.xlane.xlu0 %972
    %v974 = vsel %vm260, %v968, 0.0
    %975 = vadd.xlane.f32.xlu0 %v974
    %v976 = vpop.xlane.xlu0 %975
    %v977 = vrcp.pop 32.0
    %v978 = vmul.f32 %v973, %v977
    %v979 = vmul.f32 %v976, %v977
    %v980 = vsub.f32 %v967, %v978
    %v981 = vsub.f32 %v968, %v979
    %v982 = vmul.f32 %v980, %v980
    %v983 = vmul.f32 %v981, %v981
    %v984 = vsel %vm260, %v982, 0.0
    %985 = vadd.xlane.f32.xlu0 %v984
    %v986 = vpop.xlane.xlu0 %985
    %v987 = vsel %vm260, %v983, 0.0
    %988 = vadd.xlane.f32.xlu0 %v987
    %v989 = vpop.xlane.xlu0 %988
    %v990 = vmul.f32 %v986, %v977
    %v991 = vmul.f32 %v989, %v977
    %v992 = vadd.f32 %v990, 1e-05
    %v993 = vadd.f32 %v991, 1e-05
    %v994 = vrsqrt.pop %v992
    %v995 = vrsqrt.pop %v993
    %v996 = vmul.f32 %v980, %v994
    %v997 = vmul.f32 %v981, %v995
    %v998 = vlaneseq
    %v999 = vshrl.u32 %v998, 7
    %v1000 = vsub.s32 0, %v999
    %v1001 = vrot.slane %v969, %v1000
    %v1002 = vmul.f32 %v996, %v1001
    %v1003 = vmul.f32 %v997, %v1001
    %v1004 = vlaneseq
    %v1005 = vshrl.u32 %v1004, 7
    %v1006 = vsub.s32 0, %v1005
    %v1007 = vrot.slane %v970, %v1006
    %v1008 = vadd.f32 %v1002, %v1007
    %v1009 = vadd.f32 %v1003, %v1007
    %v1010 = vpack.c.bf16 %v1009, %v1008
    %v1011 = vunpack.c.h.b16 %v467
    %v1012 = vunpack.c.h.b16 %v468
    %v1013 = vunpack.c.h.b16 %v469
    %v1014 = vunpack.c.h.b16 %v470
    %v1015 = vpack.c.b16 %v1012, %v1011
    %v1016 = vpack.c.b16 %v1014, %v1013
    %1021 = vrot.lane.b32.xlu0 %v299, 64
    %v1022 = vpop.permute.xlu0 %1021
    %1023 = vrot.lane.b32.xlu0 %v303, 64
    %v1024 = vpop.permute.xlu0 %1023
    %v1028 = vsel %vm260, %v1010, 0
    %1030 = vmatprep.subr.bf16.mxu0 0
    %1031 = vmatpush1.bf16.msra.mxu0 %v1015
    %1032 = vmatprep.subr.bf16.mxu0 0
    %1033 = vmatpush1.bf16.msra.mxu0 %v1016
    %1034 = vmatprep.subr.bf16.mxu0 0
    %1035 = vmatpush1.bf16.msra.mxu0 0
    %1036 = vmatprep.subr.bf16.mxu0 0
    %1037 = vmatpush1.bf16.msra.mxu0 0
    %1038 = vmatprep.subr.bf16.mxu0 0
    %1039 = vmatpush1.bf16.msra.mxu0 0
    %1040 = vmatprep.subr.bf16.mxu0 0
    %1041 = vmatpush1.bf16.msra.mxu0 0
    %1042 = vmatprep.subr.bf16.mxu0 0
    %1043 = vmatpush1.bf16.msra.mxu0 0
    %1044 = vmatprep.subr.bf16.mxu0 0
    %1045 = vmatpush1.bf16.msra.mxu0 0
    %1046 = vmatprep.subr.bf16.mxu0 0
    %1047 = vmatpush1.bf16.msra.mxu0 0
    %1048 = vmatprep.subr.bf16.mxu0 0
    %1049 = vmatpush1.bf16.msra.mxu0 0
    %1050 = vmatprep.subr.bf16.mxu0 0
    %1051 = vmatpush1.bf16.msra.mxu0 0
    %1052 = vmatprep.subr.bf16.mxu0 0
    %1053 = vmatpush1.bf16.msra.mxu0 0
    %1054 = vmatprep.subr.bf16.mxu0 0
    %1055 = vmatpush1.bf16.msra.mxu0 0
    %1056 = vmatprep.subr.bf16.mxu0 0
    %1057 = vmatpush1.bf16.msra.mxu0 0
    %1058 = vmatprep.subr.bf16.mxu0 0
    %1059 = vmatpush1.bf16.msra.mxu0 0
    %1060 = vmatprep.subr.bf16.mxu0 0
    %1061 = vmatpush1.bf16.msra.mxu0 0
    %1062 = vmatprep.mubr.bf16.mxu0 0
    %1063 = vmatmul.mubr.bf16.gmra.mrb[0].mxu0 %v1028
    %v1064 = vpop.f32.mrb[0].mxu0
    %v1065 = vadd.f32 %v1022, %v1064
    %v1066 = vpop.f32.mrb[0].mxu0
    %v1067 = vpop.f32.mrb[0].mxu0
    %v1068 = vadd.f32 %v1024, %v1067
    %v1069 = vpop.f32.mrb[0].mxu0
    %1070 = vdwg.mxu0
    %v1071 = vld [vmem:[#allocation17 + $0x2] sm:$0x1]
    %v1072 = vmul.f32 %v1065, 0.35355338
    %v1073 = vmul.f32 %v1068, 0.35355338
    %v1074 = vmul.f32 %v1072, %v220
    %v1075 = vmul.f32 %v1072, %v221
    %v1076 = vmul.f32 %v1072, %v222
    %v1077 = vmul.f32 %v1072, %v223
    %v1078 = vmul.f32 %v1073, %v220
    %v1079 = vmul.f32 %v1073, %v221
    %v1080 = vmul.f32 %v1073, %v222
    %v1081 = vmul.f32 %v1073, %v223
    %v1082 = vpack.c.bf16 %v1075, %v1074
    %v1083 = vpack.c.bf16 %v1077, %v1076
    %v1084 = vpack.c.bf16 %v1079, %v1078
    %v1085 = vpack.c.bf16 %v1081, %v1080
    %v1087 = vsel %vm260, %v1082, 0
    %v1090 = vsel %vm260, %v1083, 0
    %v1093 = vsel %vm260, %v385, 0
    %1095 = vmatprep.subr.bf16.mxu0 0
    %1096 = vmatpush1.bf16.xpose.msra.mxu0 %v1093
    %1097 = vmatprep.subr.bf16.mxu0 0
    %1098 = vmatpush1.bf16.xpose.msra.mxu0 0
    %1099 = vmatprep.subr.bf16.mxu0 0
    %1100 = vmatpush1.bf16.xpose.msra.mxu0 0
    %1101 = vmatprep.subr.bf16.mxu0 0
    %1102 = vmatpush1.bf16.xpose.msra.mxu0 0
    %1103 = vmatprep.subr.bf16.mxu0 0
    %1104 = vmatpush1.bf16.xpose.msra.mxu0 0
    %1105 = vmatprep.subr.bf16.mxu0 0
    %1106 = vmatpush1.bf16.xpose.msra.mxu0 0
    %1107 = vmatprep.subr.bf16.mxu0 0
    %1108 = vmatpush1.bf16.xpose.msra.mxu0 0
    %1109 = vmatprep.subr.bf16.mxu0 0
    %1110 = vmatpush1.bf16.xpose.msra.mxu0 0
    %1111 = vmatprep.subr.bf16.mxu0 0
    %1112 = vmatpush1.bf16.xpose.msra.mxu0 0
    %1113 = vmatprep.subr.bf16.mxu0 0
    %1114 = vmatpush1.bf16.xpose.msra.mxu0 0
    %1115 = vmatprep.subr.bf16.mxu0 0
    %1116 = vmatpush1.bf16.xpose.msra.mxu0 0
    %1117 = vmatprep.subr.bf16.mxu0 0
    %1118 = vmatpush1.bf16.xpose.msra.mxu0 0
    %1119 = vmatprep.subr.bf16.mxu0 0
    %1120 = vmatpush1.bf16.xpose.msra.mxu0 0
    %1121 = vmatprep.subr.bf16.mxu0 0
    %1122 = vmatpush1.bf16.xpose.msra.mxu0 0
    %1123 = vmatprep.subr.bf16.mxu0 0
    %1124 = vmatpush1.bf16.xpose.msra.mxu0 0
    %1125 = vmatprep.subr.bf16.mxu0 0
    %1126 = vmatpush1.bf16.xpose.msra.mxu0 0
    %1127 = vmatprep.mubr.bf16.mxu0 0
    %1128 = vmatmul.mubr.bf16.gmra.mrb[0].mxu0 %v1087
    %v1129 = vpop.f32.mrb[0].mxu0
    %v1130 = vadd.f32 0.0, %v1129
    %v1131 = vpop.f32.mrb[0].mxu0
    %v1132 = vpop.f32.mrb[0].mxu0
    %v1133 = vadd.f32 0.0, %v1132
    %v1134 = vpop.f32.mrb[0].mxu0
    %1135 = vmatprep.mubr.bf16.mxu0 0
    %1136 = vmatmul.mubr.bf16.gmra.mrb[0].mxu0 %v1090
    %v1137 = vpop.f32.mrb[0].mxu0
    %v1138 = vadd.f32 0.0, %v1137
    %v1139 = vpop.f32.mrb[0].mxu0
    %v1140 = vpop.f32.mrb[0].mxu0
    %v1141 = vadd.f32 0.0, %v1140
    %v1142 = vpop.f32.mrb[0].mxu0
    %1143 = vdwg.mxu0
    %v1145 = vsel %vm260, %v1084, 0
    %v1148 = vsel %vm260, %v1085, 0
    %v1151 = vsel %vm260, %v386, 0
    %1153 = vmatprep.subr.bf16.mxu0 0
    %1154 = vmatpush1.bf16.xpose.msra.mxu0 %v1151
    %1155 = vmatprep.subr.bf16.mxu0 0
    %1156 = vmatpush1.bf16.xpose.msra.mxu0 0
    %1157 = vmatprep.subr.bf16.mxu0 0
    %1158 = vmatpush1.bf16.xpose.msra.mxu0 0
    %1159 = vmatprep.subr.bf16.mxu0 0
    %1160 = vmatpush1.bf16.xpose.msra.mxu0 0
    %1161 = vmatprep.subr.bf16.mxu0 0
    %1162 = vmatpush1.bf16.xpose.msra.mxu0 0
    %1163 = vmatprep.subr.bf16.mxu0 0
    %1164 = vmatpush1.bf16.xpose.msra.mxu0 0
    %1165 = vmatprep.subr.bf16.mxu0 0
    %1166 = vmatpush1.bf16.xpose.msra.mxu0 0
    %1167 = vmatprep.subr.bf16.mxu0 0
    %1168 = vmatpush1.bf16.xpose.msra.mxu0 0
    %1169 = vmatprep.subr.bf16.mxu0 0
    %1170 = vmatpush1.bf16.xpose.msra.mxu0 0
    %1171 = vmatprep.subr.bf16.mxu0 0
    %1172 = vmatpush1.bf16.xpose.msra.mxu0 0
    %1173 = vmatprep.subr.bf16.mxu0 0
    %1174 = vmatpush1.bf16.xpose.msra.mxu0 0
    %1175 = vmatprep.subr.bf16.mxu0 0
    %1176 = vmatpush1.bf16.xpose.msra.mxu0 0
    %1177 = vmatprep.subr.bf16.mxu0 0
    %1178 = vmatpush1.bf16.xpose.msra.mxu0 0
    %1179 = vmatprep.subr.bf16.mxu0 0
    %1180 = vmatpush1.bf16.xpose.msra.mxu0 0
    %1181 = vmatprep.subr.bf16.mxu0 0
    %1182 = vmatpush1.bf16.xpose.msra.mxu0 0
    %1183 = vmatprep.subr.bf16.mxu0 0
    %1184 = vmatpush1.bf16.xpose.msra.mxu0 0
    %1185 = vmatprep.mubr.bf16.mxu0 0
    %1186 = vmatmul.mubr.bf16.gmra.mrb[0].mxu0 %v1145
    %v1187 = vpop.f32.mrb[0].mxu0
    %v1188 = vadd.f32 0.0, %v1187
    %v1189 = vpop.f32.mrb[0].mxu0
    %v1190 = vpop.f32.mrb[0].mxu0
    %v1191 = vadd.f32 0.0, %v1190
    %v1192 = vpop.f32.mrb[0].mxu0
    %1193 = vmatprep.mubr.bf16.mxu0 0
    %1194 = vmatmul.mubr.bf16.gmra.mrb[0].mxu0 %v1148
    %v1195 = vpop.f32.mrb[0].mxu0
    %v1196 = vadd.f32 0.0, %v1195
    %v1197 = vpop.f32.mrb[0].mxu0
    %v1198 = vpop.f32.mrb[0].mxu0
    %v1199 = vadd.f32 0.0, %v1198
    %v1200 = vpop.f32.mrb[0].mxu0
    %1201 = vdwg.mxu0
    %vm1202 = vcmask 130048
    %v1203 = vsel %vm1202, %v1130, -inf
    %1204 = vmax.xlane.f32.xlu0 %v1203
    %v1205 = vpop.xlane.xlu0 %1204
    %v1206 = vsel %vm1202, %v1133, -inf
    %1207 = vmax.xlane.f32.xlu0 %v1206
    %v1208 = vpop.xlane.xlu0 %1207
    %v1209 = vsel %vm1202, %v1138, -inf
    %1210 = vmax.xlane.f32.xlu0 %v1209
    %v1211 = vpop.xlane.xlu0 %1210
    %v1212 = vsel %vm1202, %v1141, -inf
    %1213 = vmax.xlane.f32.xlu0 %v1212
    %v1214 = vpop.xlane.xlu0 %1213
    %v1215 = vsel %vm1202, %v1188, -inf
    %1216 = vmax.xlane.f32.xlu0 %v1215
    %v1217 = vpop.xlane.xlu0 %1216
    %v1218 = vsel %vm1202, %v1191, -inf
    %1219 = vmax.xlane.f32.xlu0 %v1218
    %v1220 = vpop.xlane.xlu0 %1219
    %v1221 = vsel %vm1202, %v1196, -inf
    %1222 = vmax.xlane.f32.xlu0 %v1221
    %v1223 = vpop.xlane.xlu0 %1222
    %v1224 = vsel %vm1202, %v1199, -inf
    %1225 = vmax.xlane.f32.xlu0 %v1224
    %v1226 = vpop.xlane.xlu0 %1225
    %v1227 = vsub.f32 %v1130, %v1205
    %v1228 = vsub.f32 %v1133, %v1208
    %v1229 = vsub.f32 %v1138, %v1211
    %v1230 = vsub.f32 %v1141, %v1214
    %v1231 = vsub.f32 %v1188, %v1217
    %v1232 = vsub.f32 %v1191, %v1220
    %v1233 = vsub.f32 %v1196, %v1223
    %v1234 = vsub.f32 %v1199, %v1226
    %v1235 = vmul.f32 %v1227, 1.442695
    %v1236 = vpow.pop %v1235
    %v1237 = vmul.f32 %v1228, 1.442695
    %v1238 = vpow.pop %v1237
    %v1239 = vmul.f32 %v1229, 1.442695
    %v1240 = vpow.pop %v1239
    %v1241 = vmul.f32 %v1230, 1.442695
    %v1242 = vpow.pop %v1241
    %v1243 = vmul.f32 %v1231, 1.442695
    %v1244 = vpow.pop %v1243
    %v1245 = vmul.f32 %v1232, 1.442695
    %v1246 = vpow.pop %v1245
    %v1247 = vmul.f32 %v1233, 1.442695
    %v1248 = vpow.pop %v1247
    %v1249 = vmul.f32 %v1234, 1.442695
    %v1250 = vpow.pop %v1249
    %v1251 = vsel %vm1202, %v1236, 0.0
    %1252 = vadd.xlane.f32.xlu0 %v1251
    %v1253 = vpop.xlane.xlu0 %1252
    %v1254 = vsel %vm1202, %v1238, 0.0
    %1255 = vadd.xlane.f32.xlu0 %v1254
    %v1256 = vpop.xlane.xlu0 %1255
    %v1257 = vsel %vm1202, %v1240, 0.0
    %1258 = vadd.xlane.f32.xlu0 %v1257
    %v1259 = vpop.xlane.xlu0 %1258
    %v1260 = vsel %vm1202, %v1242, 0.0
    %1261 = vadd.xlane.f32.xlu0 %v1260
    %v1262 = vpop.xlane.xlu0 %1261
    %v1263 = vsel %vm1202, %v1244, 0.0
    %1264 = vadd.xlane.f32.xlu0 %v1263
    %v1265 = vpop.xlane.xlu0 %1264
    %v1266 = vsel %vm1202, %v1246, 0.0
    %1267 = vadd.xlane.f32.xlu0 %v1266
    %v1268 = vpop.xlane.xlu0 %1267
    %v1269 = vsel %vm1202, %v1248, 0.0
    %1270 = vadd.xlane.f32.xlu0 %v1269
    %v1271 = vpop.xlane.xlu0 %1270
    %v1272 = vsel %vm1202, %v1250, 0.0
    %1273 = vadd.xlane.f32.xlu0 %v1272
    %v1274 = vpop.xlane.xlu0 %1273
    %v1275 = vrcp.pop %v1253
    %v1276 = vrcp.pop %v1256
    %v1277 = vrcp.pop %v1259
    %v1278 = vrcp.pop %v1262
    %v1279 = vrcp.pop %v1265
    %v1280 = vrcp.pop %v1268
    %v1281 = vrcp.pop %v1271
    %v1282 = vrcp.pop %v1274
    %v1283 = vmul.f32 %v1236, %v1275
    %v1284 = vmul.f32 %v1238, %v1276
    %v1285 = vmul.f32 %v1240, %v1277
    %v1286 = vmul.f32 %v1242, %v1278
    %v1287 = vmul.f32 %v1244, %v1279
    %v1288 = vmul.f32 %v1246, %v1280
    %v1289 = vmul.f32 %v1248, %v1281
    %v1290 = vmul.f32 %v1250, %v1282
    %v1291 = vpack.c.bf16 %v1284, %v1283
    %v1292 = vpack.c.bf16 %v1286, %v1285
    %v1293 = vpack.c.bf16 %v1288, %v1287
    %v1294 = vpack.c.bf16 %v1290, %v1289
    %v1296 = vsel %vm1202, %v1291, 0
    %v1299 = vsel %vm1202, %v1292, 0
    %1301 = vmatprep.subr.bf16.mxu0 0
    %1302 = vmatpush1.bf16.msra.mxu0 %v465
    %1303 = vmatprep.subr.bf16.mxu0 0
    %1304 = vmatpush1.bf16.msra.mxu0 0
    %1305 = vmatprep.subr.bf16.mxu0 0
    %1306 = vmatpush1.bf16.msra.mxu0 0
    %1307 = vmatprep.subr.bf16.mxu0 0
    %1308 = vmatpush1.bf16.msra.mxu0 0
    %1309 = vmatprep.subr.bf16.mxu0 0
    %1310 = vmatpush1.bf16.msra.mxu0 0
    %1311 = vmatprep.subr.bf16.mxu0 0
    %1312 = vmatpush1.bf16.msra.mxu0 0
    %1313 = vmatprep.subr.bf16.mxu0 0
    %1314 = vmatpush1.bf16.msra.mxu0 0
    %1315 = vmatprep.subr.bf16.mxu0 0
    %1316 = vmatpush1.bf16.msra.mxu0 0
    %1317 = vmatprep.subr.bf16.mxu0 0
    %1318 = vmatpush1.bf16.msra.mxu0 0
    %1319 = vmatprep.subr.bf16.mxu0 0
    %1320 = vmatpush1.bf16.msra.mxu0 0
    %1321 = vmatprep.subr.bf16.mxu0 0
    %1322 = vmatpush1.bf16.msra.mxu0 0
    %1323 = vmatprep.subr.bf16.mxu0 0
    %1324 = vmatpush1.bf16.msra.mxu0 0
    %1325 = vmatprep.subr.bf16.mxu0 0
    %1326 = vmatpush1.bf16.msra.mxu0 0
    %1327 = vmatprep.subr.bf16.mxu0 0
    %1328 = vmatpush1.bf16.msra.mxu0 0
    %1329 = vmatprep.subr.bf16.mxu0 0
    %1330 = vmatpush1.bf16.msra.mxu0 0
    %1331 = vmatprep.subr.bf16.mxu0 0
    %1332 = vmatpush1.bf16.msra.mxu0 0
    %1333 = vmatprep.mubr.bf16.mxu0 0
    %1334 = vmatmul.mubr.bf16.gmra.mrb[0].mxu0 %v1296
    %v1335 = vpop.f32.mrb[0].mxu0
    %v1336 = vadd.f32 0.0, %v1335
    %v1337 = vpop.f32.mrb[0].mxu0
    %v1338 = vpop.f32.mrb[0].mxu0
    %v1339 = vadd.f32 0.0, %v1338
    %v1340 = vpop.f32.mrb[0].mxu0
    %1341 = vmatprep.mubr.bf16.mxu0 0
    %1342 = vmatmul.mubr.bf16.gmra.mrb[0].mxu0 %v1299
    %v1343 = vpop.f32.mrb[0].mxu0
    %v1344 = vadd.f32 0.0, %v1343
    %v1345 = vpop.f32.mrb[0].mxu0
    %v1346 = vpop.f32.mrb[0].mxu0
    %v1347 = vadd.f32 0.0, %v1346
    %v1348 = vpop.f32.mrb[0].mxu0
    %1349 = vdwg.mxu0
    %v1351 = vsel %vm1202, %v1293, 0
    %v1354 = vsel %vm1202, %v1294, 0
    %1356 = vmatprep.subr.bf16.mxu0 0
    %1357 = vmatpush1.bf16.msra.mxu0 %v466
    %1358 = vmatprep.subr.bf16.mxu0 0
    %1359 = vmatpush1.bf16.msra.mxu0 0
    %1360 = vmatprep.subr.bf16.mxu0 0
    %1361 = vmatpush1.bf16.msra.mxu0 0
    %1362 = vmatprep.subr.bf16.mxu0 0
    %1363 = vmatpush1.bf16.msra.mxu0 0
    %1364 = vmatprep.subr.bf16.mxu0 0
    %1365 = vmatpush1.bf16.msra.mxu0 0
    %1366 = vmatprep.subr.bf16.mxu0 0
    %1367 = vmatpush1.bf16.msra.mxu0 0
    %1368 = vmatprep.subr.bf16.mxu0 0
    %1369 = vmatpush1.bf16.msra.mxu0 0
    %1370 = vmatprep.subr.bf16.mxu0 0
    %1371 = vmatpush1.bf16.msra.mxu0 0
    %1372 = vmatprep.subr.bf16.mxu0 0
    %1373 = vmatpush1.bf16.msra.mxu0 0
    %1374 = vmatprep.subr.bf16.mxu0 0
    %1375 = vmatpush1.bf16.msra.mxu0 0
    %1376 = vmatprep.subr.bf16.mxu0 0
    %1377 = vmatpush1.bf16.msra.mxu0 0
    %1378 = vmatprep.subr.bf16.mxu0 0
    %1379 = vmatpush1.bf16.msra.mxu0 0
    %1380 = vmatprep.subr.bf16.mxu0 0
    %1381 = vmatpush1.bf16.msra.mxu0 0
    %1382 = vmatprep.subr.bf16.mxu0 0
    %1383 = vmatpush1.bf16.msra.mxu0 0
    %1384 = vmatprep.subr.bf16.mxu0 0
    %1385 = vmatpush1.bf16.msra.mxu0 0
    %1386 = vmatprep.subr.bf16.mxu0 0
    %1387 = vmatpush1.bf16.msra.mxu0 0
    %1388 = vmatprep.mubr.bf16.mxu0 0
    %1389 = vmatmul.mubr.bf16.gmra.mrb[0].mxu0 %v1351
    %v1390 = vpop.f32.mrb[0].mxu0
    %v1391 = vadd.f32 0.0, %v1390
    %v1392 = vpop.f32.mrb[0].mxu0
    %v1393 = vpop.f32.mrb[0].mxu0
    %v1394 = vadd.f32 0.0, %v1393
    %v1395 = vpop.f32.mrb[0].mxu0
    %1396 = vmatprep.mubr.bf16.mxu0 0
    %1397 = vmatmul.mubr.bf16.gmra.mrb[0].mxu0 %v1354
    %v1398 = vpop.f32.mrb[0].mxu0
    %v1399 = vadd.f32 0.0, %v1398
    %v1400 = vpop.f32.mrb[0].mxu0
    %v1401 = vpop.f32.mrb[0].mxu0
    %v1402 = vadd.f32 0.0, %v1401
    %v1403 = vpop.f32.mrb[0].mxu0
    %1404 = vdwg.mxu0
    %v1405 = vmul.f32 %v1336, %v220
    %v1406 = vmul.f32 %v1339, %v221
    %v1407 = vmul.f32 %v1344, %v222
    %v1408 = vmul.f32 %v1347, %v223
    %v1409 = vmul.f32 %v1391, %v220
    %v1410 = vmul.f32 %v1394, %v221
    %v1411 = vmul.f32 %v1399, %v222
    %v1412 = vmul.f32 %v1402, %v223
    %v1413 = vadd.f32 %v1405, %v1406
    %v1414 = vadd.f32 %v1409, %v1410
    %v1415 = vadd.f32 %v1413, %v1407
    %v1416 = vadd.f32 %v1414, %v1411
    %v1417 = vadd.f32 %v1415, %v1408
    %v1418 = vadd.f32 %v1416, %v1412
    %v1419 = vpack.c.bf16 %v1418, %v1417
    %v1420 = vlaneseq
    %v1421 = vshrl.u32 %v1420, 7
    %v1422 = vsub.s32 0, %v1421
    %v1423 = vrot.slane %v1071, %v1422
    %1424 = vrot.lane.b32.xlu0 %v1015, 96
    %v1425 = vpop.permute.xlu0 %1424
    %1426 = vrot.lane.b32.xlu0 %v1016, 96
    %v1427 = vpop.permute.xlu0 %1426
    %v1431 = vsel %vm260, %v1419, 0
    %1433 = vmatprep.subr.bf16.mxu0 0
    %1434 = vmatpush1.bf16.msra.mxu0 %v1425
    %1435 = vmatprep.subr.bf16.mxu0 0
    %1436 = vmatpush1.bf16.msra.mxu0 %v1427
    %1437 = vmatprep.subr.bf16.mxu0 0
    %1438 = vmatpush1.bf16.msra.mxu0 0
    %1439 = vmatprep.subr.bf16.mxu0 0
    %1440 = vmatpush1.bf16.msra.mxu0 0
    %1441 = vmatprep.subr.bf16.mxu0 0
    %1442 = vmatpush1.bf16.msra.mxu0 0
    %1443 = vmatprep.subr.bf16.mxu0 0
    %1444 = vmatpush1.bf16.msra.mxu0 0
    %1445 = vmatprep.subr.bf16.mxu0 0
    %1446 = vmatpush1.bf16.msra.mxu0 0
    %1447 = vmatprep.subr.bf16.mxu0 0
    %1448 = vmatpush1.bf16.msra.mxu0 0
    %1449 = vmatprep.subr.bf16.mxu0 0
    %1450 = vmatpush1.bf16.msra.mxu0 0
    %1451 = vmatprep.subr.bf16.mxu0 0
    %1452 = vmatpush1.bf16.msra.mxu0 0
    %1453 = vmatprep.subr.bf16.mxu0 0
    %1454 = vmatpush1.bf16.msra.mxu0 0
    %1455 = vmatprep.subr.bf16.mxu0 0
    %1456 = vmatpush1.bf16.msra.mxu0 0
    %1457 = vmatprep.subr.bf16.mxu0 0
    %1458 = vmatpush1.bf16.msra.mxu0 0
    %1459 = vmatprep.subr.bf16.mxu0 0
    %1460 = vmatpush1.bf16.msra.mxu0 0
    %1461 = vmatprep.subr.bf16.mxu0 0
    %1462 = vmatpush1.bf16.msra.mxu0 0
    %1463 = vmatprep.subr.bf16.mxu0 0
    %1464 = vmatpush1.bf16.msra.mxu0 0
    %1465 = vmatprep.mubr.bf16.mxu0 0
    %1466 = vmatmul.mubr.bf16.gmra.mrb[0].mxu0 %v1431
    %v1467 = vpop.f32.mrb[0].mxu0
    %v1468 = vadd.f32 %v1423, %v1467
    %v1469 = vpop.f32.mrb[0].mxu0
    %v1470 = vpop.f32.mrb[0].mxu0
    %v1471 = vadd.f32 %v1423, %v1470
    %v1472 = vpop.f32.mrb[0].mxu0
    %1473 = vdwg.mxu0
    %v1474 = vadd.f32 %v1008, %v1468
    %v1475 = vadd.f32 %v1009, %v1471
    %v1476 = vld [vmem:[#allocation17 + $0x6] sm:$0x1]
    %v1477 = vld [vmem:[#allocation17 + $0x7] sm:$0x1]
    %v1478 = vsel %vm260, %v1474, 0.0
    %1479 = vadd.xlane.f32.xlu0 %v1478
    %v1480 = vpop.xlane.xlu0 %1479
    %v1481 = vsel %vm260, %v1475, 0.0
    %1482 = vadd.xlane.f32.xlu0 %v1481
    %v1483 = vpop.xlane.xlu0 %1482
    %v1484 = vmul.f32 %v1480, %v977
    %v1485 = vmul.f32 %v1483, %v977
    %v1486 = vsub.f32 %v1474, %v1484
    %v1487 = vsub.f32 %v1475, %v1485
    %v1488 = vmul.f32 %v1486, %v1486
    %v1489 = vmul.f32 %v1487, %v1487
    %v1490 = vsel %vm260, %v1488, 0.0
    %1491 = vadd.xlane.f32.xlu0 %v1490
    %v1492 = vpop.xlane.xlu0 %1491
    %v1493 = vsel %vm260, %v1489, 0.0
    %1494 = vadd.xlane.f32.xlu0 %v1493
    %v1495 = vpop.xlane.xlu0 %1494
    %v1496 = vmul.f32 %v1492, %v977
    %v1497 = vmul.f32 %v1495, %v977
    %v1498 = vadd.f32 %v1496, 1e-05
    %v1499 = vadd.f32 %v1497, 1e-05
    %v1500 = vrsqrt.pop %v1498
    %v1501 = vrsqrt.pop %v1499
    %v1502 = vmul.f32 %v1486, %v1500
    %v1503 = vmul.f32 %v1487, %v1501
    %v1504 = vlaneseq
    %v1505 = vshrl.u32 %v1504, 7
    %v1506 = vsub.s32 0, %v1505
    %v1507 = vrot.slane %v1476, %v1506
    %v1508 = vmul.f32 %v1502, %v1507
    %v1509 = vmul.f32 %v1503, %v1507
    %v1510 = vlaneseq
    %v1511 = vshrl.u32 %v1510, 7
    %v1512 = vsub.s32 0, %v1511
    %v1513 = vrot.slane %v1477, %v1512
    %v1514 = vadd.f32 %v1508, %v1513
    %v1515 = vadd.f32 %v1509, %v1513
    %v1516 = vpack.c.bf16 %v1515, %v1514
    %v1517 = vld [vmem:[#allocation19] sm:$0x1]
    %v1518 = vlaneseq
    %v1519 = vshrl.u32 %v1518, 7
    %v1520 = vsub.s32 0, %v1519
    %v1521 = vrot.slane %v1517, %v1520
    %1522 = vrot.lane.b32.xlu0 %v1015, 64
    %v1523 = vpop.permute.xlu0 %1522
    %1524 = vrot.lane.b32.xlu0 %v1016, 64
    %v1525 = vpop.permute.xlu0 %1524
    %v1529 = vsel %vm260, %v1516, 0
    %1531 = vmatprep.subr.bf16.mxu0 0
    %1532 = vmatpush1.bf16.msra.mxu0 %v1523
    %1533 = vmatprep.subr.bf16.mxu0 0
    %1534 = vmatpush1.bf16.msra.mxu0 %v1525
    %1535 = vmatprep.subr.bf16.mxu0 0
    %1536 = vmatpush1.bf16.msra.mxu0 0
    %1537 = vmatprep.subr.bf16.mxu0 0
    %1538 = vmatpush1.bf16.msra.mxu0 0
    %1539 = vmatprep.subr.bf16.mxu0 0
    %1540 = vmatpush1.bf16.msra.mxu0 0
    %1541 = vmatprep.subr.bf16.mxu0 0
    %1542 = vmatpush1.bf16.msra.mxu0 0
    %1543 = vmatprep.subr.bf16.mxu0 0
    %1544 = vmatpush1.bf16.msra.mxu0 0
    %1545 = vmatprep.subr.bf16.mxu0 0
    %1546 = vmatpush1.bf16.msra.mxu0 0
    %1547 = vmatprep.subr.bf16.mxu0 0
    %1548 = vmatpush1.bf16.msra.mxu0 0
    %1549 = vmatprep.subr.bf16.mxu0 0
    %1550 = vmatpush1.bf16.msra.mxu0 0
    %1551 = vmatprep.subr.bf16.mxu0 0
    %1552 = vmatpush1.bf16.msra.mxu0 0
    %1553 = vmatprep.subr.bf16.mxu0 0
    %1554 = vmatpush1.bf16.msra.mxu0 0
    %1555 = vmatprep.subr.bf16.mxu0 0
    %1556 = vmatpush1.bf16.msra.mxu0 0
    %1557 = vmatprep.subr.bf16.mxu0 0
    %1558 = vmatpush1.bf16.msra.mxu0 0
    %1559 = vmatprep.subr.bf16.mxu0 0
    %1560 = vmatpush1.bf16.msra.mxu0 0
    %1561 = vmatprep.subr.bf16.mxu0 0
    %1562 = vmatpush1.bf16.msra.mxu0 0
    %1563 = vmatprep.mubr.bf16.mxu0 0
    %1564 = vmatmul.mubr.bf16.gmra.mrb[0].mxu0 %v1529
    %v1565 = vpop.f32.mrb[0].mxu0
    %v1566 = vadd.f32 %v1521, %v1565
    %v1567 = vpop.f32.mrb[0].mxu0
    %v1568 = vpop.f32.mrb[0].mxu0
    %v1569 = vadd.f32 %v1521, %v1568
    %v1570 = vpop.f32.mrb[0].mxu0
    %1571 = vdwg.mxu0
    %v1572 = vmax.f32 %v1566, 0.0
    %v1573 = vmax.f32 %v1569, 0.0
    %v1574 = vpack.c.bf16 %v1573, %v1572
    %v1575 = vld [vmem:[%s5] sm:$0xf]
    %v1576 = vld [vmem:[%s5 + $0x4] sm:$0xf]
    %v1577 = vld [vmem:[%s5 + $0x8] sm:$0xf]
    %v1578 = vld [vmem:[%s5 + $0xc] sm:$0xf]
    %v1579 = vld [vmem:[%s5 + $0x10] sm:$0xf]
    %v1580 = vld [vmem:[%s5 + $0x14] sm:$0xf]
    %v1581 = vld [vmem:[%s5 + $0x18] sm:$0xf]
    %v1582 = vld [vmem:[%s5 + $0x1c] sm:$0xf]
    %v1583 = vld [vmem:[#allocation17 + $0x3] sm:$0x1]
    %v1584 = vlaneseq
    %v1585 = vshrl.u32 %v1584, 7
    %v1586 = vsub.s32 0, %v1585
    %v1587 = vrot.slane %v1583, %v1586
    %v1596 = vunpack.c.l.b16 %v1575
    %v1597 = vunpack.c.l.b16 %v1576
    %v1598 = vunpack.c.l.b16 %v1577
    %v1599 = vunpack.c.l.b16 %v1578
    %v1600 = vunpack.c.l.b16 %v1579
    %v1601 = vunpack.c.l.b16 %v1580
    %v1602 = vunpack.c.l.b16 %v1581
    %v1603 = vunpack.c.l.b16 %v1582
    %v1604 = vpack.c.b16 %v1597, %v1596
    %v1605 = vpack.c.b16 %v1599, %v1598
    %v1606 = vpack.c.b16 %v1601, %v1600
    %v1607 = vpack.c.b16 %v1603, %v1602
    %vm1612 = vcmask 523264
    %v1614 = vsel %vm1612, %v1574, 0
    %1616 = vmatprep.subr.bf16.mxu0 0
    %1617 = vmatpush1.bf16.msra.mxu0 %v1604
    %1618 = vmatprep.subr.bf16.mxu0 0
    %1619 = vmatpush1.bf16.msra.mxu0 %v1605
    %1620 = vmatprep.subr.bf16.mxu0 0
    %1621 = vmatpush1.bf16.msra.mxu0 %v1606
    %1622 = vmatprep.subr.bf16.mxu0 0
    %1623 = vmatpush1.bf16.msra.mxu0 %v1607
    %1624 = vmatprep.subr.bf16.mxu0 0
    %1625 = vmatpush1.bf16.msra.mxu0 0
    %1626 = vmatprep.subr.bf16.mxu0 0
    %1627 = vmatpush1.bf16.msra.mxu0 0
    %1628 = vmatprep.subr.bf16.mxu0 0
    %1629 = vmatpush1.bf16.msra.mxu0 0
    %1630 = vmatprep.subr.bf16.mxu0 0
    %1631 = vmatpush1.bf16.msra.mxu0 0
    %1632 = vmatprep.subr.bf16.mxu0 0
    %1633 = vmatpush1.bf16.msra.mxu0 0
    %1634 = vmatprep.subr.bf16.mxu0 0
    %1635 = vmatpush1.bf16.msra.mxu0 0
    %1636 = vmatprep.subr.bf16.mxu0 0
    %1637 = vmatpush1.bf16.msra.mxu0 0
    %1638 = vmatprep.subr.bf16.mxu0 0
    %1639 = vmatpush1.bf16.msra.mxu0 0
    %1640 = vmatprep.subr.bf16.mxu0 0
    %1641 = vmatpush1.bf16.msra.mxu0 0
    %1642 = vmatprep.subr.bf16.mxu0 0
    %1643 = vmatpush1.bf16.msra.mxu0 0
    %1644 = vmatprep.subr.bf16.mxu0 0
    %1645 = vmatpush1.bf16.msra.mxu0 0
    %1646 = vmatprep.subr.bf16.mxu0 0
    %1647 = vmatpush1.bf16.msra.mxu0 0
    %1648 = vmatprep.mubr.bf16.mxu0 0
    %1649 = vmatmul.mubr.bf16.gmra.mrb[0].mxu0 %v1614
    %v1650 = vpop.f32.mrb[0].mxu0
    %v1651 = vadd.f32 %v1587, %v1650
    %v1652 = vpop.f32.mrb[0].mxu0
    %v1653 = vpop.f32.mrb[0].mxu0
    %v1654 = vadd.f32 %v1587, %v1653
    %v1655 = vpop.f32.mrb[0].mxu0
    %1656 = vdwg.mxu0
    %v1657 = vadd.f32 %v1514, %v1651
    %v1658 = vadd.f32 %v1515, %v1654
    %v1659 = vld [vmem:[#allocation17 + $0x8] sm:$0x1]
    %v1660 = vld [vmem:[#allocation17 + $0x9] sm:$0x1]
    %v1661 = vsel %vm260, %v1657, 0.0
    %1662 = vadd.xlane.f32.xlu0 %v1661
    %v1663 = vpop.xlane.xlu0 %1662
    %v1664 = vsel %vm260, %v1658, 0.0
    %1665 = vadd.xlane.f32.xlu0 %v1664
    %v1666 = vpop.xlane.xlu0 %1665
    %v1667 = vmul.f32 %v1663, %v977
    %v1668 = vmul.f32 %v1666, %v977
    %v1669 = vsub.f32 %v1657, %v1667
    %v1670 = vsub.f32 %v1658, %v1668
    %v1671 = vmul.f32 %v1669, %v1669
    %v1672 = vmul.f32 %v1670, %v1670
    %v1673 = vsel %vm260, %v1671, 0.0
    %1674 = vadd.xlane.f32.xlu0 %v1673
    %v1675 = vpop.xlane.xlu0 %1674
    %v1676 = vsel %vm260, %v1672, 0.0
    %1677 = vadd.xlane.f32.xlu0 %v1676
    %v1678 = vpop.xlane.xlu0 %1677
    %v1679 = vmul.f32 %v1675, %v977
    %v1680 = vmul.f32 %v1678, %v977
    %v1681 = vadd.f32 %v1679, 1e-05
    %v1682 = vadd.f32 %v1680, 1e-05
    %v1683 = vrsqrt.pop %v1681
    %v1684 = vrsqrt.pop %v1682
    %v1685 = vmul.f32 %v1669, %v1683
    %v1686 = vmul.f32 %v1670, %v1684
    %v1687 = vlaneseq
    %v1688 = vshrl.u32 %v1687, 7
    %v1689 = vsub.s32 0, %v1688
    %v1690 = vrot.slane %v1659, %v1689
    %v1691 = vmul.f32 %v1685, %v1690
    %v1692 = vmul.f32 %v1686, %v1690
    %v1693 = vlaneseq
    %v1694 = vshrl.u32 %v1693, 7
    %v1695 = vsub.s32 0, %v1694
    %v1696 = vrot.slane %v1660, %v1695
    %v1697 = vadd.f32 %v1691, %v1696
    %v1698 = vadd.f32 %v1692, %v1696
    %s1699 = scalar_lea.vmem %s4, 32
    %v1700 = vld [vmem:[%s1699] sm:$0xff]
    %v1701 = vld [vmem:[%s1699 + $0x8] sm:$0xff]
    %v1702 = vld [vmem:[%s1699 + $0x10] sm:$0xff]
    %v1703 = vld [vmem:[%s1699 + $0x18] sm:$0xff]
    %v1704 = vpack.c.bf16 %v1698, %v1697
    %v1709 = vunpack.c.l.b16 %v1700
    %v1710 = vunpack.c.l.b16 %v1701
    %v1711 = vunpack.c.l.b16 %v1702
    %v1712 = vunpack.c.l.b16 %v1703
    %v1713 = vpack.c.b16 %v1710, %v1709
    %v1714 = vpack.c.b16 %v1712, %v1711
    %v1718 = vsel %vm260, %v1704, 0
    %1720 = vmatprep.subr.bf16.mxu0 0
    %1721 = vmatpush1.bf16.msra.mxu0 %v1713
    %1722 = vmatprep.subr.bf16.mxu0 0
    %1723 = vmatpush1.bf16.msra.mxu0 %v1714
    %1724 = vmatprep.subr.bf16.mxu0 0
    %1725 = vmatpush1.bf16.msra.mxu0 0
    %1726 = vmatprep.subr.bf16.mxu0 0
    %1727 = vmatpush1.bf16.msra.mxu0 0
    %1728 = vmatprep.subr.bf16.mxu0 0
    %1729 = vmatpush1.bf16.msra.mxu0 0
    %1730 = vmatprep.subr.bf16.mxu0 0
    %1731 = vmatpush1.bf16.msra.mxu0 0
    %1732 = vmatprep.subr.bf16.mxu0 0
    %1733 = vmatpush1.bf16.msra.mxu0 0
    %1734 = vmatprep.subr.bf16.mxu0 0
    %1735 = vmatpush1.bf16.msra.mxu0 0
    %1736 = vmatprep.subr.bf16.mxu0 0
    %1737 = vmatpush1.bf16.msra.mxu0 0
    %1738 = vmatprep.subr.bf16.mxu0 0
    %1739 = vmatpush1.bf16.msra.mxu0 0
    %1740 = vmatprep.subr.bf16.mxu0 0
    %1741 = vmatpush1.bf16.msra.mxu0 0
    %1742 = vmatprep.subr.bf16.mxu0 0
    %1743 = vmatpush1.bf16.msra.mxu0 0
    %1744 = vmatprep.subr.bf16.mxu0 0
    %1745 = vmatpush1.bf16.msra.mxu0 0
    %1746 = vmatprep.subr.bf16.mxu0 0
    %1747 = vmatpush1.bf16.msra.mxu0 0
    %1748 = vmatprep.subr.bf16.mxu0 0
    %1749 = vmatpush1.bf16.msra.mxu0 0
    %1750 = vmatprep.subr.bf16.mxu0 0
    %1751 = vmatpush1.bf16.msra.mxu0 0
    %1752 = vmatprep.mubr.bf16.mxu0 0
    %1753 = vmatmul.mubr.bf16.gmra.mrb[0].mxu0 %v1718
    %v1754 = vpop.f32.mrb[0].mxu0
    %v1755 = vadd.f32 0.0, %v1754
    %v1756 = vpop.f32.mrb[0].mxu0
    %v1757 = vpop.f32.mrb[0].mxu0
    %v1758 = vadd.f32 0.0, %v1757
    %v1759 = vpop.f32.mrb[0].mxu0
    %1760 = vdwg.mxu0
    %1761 = vrot.lane.b32.xlu0 %v299, 32
    %v1762 = vpop.permute.xlu0 %1761
    %1763 = vrot.lane.b32.xlu0 %v303, 32
    %v1764 = vpop.permute.xlu0 %1763
    %v1767 = vadd.f32 %v1755, %v1762
    %v1768 = vadd.f32 %v1758, %v1764
    %1771 = vrot.lane.b32.xlu0 %v301, 32
    %v1772 = vpop.permute.xlu0 %1771
    %1773 = vrot.lane.b32.xlu0 %v305, 32
    %v1774 = vpop.permute.xlu0 %1773
    %v1777 = vadd.f32 %v1755, %v1772
    %v1778 = vadd.f32 %v1758, %v1774
    %v1779 = vld [vmem:[#allocation17 + $0xa] sm:$0x1]
    %v1780 = vlaneseq
    %v1781 = vshrl.u32 %v1780, 7
    %v1782 = vsub.s32 0, %v1781
    %v1783 = vrot.slane %v1779, %v1782
    %1785 = vrot.lane.b32.xlu0 %v1783, 64
    %v1786 = vpop.permute.xlu0 %1785
    %v1788 = vadd.f32 %v1755, %v1786
    %v1789 = vadd.f32 %v1758, %v1786
    %v1790 = vpack.c.bf16 %v1777, %v1777
    %v1791 = vpack.c.bf16 %v1778, %v1778
    %v1792 = vpack.c.bf16 %v1788, %v1788
    %v1793 = vpack.c.bf16 %v1789, %v1789
    %v1794 = vld [vmem:[#allocation17 + $0xb] sm:$0x1]
    %v1795 = vmul.f32 %v1767, 0.35355338
    %v1796 = vmul.f32 %v1768, 0.35355338
    %v1797 = vmul.f32 %v1795, %v220
    %v1798 = vmul.f32 %v1795, %v221
    %v1799 = vmul.f32 %v1795, %v222
    %v1800 = vmul.f32 %v1795, %v223
    %v1801 = vmul.f32 %v1796, %v220
    %v1802 = vmul.f32 %v1796, %v221
    %v1803 = vmul.f32 %v1796, %v222
    %v1804 = vmul.f32 %v1796, %v223
    %v1805 = vpack.c.bf16 %v1798, %v1797
    %v1806 = vpack.c.bf16 %v1800, %v1799
    %v1807 = vpack.c.bf16 %v1802, %v1801
    %v1808 = vpack.c.bf16 %v1804, %v1803
    %1810 = vrot.lane.b32.xlu0 %v1790, 96
    %v1811 = vpop.permute.xlu0 %1810
    %v1813 = vsel %vm260, %v1805, 0
    %v1816 = vsel %vm260, %v1806, 0
    %v1819 = vsel %vm260, %v1811, 0
    %1821 = vmatprep.subr.bf16.mxu0 0
    %1822 = vmatpush1.bf16.xpose.msra.mxu0 %v1819
    %1823 = vmatprep.subr.bf16.mxu0 0
    %1824 = vmatpush1.bf16.xpose.msra.mxu0 0
    %1825 = vmatprep.subr.bf16.mxu0 0
    %1826 = vmatpush1.bf16.xpose.msra.mxu0 0
    %1827 = vmatprep.subr.bf16.mxu0 0
    %1828 = vmatpush1.bf16.xpose.msra.mxu0 0
    %1829 = vmatprep.subr.bf16.mxu0 0
    %1830 = vmatpush1.bf16.xpose.msra.mxu0 0
    %1831 = vmatprep.subr.bf16.mxu0 0
    %1832 = vmatpush1.bf16.xpose.msra.mxu0 0
    %1833 = vmatprep.subr.bf16.mxu0 0
    %1834 = vmatpush1.bf16.xpose.msra.mxu0 0
    %1835 = vmatprep.subr.bf16.mxu0 0
    %1836 = vmatpush1.bf16.xpose.msra.mxu0 0
    %1837 = vmatprep.subr.bf16.mxu0 0
    %1838 = vmatpush1.bf16.xpose.msra.mxu0 0
    %1839 = vmatprep.subr.bf16.mxu0 0
    %1840 = vmatpush1.bf16.xpose.msra.mxu0 0
    %1841 = vmatprep.subr.bf16.mxu0 0
    %1842 = vmatpush1.bf16.xpose.msra.mxu0 0
    %1843 = vmatprep.subr.bf16.mxu0 0
    %1844 = vmatpush1.bf16.xpose.msra.mxu0 0
    %1845 = vmatprep.subr.bf16.mxu0 0
    %1846 = vmatpush1.bf16.xpose.msra.mxu0 0
    %1847 = vmatprep.subr.bf16.mxu0 0
    %1848 = vmatpush1.bf16.xpose.msra.mxu0 0
    %1849 = vmatprep.subr.bf16.mxu0 0
    %1850 = vmatpush1.bf16.xpose.msra.mxu0 0
    %1851 = vmatprep.subr.bf16.mxu0 0
    %1852 = vmatpush1.bf16.xpose.msra.mxu0 0
    %1853 = vmatprep.mubr.bf16.mxu0 0
    %1854 = vmatmul.mubr.bf16.gmra.mrb[0].mxu0 %v1813
    %v1855 = vpop.f32.mrb[0].mxu0
    %v1856 = vadd.f32 0.0, %v1855
    %v1857 = vpop.f32.mrb[0].mxu0
    %v1858 = vpop.f32.mrb[0].mxu0
    %v1859 = vadd.f32 0.0, %v1858
    %v1860 = vpop.f32.mrb[0].mxu0
    %1861 = vmatprep.mubr.bf16.mxu0 0
    %1862 = vmatmul.mubr.bf16.gmra.mrb[0].mxu0 %v1816
    %v1863 = vpop.f32.mrb[0].mxu0
    %v1864 = vadd.f32 0.0, %v1863
    %v1865 = vpop.f32.mrb[0].mxu0
    %v1866 = vpop.f32.mrb[0].mxu0
    %v1867 = vadd.f32 0.0, %v1866
    %v1868 = vpop.f32.mrb[0].mxu0
    %1869 = vdwg.mxu0
    %1871 = vrot.lane.b32.xlu0 %v1791, 96
    %v1872 = vpop.permute.xlu0 %1871
    %v1874 = vsel %vm260, %v1807, 0
    %v1877 = vsel %vm260, %v1808, 0
    %v1880 = vsel %vm260, %v1872, 0
    %1882 = vmatprep.subr.bf16.mxu0 0
    %1883 = vmatpush1.bf16.xpose.msra.mxu0 %v1880
    %1884 = vmatprep.subr.bf16.mxu0 0
    %1885 = vmatpush1.bf16.xpose.msra.mxu0 0
    %1886 = vmatprep.subr.bf16.mxu0 0
    %1887 = vmatpush1.bf16.xpose.msra.mxu0 0
    %1888 = vmatprep.subr.bf16.mxu0 0
    %1889 = vmatpush1.bf16.xpose.msra.mxu0 0
    %1890 = vmatprep.subr.bf16.mxu0 0
    %1891 = vmatpush1.bf16.xpose.msra.mxu0 0
    %1892 = vmatprep.subr.bf16.mxu0 0
    %1893 = vmatpush1.bf16.xpose.msra.mxu0 0
    %1894 = vmatprep.subr.bf16.mxu0 0
    %1895 = vmatpush1.bf16.xpose.msra.mxu0 0
    %1896 = vmatprep.subr.bf16.mxu0 0
    %1897 = vmatpush1.bf16.xpose.msra.mxu0 0
    %1898 = vmatprep.subr.bf16.mxu0 0
    %1899 = vmatpush1.bf16.xpose.msra.mxu0 0
    %1900 = vmatprep.subr.bf16.mxu0 0
    %1901 = vmatpush1.bf16.xpose.msra.mxu0 0
    %1902 = vmatprep.subr.bf16.mxu0 0
    %1903 = vmatpush1.bf16.xpose.msra.mxu0 0
    %1904 = vmatprep.subr.bf16.mxu0 0
    %1905 = vmatpush1.bf16.xpose.msra.mxu0 0
    %1906 = vmatprep.subr.bf16.mxu0 0
    %1907 = vmatpush1.bf16.xpose.msra.mxu0 0
    %1908 = vmatprep.subr.bf16.mxu0 0
    %1909 = vmatpush1.bf16.xpose.msra.mxu0 0
    %1910 = vmatprep.subr.bf16.mxu0 0
    %1911 = vmatpush1.bf16.xpose.msra.mxu0 0
    %1912 = vmatprep.subr.bf16.mxu0 0
    %1913 = vmatpush1.bf16.xpose.msra.mxu0 0
    %1914 = vmatprep.mubr.bf16.mxu0 0
    %1915 = vmatmul.mubr.bf16.gmra.mrb[0].mxu0 %v1874
    %v1916 = vpop.f32.mrb[0].mxu0
    %v1917 = vadd.f32 0.0, %v1916
    %v1918 = vpop.f32.mrb[0].mxu0
    %v1919 = vpop.f32.mrb[0].mxu0
    %v1920 = vadd.f32 0.0, %v1919
    %v1921 = vpop.f32.mrb[0].mxu0
    %1922 = vmatprep.mubr.bf16.mxu0 0
    %1923 = vmatmul.mubr.bf16.gmra.mrb[0].mxu0 %v1877
    %v1924 = vpop.f32.mrb[0].mxu0
    %v1925 = vadd.f32 0.0, %v1924
    %v1926 = vpop.f32.mrb[0].mxu0
    %v1927 = vpop.f32.mrb[0].mxu0
    %v1928 = vadd.f32 0.0, %v1927
    %v1929 = vpop.f32.mrb[0].mxu0
    %1930 = vdwg.mxu0
    %v1931 = vsel %vm682, %v1856, -inf
    %1932 = vmax.xlane.f32.xlu0 %v1931
    %v1933 = vpop.xlane.xlu0 %1932
    %v1934 = vsel %vm682, %v1859, -inf
    %1935 = vmax.xlane.f32.xlu0 %v1934
    %v1936 = vpop.xlane.xlu0 %1935
    %v1937 = vsel %vm682, %v1864, -inf
    %1938 = vmax.xlane.f32.xlu0 %v1937
    %v1939 = vpop.xlane.xlu0 %1938
    %v1940 = vsel %vm682, %v1867, -inf
    %1941 = vmax.xlane.f32.xlu0 %v1940
    %v1942 = vpop.xlane.xlu0 %1941
    %v1943 = vsel %vm682, %v1917, -inf
    %1944 = vmax.xlane.f32.xlu0 %v1943
    %v1945 = vpop.xlane.xlu0 %1944
    %v1946 = vsel %vm682, %v1920, -inf
    %1947 = vmax.xlane.f32.xlu0 %v1946
    %v1948 = vpop.xlane.xlu0 %1947
    %v1949 = vsel %vm682, %v1925, -inf
    %1950 = vmax.xlane.f32.xlu0 %v1949
    %v1951 = vpop.xlane.xlu0 %1950
    %v1952 = vsel %vm682, %v1928, -inf
    %1953 = vmax.xlane.f32.xlu0 %v1952
    %v1954 = vpop.xlane.xlu0 %1953
    %v1955 = vsub.f32 %v1856, %v1933
    %v1956 = vsub.f32 %v1859, %v1936
    %v1957 = vsub.f32 %v1864, %v1939
    %v1958 = vsub.f32 %v1867, %v1942
    %v1959 = vsub.f32 %v1917, %v1945
    %v1960 = vsub.f32 %v1920, %v1948
    %v1961 = vsub.f32 %v1925, %v1951
    %v1962 = vsub.f32 %v1928, %v1954
    %v1963 = vmul.f32 %v1955, 1.442695
    %v1964 = vpow.pop %v1963
    %v1965 = vmul.f32 %v1956, 1.442695
    %v1966 = vpow.pop %v1965
    %v1967 = vmul.f32 %v1957, 1.442695
    %v1968 = vpow.pop %v1967
    %v1969 = vmul.f32 %v1958, 1.442695
    %v1970 = vpow.pop %v1969
    %v1971 = vmul.f32 %v1959, 1.442695
    %v1972 = vpow.pop %v1971
    %v1973 = vmul.f32 %v1960, 1.442695
    %v1974 = vpow.pop %v1973
    %v1975 = vmul.f32 %v1961, 1.442695
    %v1976 = vpow.pop %v1975
    %v1977 = vmul.f32 %v1962, 1.442695
    %v1978 = vpow.pop %v1977
    %v1979 = vsel %vm682, %v1964, 0.0
    %1980 = vadd.xlane.f32.xlu0 %v1979
    %v1981 = vpop.xlane.xlu0 %1980
    %v1982 = vsel %vm682, %v1966, 0.0
    %1983 = vadd.xlane.f32.xlu0 %v1982
    %v1984 = vpop.xlane.xlu0 %1983
    %v1985 = vsel %vm682, %v1968, 0.0
    %1986 = vadd.xlane.f32.xlu0 %v1985
    %v1987 = vpop.xlane.xlu0 %1986
    %v1988 = vsel %vm682, %v1970, 0.0
    %1989 = vadd.xlane.f32.xlu0 %v1988
    %v1990 = vpop.xlane.xlu0 %1989
    %v1991 = vsel %vm682, %v1972, 0.0
    %1992 = vadd.xlane.f32.xlu0 %v1991
    %v1993 = vpop.xlane.xlu0 %1992
    %v1994 = vsel %vm682, %v1974, 0.0
    %1995 = vadd.xlane.f32.xlu0 %v1994
    %v1996 = vpop.xlane.xlu0 %1995
    %v1997 = vsel %vm682, %v1976, 0.0
    %1998 = vadd.xlane.f32.xlu0 %v1997
    %v1999 = vpop.xlane.xlu0 %1998
    %v2000 = vsel %vm682, %v1978, 0.0
    %2001 = vadd.xlane.f32.xlu0 %v2000
    %v2002 = vpop.xlane.xlu0 %2001
    %v2003 = vrcp.pop %v1981
    %v2004 = vrcp.pop %v1984
    %v2005 = vrcp.pop %v1987
    %v2006 = vrcp.pop %v1990
    %v2007 = vrcp.pop %v1993
    %v2008 = vrcp.pop %v1996
    %v2009 = vrcp.pop %v1999
    %v2010 = vrcp.pop %v2002
    %v2011 = vmul.f32 %v1964, %v2003
    %v2012 = vmul.f32 %v1966, %v2004
    %v2013 = vmul.f32 %v1968, %v2005
    %v2014 = vmul.f32 %v1970, %v2006
    %v2015 = vmul.f32 %v1972, %v2007
    %v2016 = vmul.f32 %v1974, %v2008
    %v2017 = vmul.f32 %v1976, %v2009
    %v2018 = vmul.f32 %v1978, %v2010
    %v2019 = vpack.c.bf16 %v2012, %v2011
    %v2020 = vpack.c.bf16 %v2014, %v2013
    %v2021 = vpack.c.bf16 %v2016, %v2015
    %v2022 = vpack.c.bf16 %v2018, %v2017
    %2024 = vrot.lane.b32.xlu0 %v1792, 64
    %v2025 = vpop.permute.xlu0 %2024
    %v2027 = vsel %vm682, %v2019, 0
    %v2030 = vsel %vm682, %v2020, 0
    %v2033 = vsel %vm784, %v2025, 0
    %2035 = vmatprep.subr.bf16.mxu0 0
    %2036 = vmatpush1.bf16.msra.mxu0 %v2033
    %2037 = vmatprep.subr.bf16.mxu0 0
    %2038 = vmatpush1.bf16.msra.mxu0 0
    %2039 = vmatprep.subr.bf16.mxu0 0
    %2040 = vmatpush1.bf16.msra.mxu0 0
    %2041 = vmatprep.subr.bf16.mxu0 0
    %2042 = vmatpush1.bf16.msra.mxu0 0
    %2043 = vmatprep.subr.bf16.mxu0 0
    %2044 = vmatpush1.bf16.msra.mxu0 0
    %2045 = vmatprep.subr.bf16.mxu0 0
    %2046 = vmatpush1.bf16.msra.mxu0 0
    %2047 = vmatprep.subr.bf16.mxu0 0
    %2048 = vmatpush1.bf16.msra.mxu0 0
    %2049 = vmatprep.subr.bf16.mxu0 0
    %2050 = vmatpush1.bf16.msra.mxu0 0
    %2051 = vmatprep.subr.bf16.mxu0 0
    %2052 = vmatpush1.bf16.msra.mxu0 0
    %2053 = vmatprep.subr.bf16.mxu0 0
    %2054 = vmatpush1.bf16.msra.mxu0 0
    %2055 = vmatprep.subr.bf16.mxu0 0
    %2056 = vmatpush1.bf16.msra.mxu0 0
    %2057 = vmatprep.subr.bf16.mxu0 0
    %2058 = vmatpush1.bf16.msra.mxu0 0
    %2059 = vmatprep.subr.bf16.mxu0 0
    %2060 = vmatpush1.bf16.msra.mxu0 0
    %2061 = vmatprep.subr.bf16.mxu0 0
    %2062 = vmatpush1.bf16.msra.mxu0 0
    %2063 = vmatprep.subr.bf16.mxu0 0
    %2064 = vmatpush1.bf16.msra.mxu0 0
    %2065 = vmatprep.subr.bf16.mxu0 0
    %2066 = vmatpush1.bf16.msra.mxu0 0
    %2067 = vmatprep.mubr.bf16.mxu0 0
    %2068 = vmatmul.mubr.bf16.gmra.mrb[0].mxu0 %v2027
    %v2069 = vpop.f32.mrb[0].mxu0
    %v2070 = vadd.f32 0.0, %v2069
    %v2071 = vpop.f32.mrb[0].mxu0
    %v2072 = vpop.f32.mrb[0].mxu0
    %v2073 = vadd.f32 0.0, %v2072
    %v2074 = vpop.f32.mrb[0].mxu0
    %2075 = vmatprep.mubr.bf16.mxu0 0
    %2076 = vmatmul.mubr.bf16.gmra.mrb[0].mxu0 %v2030
    %v2077 = vpop.f32.mrb[0].mxu0
    %v2078 = vadd.f32 0.0, %v2077
    %v2079 = vpop.f32.mrb[0].mxu0
    %v2080 = vpop.f32.mrb[0].mxu0
    %v2081 = vadd.f32 0.0, %v2080
    %v2082 = vpop.f32.mrb[0].mxu0
    %2083 = vdwg.mxu0
    %2085 = vrot.lane.b32.xlu0 %v1793, 64
    %v2086 = vpop.permute.xlu0 %2085
    %v2088 = vsel %vm682, %v2021, 0
    %v2091 = vsel %vm682, %v2022, 0
    %v2094 = vsel %vm784, %v2086, 0
    %2096 = vmatprep.subr.bf16.mxu0 0
    %2097 = vmatpush1.bf16.msra.mxu0 %v2094
    %2098 = vmatprep.subr.bf16.mxu0 0
    %2099 = vmatpush1.bf16.msra.mxu0 0
    %2100 = vmatprep.subr.bf16.mxu0 0
    %2101 = vmatpush1.bf16.msra.mxu0 0
    %2102 = vmatprep.subr.bf16.mxu0 0
    %2103 = vmatpush1.bf16.msra.mxu0 0
    %2104 = vmatprep.subr.bf16.mxu0 0
    %2105 = vmatpush1.bf16.msra.mxu0 0
    %2106 = vmatprep.subr.bf16.mxu0 0
    %2107 = vmatpush1.bf16.msra.mxu0 0
    %2108 = vmatprep.subr.bf16.mxu0 0
    %2109 = vmatpush1.bf16.msra.mxu0 0
    %2110 = vmatprep.subr.bf16.mxu0 0
    %2111 = vmatpush1.bf16.msra.mxu0 0
    %2112 = vmatprep.subr.bf16.mxu0 0
    %2113 = vmatpush1.bf16.msra.mxu0 0
    %2114 = vmatprep.subr.bf16.mxu0 0
    %2115 = vmatpush1.bf16.msra.mxu0 0
    %2116 = vmatprep.subr.bf16.mxu0 0
    %2117 = vmatpush1.bf16.msra.mxu0 0
    %2118 = vmatprep.subr.bf16.mxu0 0
    %2119 = vmatpush1.bf16.msra.mxu0 0
    %2120 = vmatprep.subr.bf16.mxu0 0
    %2121 = vmatpush1.bf16.msra.mxu0 0
    %2122 = vmatprep.subr.bf16.mxu0 0
    %2123 = vmatpush1.bf16.msra.mxu0 0
    %2124 = vmatprep.subr.bf16.mxu0 0
    %2125 = vmatpush1.bf16.msra.mxu0 0
    %2126 = vmatprep.subr.bf16.mxu0 0
    %2127 = vmatpush1.bf16.msra.mxu0 0
    %2128 = vmatprep.mubr.bf16.mxu0 0
    %2129 = vmatmul.mubr.bf16.gmra.mrb[0].mxu0 %v2088
    %v2130 = vpop.f32.mrb[0].mxu0
    %v2131 = vadd.f32 0.0, %v2130
    %v2132 = vpop.f32.mrb[0].mxu0
    %v2133 = vpop.f32.mrb[0].mxu0
    %v2134 = vadd.f32 0.0, %v2133
    %v2135 = vpop.f32.mrb[0].mxu0
    %2136 = vmatprep.mubr.bf16.mxu0 0
    %2137 = vmatmul.mubr.bf16.gmra.mrb[0].mxu0 %v2091
    %v2138 = vpop.f32.mrb[0].mxu0
    %v2139 = vadd.f32 0.0, %v2138
    %v2140 = vpop.f32.mrb[0].mxu0
    %v2141 = vpop.f32.mrb[0].mxu0
    %v2142 = vadd.f32 0.0, %v2141
    %v2143 = vpop.f32.mrb[0].mxu0
    %2144 = vdwg.mxu0
    %v2145 = vmul.f32 %v2070, %v220
    %v2146 = vmul.f32 %v2073, %v221
    %v2147 = vmul.f32 %v2078, %v222
    %v2148 = vmul.f32 %v2081, %v223
    %v2149 = vmul.f32 %v2131, %v220
    %v2150 = vmul.f32 %v2134, %v221
    %v2151 = vmul.f32 %v2139, %v222
    %v2152 = vmul.f32 %v2142, %v223
    %v2153 = vadd.f32 %v2145, %v2146
    %v2154 = vadd.f32 %v2149, %v2150
    %v2155 = vadd.f32 %v2153, %v2147
    %v2156 = vadd.f32 %v2154, %v2151
    %v2157 = vadd.f32 %v2155, %v2148
    %v2158 = vadd.f32 %v2156, %v2152
    %v2159 = vpack.c.bf16 %v2158, %v2157
    %v2160 = vlaneseq
    %v2161 = vshrl.u32 %v2160, 7
    %v2162 = vsub.s32 0, %v2161
    %v2163 = vrot.slane %v1794, %v2162
    %2164 = vrot.lane.b32.xlu0 %v1713, 32
    %v2165 = vpop.permute.xlu0 %2164
    %2166 = vrot.lane.b32.xlu0 %v1714, 32
    %v2167 = vpop.permute.xlu0 %2166
    %v2171 = vsel %vm260, %v2159, 0
    %2173 = vmatprep.subr.bf16.mxu0 0
    %2174 = vmatpush1.bf16.msra.mxu0 %v2165
    %2175 = vmatprep.subr.bf16.mxu0 0
    %2176 = vmatpush1.bf16.msra.mxu0 %v2167
    %2177 = vmatprep.subr.bf16.mxu0 0
    %2178 = vmatpush1.bf16.msra.mxu0 0
    %2179 = vmatprep.subr.bf16.mxu0 0
    %2180 = vmatpush1.bf16.msra.mxu0 0
    %2181 = vmatprep.subr.bf16.mxu0 0
    %2182 = vmatpush1.bf16.msra.mxu0 0
    %2183 = vmatprep.subr.bf16.mxu0 0
    %2184 = vmatpush1.bf16.msra.mxu0 0
    %2185 = vmatprep.subr.bf16.mxu0 0
    %2186 = vmatpush1.bf16.msra.mxu0 0
    %2187 = vmatprep.subr.bf16.mxu0 0
    %2188 = vmatpush1.bf16.msra.mxu0 0
    %2189 = vmatprep.subr.bf16.mxu0 0
    %2190 = vmatpush1.bf16.msra.mxu0 0
    %2191 = vmatprep.subr.bf16.mxu0 0
    %2192 = vmatpush1.bf16.msra.mxu0 0
    %2193 = vmatprep.subr.bf16.mxu0 0
    %2194 = vmatpush1.bf16.msra.mxu0 0
    %2195 = vmatprep.subr.bf16.mxu0 0
    %2196 = vmatpush1.bf16.msra.mxu0 0
    %2197 = vmatprep.subr.bf16.mxu0 0
    %2198 = vmatpush1.bf16.msra.mxu0 0
    %2199 = vmatprep.subr.bf16.mxu0 0
    %2200 = vmatpush1.bf16.msra.mxu0 0
    %2201 = vmatprep.subr.bf16.mxu0 0
    %2202 = vmatpush1.bf16.msra.mxu0 0
    %2203 = vmatprep.subr.bf16.mxu0 0
    %2204 = vmatpush1.bf16.msra.mxu0 0
    %2205 = vmatprep.mubr.bf16.mxu0 0
    %2206 = vmatmul.mubr.bf16.gmra.mrb[0].mxu0 %v2171
    %v2207 = vpop.f32.mrb[0].mxu0
    %v2208 = vadd.f32 %v2163, %v2207
    %v2209 = vpop.f32.mrb[0].mxu0
    %v2210 = vpop.f32.mrb[0].mxu0
    %v2211 = vadd.f32 %v2163, %v2210
    %v2212 = vpop.f32.mrb[0].mxu0
    %2213 = vdwg.mxu0
    %v2214 = vadd.f32 %v1697, %v2208
    %v2215 = vadd.f32 %v1698, %v2211
    %v2216 = vld [vmem:[#allocation17 + $0xe] sm:$0x1]
    %v2217 = vld [vmem:[#allocation17 + $0xf] sm:$0x1]
    %v2218 = vsel %vm260, %v2214, 0.0
    %2219 = vadd.xlane.f32.xlu0 %v2218
    %v2220 = vpop.xlane.xlu0 %2219
    %v2221 = vsel %vm260, %v2215, 0.0
    %2222 = vadd.xlane.f32.xlu0 %v2221
    %v2223 = vpop.xlane.xlu0 %2222
    %v2224 = vmul.f32 %v2220, %v977
    %v2225 = vmul.f32 %v2223, %v977
    %v2226 = vsub.f32 %v2214, %v2224
    %v2227 = vsub.f32 %v2215, %v2225
    %v2228 = vmul.f32 %v2226, %v2226
    %v2229 = vmul.f32 %v2227, %v2227
    %v2230 = vsel %vm260, %v2228, 0.0
    %2231 = vadd.xlane.f32.xlu0 %v2230
    %v2232 = vpop.xlane.xlu0 %2231
    %v2233 = vsel %vm260, %v2229, 0.0
    %2234 = vadd.xlane.f32.xlu0 %v2233
    %v2235 = vpop.xlane.xlu0 %2234
    %v2236 = vmul.f32 %v2232, %v977
    %v2237 = vmul.f32 %v2235, %v977
    %v2238 = vadd.f32 %v2236, 1e-05
    %v2239 = vadd.f32 %v2237, 1e-05
    %v2240 = vrsqrt.pop %v2238
    %v2241 = vrsqrt.pop %v2239
    %v2242 = vmul.f32 %v2226, %v2240
    %v2243 = vmul.f32 %v2227, %v2241
    %v2244 = vlaneseq
    %v2245 = vshrl.u32 %v2244, 7
    %v2246 = vsub.s32 0, %v2245
    %v2247 = vrot.slane %v2216, %v2246
    %v2248 = vmul.f32 %v2242, %v2247
    %v2249 = vmul.f32 %v2243, %v2247
    %v2250 = vlaneseq
    %v2251 = vshrl.u32 %v2250, 7
    %v2252 = vsub.s32 0, %v2251
    %v2253 = vrot.slane %v2217, %v2252
    %v2254 = vadd.f32 %v2248, %v2253
    %v2255 = vadd.f32 %v2249, %v2253
    %v2256 = vpack.c.bf16 %v2255, %v2254
    %v2257 = vunpack.c.h.b16 %v1700
    %v2258 = vunpack.c.h.b16 %v1701
    %v2259 = vunpack.c.h.b16 %v1702
    %v2260 = vunpack.c.h.b16 %v1703
    %v2261 = vpack.c.b16 %v2258, %v2257
    %v2262 = vpack.c.b16 %v2260, %v2259
    %2265 = vrot.lane.b32.xlu0 %v301, 96
    %v2266 = vpop.permute.xlu0 %2265
    %2267 = vrot.lane.b32.xlu0 %v305, 96
    %v2268 = vpop.permute.xlu0 %2267
    %v2272 = vsel %vm260, %v2256, 0
    %2274 = vmatprep.subr.bf16.mxu0 0
    %2275 = vmatpush1.bf16.msra.mxu0 %v2261
    %2276 = vmatprep.subr.bf16.mxu0 0
    %2277 = vmatpush1.bf16.msra.mxu0 %v2262
    %2278 = vmatprep.subr.bf16.mxu0 0
    %2279 = vmatpush1.bf16.msra.mxu0 0
    %2280 = vmatprep.subr.bf16.mxu0 0
    %2281 = vmatpush1.bf16.msra.mxu0 0
    %2282 = vmatprep.subr.bf16.mxu0 0
    %2283 = vmatpush1.bf16.msra.mxu0 0
    %2284 = vmatprep.subr.bf16.mxu0 0
    %2285 = vmatpush1.bf16.msra.mxu0 0
    %2286 = vmatprep.subr.bf16.mxu0 0
    %2287 = vmatpush1.bf16.msra.mxu0 0
    %2288 = vmatprep.subr.bf16.mxu0 0
    %2289 = vmatpush1.bf16.msra.mxu0 0
    %2290 = vmatprep.subr.bf16.mxu0 0
    %2291 = vmatpush1.bf16.msra.mxu0 0
    %2292 = vmatprep.subr.bf16.mxu0 0
    %2293 = vmatpush1.bf16.msra.mxu0 0
    %2294 = vmatprep.subr.bf16.mxu0 0
    %2295 = vmatpush1.bf16.msra.mxu0 0
    %2296 = vmatprep.subr.bf16.mxu0 0
    %2297 = vmatpush1.bf16.msra.mxu0 0
    %2298 = vmatprep.subr.bf16.mxu0 0
    %2299 = vmatpush1.bf16.msra.mxu0 0
    %2300 = vmatprep.subr.bf16.mxu0 0
    %2301 = vmatpush1.bf16.msra.mxu0 0
    %2302 = vmatprep.subr.bf16.mxu0 0
    %2303 = vmatpush1.bf16.msra.mxu0 0
    %2304 = vmatprep.subr.bf16.mxu0 0
    %2305 = vmatpush1.bf16.msra.mxu0 0
    %2306 = vmatprep.mubr.bf16.mxu0 0
    %2307 = vmatmul.mubr.bf16.gmra.mrb[0].mxu0 %v2272
    %v2308 = vpop.f32.mrb[0].mxu0
    %v2309 = vadd.f32 %v2266, %v2308
    %v2310 = vpop.f32.mrb[0].mxu0
    %v2311 = vpop.f32.mrb[0].mxu0
    %v2312 = vadd.f32 %v2268, %v2311
    %v2313 = vpop.f32.mrb[0].mxu0
    %2314 = vdwg.mxu0
    %v2315 = vld [vmem:[#allocation17 + $0xc] sm:$0x1]
    %v2316 = vmul.f32 %v2309, 0.35355338
    %v2317 = vmul.f32 %v2312, 0.35355338
    %v2318 = vmul.f32 %v2316, %v220
    %v2319 = vmul.f32 %v2316, %v221
    %v2320 = vmul.f32 %v2316, %v222
    %v2321 = vmul.f32 %v2316, %v223
    %v2322 = vmul.f32 %v2317, %v220
    %v2323 = vmul.f32 %v2317, %v221
    %v2324 = vmul.f32 %v2317, %v222
    %v2325 = vmul.f32 %v2317, %v223
    %v2326 = vpack.c.bf16 %v2319, %v2318
    %v2327 = vpack.c.bf16 %v2321, %v2320
    %v2328 = vpack.c.bf16 %v2323, %v2322
    %v2329 = vpack.c.bf16 %v2325, %v2324
    %2331 = vrot.lane.b32.xlu0 %v385, 96
    %v2332 = vpop.permute.xlu0 %2331
    %v2334 = vsel %vm260, %v2326, 0
    %v2337 = vsel %vm260, %v2327, 0
    %v2340 = vsel %vm260, %v2332, 0
    %2342 = vmatprep.subr.bf16.mxu0 0
    %2343 = vmatpush1.bf16.xpose.msra.mxu0 %v2340
    %2344 = vmatprep.subr.bf16.mxu0 0
    %2345 = vmatpush1.bf16.xpose.msra.mxu0 0
    %2346 = vmatprep.subr.bf16.mxu0 0
    %2347 = vmatpush1.bf16.xpose.msra.mxu0 0
    %2348 = vmatprep.subr.bf16.mxu0 0
    %2349 = vmatpush1.bf16.xpose.msra.mxu0 0
    %2350 = vmatprep.subr.bf16.mxu0 0
    %2351 = vmatpush1.bf16.xpose.msra.mxu0 0
    %2352 = vmatprep.subr.bf16.mxu0 0
    %2353 = vmatpush1.bf16.xpose.msra.mxu0 0
    %2354 = vmatprep.subr.bf16.mxu0 0
    %2355 = vmatpush1.bf16.xpose.msra.mxu0 0
    %2356 = vmatprep.subr.bf16.mxu0 0
    %2357 = vmatpush1.bf16.xpose.msra.mxu0 0
    %2358 = vmatprep.subr.bf16.mxu0 0
    %2359 = vmatpush1.bf16.xpose.msra.mxu0 0
    %2360 = vmatprep.subr.bf16.mxu0 0
    %2361 = vmatpush1.bf16.xpose.msra.mxu0 0
    %2362 = vmatprep.subr.bf16.mxu0 0
    %2363 = vmatpush1.bf16.xpose.msra.mxu0 0
    %2364 = vmatprep.subr.bf16.mxu0 0
    %2365 = vmatpush1.bf16.xpose.msra.mxu0 0
    %2366 = vmatprep.subr.bf16.mxu0 0
    %2367 = vmatpush1.bf16.xpose.msra.mxu0 0
    %2368 = vmatprep.subr.bf16.mxu0 0
    %2369 = vmatpush1.bf16.xpose.msra.mxu0 0
    %2370 = vmatprep.subr.bf16.mxu0 0
    %2371 = vmatpush1.bf16.xpose.msra.mxu0 0
    %2372 = vmatprep.subr.bf16.mxu0 0
    %2373 = vmatpush1.bf16.xpose.msra.mxu0 0
    %2374 = vmatprep.mubr.bf16.mxu0 0
    %2375 = vmatmul.mubr.bf16.gmra.mrb[0].mxu0 %v2334
    %v2376 = vpop.f32.mrb[0].mxu0
    %v2377 = vadd.f32 0.0, %v2376
    %v2378 = vpop.f32.mrb[0].mxu0
    %v2379 = vpop.f32.mrb[0].mxu0
    %v2380 = vadd.f32 0.0, %v2379
    %v2381 = vpop.f32.mrb[0].mxu0
    %2382 = vmatprep.mubr.bf16.mxu0 0
    %2383 = vmatmul.mubr.bf16.gmra.mrb[0].mxu0 %v2337
    %v2384 = vpop.f32.mrb[0].mxu0
    %v2385 = vadd.f32 0.0, %v2384
    %v2386 = vpop.f32.mrb[0].mxu0
    %v2387 = vpop.f32.mrb[0].mxu0
    %v2388 = vadd.f32 0.0, %v2387
    %v2389 = vpop.f32.mrb[0].mxu0
    %2390 = vdwg.mxu0
    %2392 = vrot.lane.b32.xlu0 %v386, 96
    %v2393 = vpop.permute.xlu0 %2392
    %v2395 = vsel %vm260, %v2328, 0
    %v2398 = vsel %vm260, %v2329, 0
    %v2401 = vsel %vm260, %v2393, 0
    %2403 = vmatprep.subr.bf16.mxu0 0
    %2404 = vmatpush1.bf16.xpose.msra.mxu0 %v2401
    %2405 = vmatprep.subr.bf16.mxu0 0
    %2406 = vmatpush1.bf16.xpose.msra.mxu0 0
    %2407 = vmatprep.subr.bf16.mxu0 0
    %2408 = vmatpush1.bf16.xpose.msra.mxu0 0
    %2409 = vmatprep.subr.bf16.mxu0 0
    %2410 = vmatpush1.bf16.xpose.msra.mxu0 0
    %2411 = vmatprep.subr.bf16.mxu0 0
    %2412 = vmatpush1.bf16.xpose.msra.mxu0 0
    %2413 = vmatprep.subr.bf16.mxu0 0
    %2414 = vmatpush1.bf16.xpose.msra.mxu0 0
    %2415 = vmatprep.subr.bf16.mxu0 0
    %2416 = vmatpush1.bf16.xpose.msra.mxu0 0
    %2417 = vmatprep.subr.bf16.mxu0 0
    %2418 = vmatpush1.bf16.xpose.msra.mxu0 0
    %2419 = vmatprep.subr.bf16.mxu0 0
    %2420 = vmatpush1.bf16.xpose.msra.mxu0 0
    %2421 = vmatprep.subr.bf16.mxu0 0
    %2422 = vmatpush1.bf16.xpose.msra.mxu0 0
    %2423 = vmatprep.subr.bf16.mxu0 0
    %2424 = vmatpush1.bf16.xpose.msra.mxu0 0
    %2425 = vmatprep.subr.bf16.mxu0 0
    %2426 = vmatpush1.bf16.xpose.msra.mxu0 0
    %2427 = vmatprep.subr.bf16.mxu0 0
    %2428 = vmatpush1.bf16.xpose.msra.mxu0 0
    %2429 = vmatprep.subr.bf16.mxu0 0
    %2430 = vmatpush1.bf16.xpose.msra.mxu0 0
    %2431 = vmatprep.subr.bf16.mxu0 0
    %2432 = vmatpush1.bf16.xpose.msra.mxu0 0
    %2433 = vmatprep.subr.bf16.mxu0 0
    %2434 = vmatpush1.bf16.xpose.msra.mxu0 0
    %2435 = vmatprep.mubr.bf16.mxu0 0
    %2436 = vmatmul.mubr.bf16.gmra.mrb[0].mxu0 %v2395
    %v2437 = vpop.f32.mrb[0].mxu0
    %v2438 = vadd.f32 0.0, %v2437
    %v2439 = vpop.f32.mrb[0].mxu0
    %v2440 = vpop.f32.mrb[0].mxu0
    %v2441 = vadd.f32 0.0, %v2440
    %v2442 = vpop.f32.mrb[0].mxu0
    %2443 = vmatprep.mubr.bf16.mxu0 0
    %2444 = vmatmul.mubr.bf16.gmra.mrb[0].mxu0 %v2398
    %v2445 = vpop.f32.mrb[0].mxu0
    %v2446 = vadd.f32 0.0, %v2445
    %v2447 = vpop.f32.mrb[0].mxu0
    %v2448 = vpop.f32.mrb[0].mxu0
    %v2449 = vadd.f32 0.0, %v2448
    %v2450 = vpop.f32.mrb[0].mxu0
    %2451 = vdwg.mxu0
    %v2452 = vsel %vm1202, %v2377, -inf
    %2453 = vmax.xlane.f32.xlu0 %v2452
    %v2454 = vpop.xlane.xlu0 %2453
    %v2455 = vsel %vm1202, %v2380, -inf
    %2456 = vmax.xlane.f32.xlu0 %v2455
    %v2457 = vpop.xlane.xlu0 %2456
    %v2458 = vsel %vm1202, %v2385, -inf
    %2459 = vmax.xlane.f32.xlu0 %v2458
    %v2460 = vpop.xlane.xlu0 %2459
    %v2461 = vsel %vm1202, %v2388, -inf
    %2462 = vmax.xlane.f32.xlu0 %v2461
    %v2463 = vpop.xlane.xlu0 %2462
    %v2464 = vsel %vm1202, %v2438, -inf
    %2465 = vmax.xlane.f32.xlu0 %v2464
    %v2466 = vpop.xlane.xlu0 %2465
    %v2467 = vsel %vm1202, %v2441, -inf
    %2468 = vmax.xlane.f32.xlu0 %v2467
    %v2469 = vpop.xlane.xlu0 %2468
    %v2470 = vsel %vm1202, %v2446, -inf
    %2471 = vmax.xlane.f32.xlu0 %v2470
    %v2472 = vpop.xlane.xlu0 %2471
    %v2473 = vsel %vm1202, %v2449, -inf
    %2474 = vmax.xlane.f32.xlu0 %v2473
    %v2475 = vpop.xlane.xlu0 %2474
    %v2476 = vsub.f32 %v2377, %v2454
    %v2477 = vsub.f32 %v2380, %v2457
    %v2478 = vsub.f32 %v2385, %v2460
    %v2479 = vsub.f32 %v2388, %v2463
    %v2480 = vsub.f32 %v2438, %v2466
    %v2481 = vsub.f32 %v2441, %v2469
    %v2482 = vsub.f32 %v2446, %v2472
    %v2483 = vsub.f32 %v2449, %v2475
    %v2484 = vmul.f32 %v2476, 1.442695
    %v2485 = vpow.pop %v2484
    %v2486 = vmul.f32 %v2477, 1.442695
    %v2487 = vpow.pop %v2486
    %v2488 = vmul.f32 %v2478, 1.442695
    %v2489 = vpow.pop %v2488
    %v2490 = vmul.f32 %v2479, 1.442695
    %v2491 = vpow.pop %v2490
    %v2492 = vmul.f32 %v2480, 1.442695
    %v2493 = vpow.pop %v2492
    %v2494 = vmul.f32 %v2481, 1.442695
    %v2495 = vpow.pop %v2494
    %v2496 = vmul.f32 %v2482, 1.442695
    %v2497 = vpow.pop %v2496
    %v2498 = vmul.f32 %v2483, 1.442695
    %v2499 = vpow.pop %v2498
    %v2500 = vsel %vm1202, %v2485, 0.0
    %2501 = vadd.xlane.f32.xlu0 %v2500
    %v2502 = vpop.xlane.xlu0 %2501
    %v2503 = vsel %vm1202, %v2487, 0.0
    %2504 = vadd.xlane.f32.xlu0 %v2503
    %v2505 = vpop.xlane.xlu0 %2504
    %v2506 = vsel %vm1202, %v2489, 0.0
    %2507 = vadd.xlane.f32.xlu0 %v2506
    %v2508 = vpop.xlane.xlu0 %2507
    %v2509 = vsel %vm1202, %v2491, 0.0
    %2510 = vadd.xlane.f32.xlu0 %v2509
    %v2511 = vpop.xlane.xlu0 %2510
    %v2512 = vsel %vm1202, %v2493, 0.0
    %2513 = vadd.xlane.f32.xlu0 %v2512
    %v2514 = vpop.xlane.xlu0 %2513
    %v2515 = vsel %vm1202, %v2495, 0.0
    %2516 = vadd.xlane.f32.xlu0 %v2515
    %v2517 = vpop.xlane.xlu0 %2516
    %v2518 = vsel %vm1202, %v2497, 0.0
    %2519 = vadd.xlane.f32.xlu0 %v2518
    %v2520 = vpop.xlane.xlu0 %2519
    %v2521 = vsel %vm1202, %v2499, 0.0
    %2522 = vadd.xlane.f32.xlu0 %v2521
    %v2523 = vpop.xlane.xlu0 %2522
    %v2524 = vrcp.pop %v2502
    %v2525 = vrcp.pop %v2505
    %v2526 = vrcp.pop %v2508
    %v2527 = vrcp.pop %v2511
    %v2528 = vrcp.pop %v2514
    %v2529 = vrcp.pop %v2517
    %v2530 = vrcp.pop %v2520
    %v2531 = vrcp.pop %v2523
    %v2532 = vmul.f32 %v2485, %v2524
    %v2533 = vmul.f32 %v2487, %v2525
    %v2534 = vmul.f32 %v2489, %v2526
    %v2535 = vmul.f32 %v2491, %v2527
    %v2536 = vmul.f32 %v2493, %v2528
    %v2537 = vmul.f32 %v2495, %v2529
    %v2538 = vmul.f32 %v2497, %v2530
    %v2539 = vmul.f32 %v2499, %v2531
    %v2540 = vpack.c.bf16 %v2533, %v2532
    %v2541 = vpack.c.bf16 %v2535, %v2534
    %v2542 = vpack.c.bf16 %v2537, %v2536
    %v2543 = vpack.c.bf16 %v2539, %v2538
    %2545 = vrot.lane.b32.xlu0 %v465, 96
    %v2546 = vpop.permute.xlu0 %2545
    %v2549 = vsel %vm1202, %v2540, 0
    %v2552 = vsel %vm1202, %v2541, 0
    %2554 = vmatprep.subr.bf16.mxu0 0
    %2555 = vmatpush1.bf16.msra.mxu0 %v2546
    %2556 = vmatprep.subr.bf16.mxu0 0
    %2557 = vmatpush1.bf16.msra.mxu0 0
    %2558 = vmatprep.subr.bf16.mxu0 0
    %2559 = vmatpush1.bf16.msra.mxu0 0
    %2560 = vmatprep.subr.bf16.mxu0 0
    %2561 = vmatpush1.bf16.msra.mxu0 0
    %2562 = vmatprep.subr.bf16.mxu0 0
    %2563 = vmatpush1.bf16.msra.mxu0 0
    %2564 = vmatprep.subr.bf16.mxu0 0
    %2565 = vmatpush1.bf16.msra.mxu0 0
    %2566 = vmatprep.subr.bf16.mxu0 0
    %2567 = vmatpush1.bf16.msra.mxu0 0
    %2568 = vmatprep.subr.bf16.mxu0 0
    %2569 = vmatpush1.bf16.msra.mxu0 0
    %2570 = vmatprep.subr.bf16.mxu0 0
    %2571 = vmatpush1.bf16.msra.mxu0 0
    %2572 = vmatprep.subr.bf16.mxu0 0
    %2573 = vmatpush1.bf16.msra.mxu0 0
    %2574 = vmatprep.subr.bf16.mxu0 0
    %2575 = vmatpush1.bf16.msra.mxu0 0
    %2576 = vmatprep.subr.bf16.mxu0 0
    %2577 = vmatpush1.bf16.msra.mxu0 0
    %2578 = vmatprep.subr.bf16.mxu0 0
    %2579 = vmatpush1.bf16.msra.mxu0 0
    %2580 = vmatprep.subr.bf16.mxu0 0
    %2581 = vmatpush1.bf16.msra.mxu0 0
    %2582 = vmatprep.subr.bf16.mxu0 0
    %2583 = vmatpush1.bf16.msra.mxu0 0
    %2584 = vmatprep.subr.bf16.mxu0 0
    %2585 = vmatpush1.bf16.msra.mxu0 0
    %2586 = vmatprep.mubr.bf16.mxu0 0
    %2587 = vmatmul.mubr.bf16.gmra.mrb[0].mxu0 %v2549
    %v2588 = vpop.f32.mrb[0].mxu0
    %v2589 = vadd.f32 0.0, %v2588
    %v2590 = vpop.f32.mrb[0].mxu0
    %v2591 = vpop.f32.mrb[0].mxu0
    %v2592 = vadd.f32 0.0, %v2591
    %v2593 = vpop.f32.mrb[0].mxu0
    %2594 = vmatprep.mubr.bf16.mxu0 0
    %2595 = vmatmul.mubr.bf16.gmra.mrb[0].mxu0 %v2552
    %v2596 = vpop.f32.mrb[0].mxu0
    %v2597 = vadd.f32 0.0, %v2596
    %v2598 = vpop.f32.mrb[0].mxu0
    %v2599 = vpop.f32.mrb[0].mxu0
    %v2600 = vadd.f32 0.0, %v2599
    %v2601 = vpop.f32.mrb[0].mxu0
    %2602 = vdwg.mxu0
    %2604 = vrot.lane.b32.xlu0 %v466, 96
    %v2605 = vpop.permute.xlu0 %2604
    %v2608 = vsel %vm1202, %v2542, 0
    %v2611 = vsel %vm1202, %v2543, 0
    %2613 = vmatprep.subr.bf16.mxu0 0
    %2614 = vmatpush1.bf16.msra.mxu0 %v2605
    %2615 = vmatprep.subr.bf16.mxu0 0
    %2616 = vmatpush1.bf16.msra.mxu0 0
    %2617 = vmatprep.subr.bf16.mxu0 0
    %2618 = vmatpush1.bf16.msra.mxu0 0
    %2619 = vmatprep.subr.bf16.mxu0 0
    %2620 = vmatpush1.bf16.msra.mxu0 0
    %2621 = vmatprep.subr.bf16.mxu0 0
    %2622 = vmatpush1.bf16.msra.mxu0 0
    %2623 = vmatprep.subr.bf16.mxu0 0
    %2624 = vmatpush1.bf16.msra.mxu0 0
    %2625 = vmatprep.subr.bf16.mxu0 0
    %2626 = vmatpush1.bf16.msra.mxu0 0
    %2627 = vmatprep.subr.bf16.mxu0 0
    %2628 = vmatpush1.bf16.msra.mxu0 0
    %2629 = vmatprep.subr.bf16.mxu0 0
    %2630 = vmatpush1.bf16.msra.mxu0 0
    %2631 = vmatprep.subr.bf16.mxu0 0
    %2632 = vmatpush1.bf16.msra.mxu0 0
    %2633 = vmatprep.subr.bf16.mxu0 0
    %2634 = vmatpush1.bf16.msra.mxu0 0
    %2635 = vmatprep.subr.bf16.mxu0 0
    %2636 = vmatpush1.bf16.msra.mxu0 0
    %2637 = vmatprep.subr.bf16.mxu0 0
    %2638 = vmatpush1.bf16.msra.mxu0 0
    %2639 = vmatprep.subr.bf16.mxu0 0
    %2640 = vmatpush1.bf16.msra.mxu0 0
    %2641 = vmatprep.subr.bf16.mxu0 0
    %2642 = vmatpush1.bf16.msra.mxu0 0
    %2643 = vmatprep.subr.bf16.mxu0 0
    %2644 = vmatpush1.bf16.msra.mxu0 0
    %2645 = vmatprep.mubr.bf16.mxu0 0
    %2646 = vmatmul.mubr.bf16.gmra.mrb[0].mxu0 %v2608
    %v2647 = vpop.f32.mrb[0].mxu0
    %v2648 = vadd.f32 0.0, %v2647
    %v2649 = vpop.f32.mrb[0].mxu0
    %v2650 = vpop.f32.mrb[0].mxu0
    %v2651 = vadd.f32 0.0, %v2650
    %v2652 = vpop.f32.mrb[0].mxu0
    %2653 = vmatprep.mubr.bf16.mxu0 0
    %2654 = vmatmul.mubr.bf16.gmra.mrb[0].mxu0 %v2611
    %v2655 = vpop.f32.mrb[0].mxu0
    %v2656 = vadd.f32 0.0, %v2655
    %v2657 = vpop.f32.mrb[0].mxu0
    %v2658 = vpop.f32.mrb[0].mxu0
    %v2659 = vadd.f32 0.0, %v2658
    %v2660 = vpop.f32.mrb[0].mxu0
    %2661 = vdwg.mxu0
    %v2662 = vmul.f32 %v2589, %v220
    %v2663 = vmul.f32 %v2592, %v221
    %v2664 = vmul.f32 %v2597, %v222
    %v2665 = vmul.f32 %v2600, %v223
    %v2666 = vmul.f32 %v2648, %v220
    %v2667 = vmul.f32 %v2651, %v221
    %v2668 = vmul.f32 %v2656, %v222
    %v2669 = vmul.f32 %v2659, %v223
    %v2670 = vadd.f32 %v2662, %v2663
    %v2671 = vadd.f32 %v2666, %v2667
    %v2672 = vadd.f32 %v2670, %v2664
    %v2673 = vadd.f32 %v2671, %v2668
    %v2674 = vadd.f32 %v2672, %v2665
    %v2675 = vadd.f32 %v2673, %v2669
    %v2676 = vpack.c.bf16 %v2675, %v2674
    %v2677 = vlaneseq
    %v2678 = vshrl.u32 %v2677, 7
    %v2679 = vsub.s32 0, %v2678
    %v2680 = vrot.slane %v2315, %v2679
    %2681 = vrot.lane.b32.xlu0 %v2261, 96
    %v2682 = vpop.permute.xlu0 %2681
    %2683 = vrot.lane.b32.xlu0 %v2262, 96
    %v2684 = vpop.permute.xlu0 %2683
    %v2688 = vsel %vm260, %v2676, 0
    %2690 = vmatprep.subr.bf16.mxu0 0
    %2691 = vmatpush1.bf16.msra.mxu0 %v2682
    %2692 = vmatprep.subr.bf16.mxu0 0
    %2693 = vmatpush1.bf16.msra.mxu0 %v2684
    %2694 = vmatprep.subr.bf16.mxu0 0
    %2695 = vmatpush1.bf16.msra.mxu0 0
    %2696 = vmatprep.subr.bf16.mxu0 0
    %2697 = vmatpush1.bf16.msra.mxu0 0
    %2698 = vmatprep.subr.bf16.mxu0 0
    %2699 = vmatpush1.bf16.msra.mxu0 0
    %2700 = vmatprep.subr.bf16.mxu0 0
    %2701 = vmatpush1.bf16.msra.mxu0 0
    %2702 = vmatprep.subr.bf16.mxu0 0
    %2703 = vmatpush1.bf16.msra.mxu0 0
    %2704 = vmatprep.subr.bf16.mxu0 0
    %2705 = vmatpush1.bf16.msra.mxu0 0
    %2706 = vmatprep.subr.bf16.mxu0 0
    %2707 = vmatpush1.bf16.msra.mxu0 0
    %2708 = vmatprep.subr.bf16.mxu0 0
    %2709 = vmatpush1.bf16.msra.mxu0 0
    %2710 = vmatprep.subr.bf16.mxu0 0
    %2711 = vmatpush1.bf16.msra.mxu0 0
    %2712 = vmatprep.subr.bf16.mxu0 0
    %2713 = vmatpush1.bf16.msra.mxu0 0
    %2714 = vmatprep.subr.bf16.mxu0 0
    %2715 = vmatpush1.bf16.msra.mxu0 0
    %2716 = vmatprep.subr.bf16.mxu0 0
    %2717 = vmatpush1.bf16.msra.mxu0 0
    %2718 = vmatprep.subr.bf16.mxu0 0
    %2719 = vmatpush1.bf16.msra.mxu0 0
    %2720 = vmatprep.subr.bf16.mxu0 0
    %2721 = vmatpush1.bf16.msra.mxu0 0
    %2722 = vmatprep.mubr.bf16.mxu0 0
    %2723 = vmatmul.mubr.bf16.gmra.mrb[0].mxu0 %v2688
    %v2724 = vpop.f32.mrb[0].mxu0
    %v2725 = vadd.f32 %v2680, %v2724
    %v2726 = vpop.f32.mrb[0].mxu0
    %v2727 = vpop.f32.mrb[0].mxu0
    %v2728 = vadd.f32 %v2680, %v2727
    %v2729 = vpop.f32.mrb[0].mxu0
    %2730 = vdwg.mxu0
    %v2731 = vadd.f32 %v2254, %v2725
    %v2732 = vadd.f32 %v2255, %v2728
    %v2733 = vld [vmem:[#allocation17 + $0x10] sm:$0x1]
    %v2734 = vld [vmem:[#allocation17 + $0x11] sm:$0x1]
    %v2735 = vsel %vm260, %v2731, 0.0
    %2736 = vadd.xlane.f32.xlu0 %v2735
    %v2737 = vpop.xlane.xlu0 %2736
    %v2738 = vsel %vm260, %v2732, 0.0
    %2739 = vadd.xlane.f32.xlu0 %v2738
    %v2740 = vpop.xlane.xlu0 %2739
    %v2741 = vmul.f32 %v2737, %v977
    %v2742 = vmul.f32 %v2740, %v977
    %v2743 = vsub.f32 %v2731, %v2741
    %v2744 = vsub.f32 %v2732, %v2742
    %v2745 = vmul.f32 %v2743, %v2743
    %v2746 = vmul.f32 %v2744, %v2744
    %v2747 = vsel %vm260, %v2745, 0.0
    %2748 = vadd.xlane.f32.xlu0 %v2747
    %v2749 = vpop.xlane.xlu0 %2748
    %v2750 = vsel %vm260, %v2746, 0.0
    %2751 = vadd.xlane.f32.xlu0 %v2750
    %v2752 = vpop.xlane.xlu0 %2751
    %v2753 = vmul.f32 %v2749, %v977
    %v2754 = vmul.f32 %v2752, %v977
    %v2755 = vadd.f32 %v2753, 1e-05
    %v2756 = vadd.f32 %v2754, 1e-05
    %v2757 = vrsqrt.pop %v2755
    %v2758 = vrsqrt.pop %v2756
    %v2759 = vmul.f32 %v2743, %v2757
    %v2760 = vmul.f32 %v2744, %v2758
    %v2761 = vlaneseq
    %v2762 = vshrl.u32 %v2761, 7
    %v2763 = vsub.s32 0, %v2762
    %v2764 = vrot.slane %v2733, %v2763
    %v2765 = vmul.f32 %v2759, %v2764
    %v2766 = vmul.f32 %v2760, %v2764
    %v2767 = vlaneseq
    %v2768 = vshrl.u32 %v2767, 7
    %v2769 = vsub.s32 0, %v2768
    %v2770 = vrot.slane %v2734, %v2769
    %v2771 = vadd.f32 %v2765, %v2770
    %v2772 = vadd.f32 %v2766, %v2770
    %v2773 = vpack.c.bf16 %v2772, %v2771
    %v2774 = vld [vmem:[#allocation19 + $0x1] sm:$0x1]
    %v2775 = vlaneseq
    %v2776 = vshrl.u32 %v2775, 7
    %v2777 = vsub.s32 0, %v2776
    %v2778 = vrot.slane %v2774, %v2777
    %2779 = vrot.lane.b32.xlu0 %v2261, 64
    %v2780 = vpop.permute.xlu0 %2779
    %2781 = vrot.lane.b32.xlu0 %v2262, 64
    %v2782 = vpop.permute.xlu0 %2781
    %v2786 = vsel %vm260, %v2773, 0
    %2788 = vmatprep.subr.bf16.mxu0 0
    %2789 = vmatpush1.bf16.msra.mxu0 %v2780
    %2790 = vmatprep.subr.bf16.mxu0 0
    %2791 = vmatpush1.bf16.msra.mxu0 %v2782
    %2792 = vmatprep.subr.bf16.mxu0 0
    %2793 = vmatpush1.bf16.msra.mxu0 0
    %2794 = vmatprep.subr.bf16.mxu0 0
    %2795 = vmatpush1.bf16.msra.mxu0 0
    %2796 = vmatprep.subr.bf16.mxu0 0
    %2797 = vmatpush1.bf16.msra.mxu0 0
    %2798 = vmatprep.subr.bf16.mxu0 0
    %2799 = vmatpush1.bf16.msra.mxu0 0
    %2800 = vmatprep.subr.bf16.mxu0 0
    %2801 = vmatpush1.bf16.msra.mxu0 0
    %2802 = vmatprep.subr.bf16.mxu0 0
    %2803 = vmatpush1.bf16.msra.mxu0 0
    %2804 = vmatprep.subr.bf16.mxu0 0
    %2805 = vmatpush1.bf16.msra.mxu0 0
    %2806 = vmatprep.subr.bf16.mxu0 0
    %2807 = vmatpush1.bf16.msra.mxu0 0
    %2808 = vmatprep.subr.bf16.mxu0 0
    %2809 = vmatpush1.bf16.msra.mxu0 0
    %2810 = vmatprep.subr.bf16.mxu0 0
    %2811 = vmatpush1.bf16.msra.mxu0 0
    %2812 = vmatprep.subr.bf16.mxu0 0
    %2813 = vmatpush1.bf16.msra.mxu0 0
    %2814 = vmatprep.subr.bf16.mxu0 0
    %2815 = vmatpush1.bf16.msra.mxu0 0
    %2816 = vmatprep.subr.bf16.mxu0 0
    %2817 = vmatpush1.bf16.msra.mxu0 0
    %2818 = vmatprep.subr.bf16.mxu0 0
    %2819 = vmatpush1.bf16.msra.mxu0 0
    %2820 = vmatprep.mubr.bf16.mxu0 0
    %2821 = vmatmul.mubr.bf16.gmra.mrb[0].mxu0 %v2786
    %v2822 = vpop.f32.mrb[0].mxu0
    %v2823 = vadd.f32 %v2778, %v2822
    %v2824 = vpop.f32.mrb[0].mxu0
    %v2825 = vpop.f32.mrb[0].mxu0
    %v2826 = vadd.f32 %v2778, %v2825
    %v2827 = vpop.f32.mrb[0].mxu0
    %2828 = vdwg.mxu0
    %v2829 = vmax.f32 %v2823, 0.0
    %v2830 = vmax.f32 %v2826, 0.0
    %v2831 = vpack.c.bf16 %v2830, %v2829
    %s2832 = scalar_lea.vmem %s5, 32
    %v2833 = vld [vmem:[%s2832] sm:$0xf]
    %v2834 = vld [vmem:[%s2832 + $0x4] sm:$0xf]
    %v2835 = vld [vmem:[%s2832 + $0x8] sm:$0xf]
    %v2836 = vld [vmem:[%s2832 + $0xc] sm:$0xf]
    %v2837 = vld [vmem:[%s2832 + $0x10] sm:$0xf]
    %v2838 = vld [vmem:[%s2832 + $0x14] sm:$0xf]
    %v2839 = vld [vmem:[%s2832 + $0x18] sm:$0xf]
    %v2840 = vld [vmem:[%s2832 + $0x1c] sm:$0xf]
    %v2841 = vld [vmem:[#allocation17 + $0xd] sm:$0x1]
    %v2842 = vlaneseq
    %v2843 = vshrl.u32 %v2842, 7
    %v2844 = vsub.s32 0, %v2843
    %v2845 = vrot.slane %v2841, %v2844
    %v2854 = vunpack.c.l.b16 %v2833
    %v2855 = vunpack.c.l.b16 %v2834
    %v2856 = vunpack.c.l.b16 %v2835
    %v2857 = vunpack.c.l.b16 %v2836
    %v2858 = vunpack.c.l.b16 %v2837
    %v2859 = vunpack.c.l.b16 %v2838
    %v2860 = vunpack.c.l.b16 %v2839
    %v2861 = vunpack.c.l.b16 %v2840
    %v2862 = vpack.c.b16 %v2855, %v2854
    %v2863 = vpack.c.b16 %v2857, %v2856
    %v2864 = vpack.c.b16 %v2859, %v2858
    %v2865 = vpack.c.b16 %v2861, %v2860
    %v2871 = vsel %vm1612, %v2831, 0
    %2873 = vmatprep.subr.bf16.mxu0 0
    %2874 = vmatpush1.bf16.msra.mxu0 %v2862
    %2875 = vmatprep.subr.bf16.mxu0 0
    %2876 = vmatpush1.bf16.msra.mxu0 %v2863
    %2877 = vmatprep.subr.bf16.mxu0 0
    %2878 = vmatpush1.bf16.msra.mxu0 %v2864
    %2879 = vmatprep.subr.bf16.mxu0 0
    %2880 = vmatpush1.bf16.msra.mxu0 %v2865
    %2881 = vmatprep.subr.bf16.mxu0 0
    %2882 = vmatpush1.bf16.msra.mxu0 0
    %2883 = vmatprep.subr.bf16.mxu0 0
    %2884 = vmatpush1.bf16.msra.mxu0 0
    %2885 = vmatprep.subr.bf16.mxu0 0
    %2886 = vmatpush1.bf16.msra.mxu0 0
    %2887 = vmatprep.subr.bf16.mxu0 0
    %2888 = vmatpush1.bf16.msra.mxu0 0
    %2889 = vmatprep.subr.bf16.mxu0 0
    %2890 = vmatpush1.bf16.msra.mxu0 0
    %2891 = vmatprep.subr.bf16.mxu0 0
    %2892 = vmatpush1.bf16.msra.mxu0 0
    %2893 = vmatprep.subr.bf16.mxu0 0
    %2894 = vmatpush1.bf16.msra.mxu0 0
    %2895 = vmatprep.subr.bf16.mxu0 0
    %2896 = vmatpush1.bf16.msra.mxu0 0
    %2897 = vmatprep.subr.bf16.mxu0 0
    %2898 = vmatpush1.bf16.msra.mxu0 0
    %2899 = vmatprep.subr.bf16.mxu0 0
    %2900 = vmatpush1.bf16.msra.mxu0 0
    %2901 = vmatprep.subr.bf16.mxu0 0
    %2902 = vmatpush1.bf16.msra.mxu0 0
    %2903 = vmatprep.subr.bf16.mxu0 0
    %2904 = vmatpush1.bf16.msra.mxu0 0
    %2905 = vmatprep.mubr.bf16.mxu0 0
    %2906 = vmatmul.mubr.bf16.gmra.mrb[0].mxu0 %v2871
    %v2907 = vpop.f32.mrb[0].mxu0
    %v2908 = vadd.f32 %v2845, %v2907
    %v2909 = vpop.f32.mrb[0].mxu0
    %v2910 = vpop.f32.mrb[0].mxu0
    %v2911 = vadd.f32 %v2845, %v2910
    %v2912 = vpop.f32.mrb[0].mxu0
    %2913 = vdwg.mxu0
    %v2914 = vadd.f32 %v2771, %v2908
    %v2915 = vadd.f32 %v2772, %v2911
    %v2916 = vld [vmem:[#allocation17 + $0x12] sm:$0x1]
    %v2917 = vld [vmem:[#allocation17 + $0x13] sm:$0x1]
    %v2918 = vsel %vm260, %v2914, 0.0
    %2919 = vadd.xlane.f32.xlu0 %v2918
    %v2920 = vpop.xlane.xlu0 %2919
    %v2921 = vsel %vm260, %v2915, 0.0
    %2922 = vadd.xlane.f32.xlu0 %v2921
    %v2923 = vpop.xlane.xlu0 %2922
    %v2924 = vmul.f32 %v2920, %v977
    %v2925 = vmul.f32 %v2923, %v977
    %v2926 = vsub.f32 %v2914, %v2924
    %v2927 = vsub.f32 %v2915, %v2925
    %v2928 = vmul.f32 %v2926, %v2926
    %v2929 = vmul.f32 %v2927, %v2927
    %v2930 = vsel %vm260, %v2928, 0.0
    %2931 = vadd.xlane.f32.xlu0 %v2930
    %v2932 = vpop.xlane.xlu0 %2931
    %v2933 = vsel %vm260, %v2929, 0.0
    %2934 = vadd.xlane.f32.xlu0 %v2933
    %v2935 = vpop.xlane.xlu0 %2934
    %v2936 = vmul.f32 %v2932, %v977
    %v2937 = vmul.f32 %v2935, %v977
    %v2938 = vadd.f32 %v2936, 1e-05
    %v2939 = vadd.f32 %v2937, 1e-05
    %v2940 = vrsqrt.pop %v2938
    %v2941 = vrsqrt.pop %v2939
    %v2942 = vmul.f32 %v2926, %v2940
    %v2943 = vmul.f32 %v2927, %v2941
    %v2944 = vlaneseq
    %v2945 = vshrl.u32 %v2944, 7
    %v2946 = vsub.s32 0, %v2945
    %v2947 = vrot.slane %v2916, %v2946
    %v2948 = vmul.f32 %v2942, %v2947
    %v2949 = vmul.f32 %v2943, %v2947
    %v2950 = vlaneseq
    %v2951 = vshrl.u32 %v2950, 7
    %v2952 = vsub.s32 0, %v2951
    %v2953 = vrot.slane %v2917, %v2952
    %v2954 = vadd.f32 %v2948, %v2953
    %v2955 = vadd.f32 %v2949, %v2953
    %v2956 = vld [vmem:[%s15] sm:$0x1]
    %v2957 = vld [vmem:[%s16] sm:$0x1]
    %v2958 = vsel %vm260, %v2954, 0.0
    %2959 = vadd.xlane.f32.xlu0 %v2958
    %v2960 = vpop.xlane.xlu0 %2959
    %v2961 = vsel %vm260, %v2955, 0.0
    %2962 = vadd.xlane.f32.xlu0 %v2961
    %v2963 = vpop.xlane.xlu0 %2962
    %v2964 = vmul.f32 %v2960, %v977
    %v2965 = vmul.f32 %v2963, %v977
    %v2966 = vsub.f32 %v2954, %v2964
    %v2967 = vsub.f32 %v2955, %v2965
    %v2968 = vmul.f32 %v2966, %v2966
    %v2969 = vmul.f32 %v2967, %v2967
    %v2970 = vsel %vm260, %v2968, 0.0
    %2971 = vadd.xlane.f32.xlu0 %v2970
    %v2972 = vpop.xlane.xlu0 %2971
    %v2973 = vsel %vm260, %v2969, 0.0
    %2974 = vadd.xlane.f32.xlu0 %v2973
    %v2975 = vpop.xlane.xlu0 %2974
    %v2976 = vmul.f32 %v2972, %v977
    %v2977 = vmul.f32 %v2975, %v977
    %v2978 = vadd.f32 %v2976, 1e-05
    %v2979 = vadd.f32 %v2977, 1e-05
    %v2980 = vrsqrt.pop %v2978
    %v2981 = vrsqrt.pop %v2979
    %v2982 = vmul.f32 %v2966, %v2980
    %v2983 = vmul.f32 %v2967, %v2981
    %v2985 = vlaneseq
    %v2986 = vshrl.u32 %v2985, 7
    %v2987 = vsub.s32 0, %v2986
    %v2988 = vrot.slane %v2956, %v2987
    %v2990 = vmul.f32 %v2982, %v2988
    %v2991 = vmul.f32 %v2983, %v2988
    %v2993 = vlaneseq
    %v2994 = vshrl.u32 %v2993, 7
    %v2995 = vsub.s32 0, %v2994
    %v2996 = vrot.slane %v2957, %v2995
    %v2998 = vadd.f32 %v2990, %v2996
    %v2999 = vadd.f32 %v2991, %v2996
    %3000 = vst.msk [vmem:[#allocation20] sm:$0xff] %vm260, %v2998
    %3001 = vst.msk [vmem:[#allocation20 + $0x8] sm:$0xff] %vm260, %v2999
    // Predicated region
    $region114: #{transformer_decoder.1} parent=1 // pred_check
      _
    $region115: #{transformer_decoder.1} parent=1 // pred_check_branch
      %3003 = sbr.rel (0) target = $region117
    $region116: #{transformer_decoder.1} parent=1 // pred_region
      %s3005 = ssub.s32 256, 256
      %3006 = vsyncadd [#allocation4], %s3005
      %s3007 = sshll.u32 [#allocation20], 4
      %s3008 = int_to_ptr.vmem [resolvable:$true] %s3007
      %3013 = dma.vmem_to_hbm [thread:$0]  %s3008, 256, %s17, [#allocation4], 128, 128, 8
    $region117: #{transformer_decoder.1} parent=1 // pred_fallthru
      _
    // Predicated region
    $region118: #{transformer_decoder.1} parent=1 // pred_check
      _
    $region119: #{transformer_decoder.1} parent=1 // pred_check_branch
      %3015 = sbr.rel (0) target = $region121
    $region120: #{transformer_decoder.1} parent=1 // pred_region
      %3016 = dma.done [#allocation4], 256
    $region121: #{transformer_decoder.1} parent=1 // pred_fallthru
      _
    %3017 = vsyncpa [#allocation3], 1
    %3018 = vsyncpa [#allocation6], 1
    %3019 = vsyncpa [#allocation9], 1
    %3020 = vsyncpa [#allocation12], 1
    %3021 = vsyncpa [#allocation15], 1
    %3022 = vsyncpa [#allocation18], 1
    %3023 = vsyncpa [#allocation4], 1

</llo_original>
